<compile_context>
chip_gen: v5e
topology: v5e:2x2
jax: 0.10.0
libtpu: 0.0.40
codegen_flags: <defaults>
</compile_context>

<pallas_src>
import functools

import jax
import jax.numpy as jnp
from jax.experimental import pallas as pl
from jax.experimental.pallas import tpu as pltpu

# Finite stand-in for -inf: avoids (-inf) - (-inf) = NaN in the zero-valid-row
# edge case of the online logsumexp (fully padded slices).  Keep scratch f32.
_NEG = -1e30


def _mine_kernel(x_ref, y_ref, ys_ref, wx_ref, wy_ref, b1_ref, w2_ref,  # inputs
                 stats_ref,                                             # output
                 sumh_ref, max_ref, se_ref,                             # scratch
                 *, actual_n, tile_n, tiles_per_slice):
    s = pl.program_id(0)   # slice ("parallel"; CORE_PARALLEL on v7x)
    i = pl.program_id(1)   # batch tile within slice ("arbitrary" reduction)

    @pl.when(i == 0)
    def _init():
        sumh_ref[...] = jnp.zeros_like(sumh_ref)
        max_ref[...] = jnp.full_like(max_ref, _NEG)
        se_ref[...] = jnp.zeros_like(se_ref)
        stats_ref[...] = jnp.zeros_like(stats_ref)

    row0 = (s * tiles_per_slice + i) * tile_n

    # Skip the whole body on fully padded tiles (slice imbalance).
    @pl.when(row0 < actual_n)
    def _compute():
        # Three MXU matmuls against VMEM-resident weights; h_x shared between
        # the joint and marginal branches (x is streamed from HBM only once).
        h_x = jnp.dot(x_ref[...], wx_ref[...], preferred_element_type=jnp.float32)
        h_y = jnp.dot(y_ref[...], wy_ref[...], preferred_element_type=jnp.float32)
        h_ys = jnp.dot(ys_ref[...], wy_ref[...], preferred_element_type=jnp.float32)
        b1 = b1_ref[...].astype(jnp.float32)
        w2 = w2_ref[...].astype(jnp.float32)                       # (1, H)

        h_j = jnp.maximum(h_x + h_y + b1, 0.0)                     # (TN, H)
        h_m = jnp.maximum(h_x + h_ys + b1, 0.0)                    # (TN, H)
        # Marginal score per row: VPU mul + lane reduce (no skinny MXU matmul).
        t_m = jnp.sum(h_m * w2, axis=-1, keepdims=True)            # (TN, 1)

        def _update(h_j_eff, t_m_eff):
            # Joint: lane-wide f32 partial sums (H->1 projection deferred
            # to finalize: sum_n T_j(n) = w2 . sum_n h_j(n)).
            sumh_ref[...] += jnp.sum(h_j_eff, axis=0, keepdims=True)
            # Marginal: streaming (online) logsumexp across batch tiles.
            tile_max = jnp.max(t_m_eff, keepdims=True)             # (1, 1)
            new_m = jnp.maximum(max_ref[...], tile_max)
            p = jnp.exp(t_m_eff - new_m)                           # padded rows -> 0
            se_ref[...] = (se_ref[...] * jnp.exp(max_ref[...] - new_m)
                           + jnp.sum(p, keepdims=True))
            max_ref[...] = new_m

        is_full = row0 + tile_n <= actual_n

        @pl.when(is_full)                 # interior tiles: unmasked fast path
        def _fast():
            _update(h_j, t_m)

        @pl.when(jnp.logical_not(is_full))  # the one tile straddling actual_n
        def _ragged():
            rows = row0 + jax.lax.broadcasted_iota(jnp.int32, (tile_n, 1), 0)
            valid = rows < actual_n
            _update(jnp.where(valid, h_j, 0.0),
                    jnp.where(valid, t_m, _NEG))

    @pl.when(i == pl.num_programs(1) - 1)
    def _finalize():
        # Per-slice partial stats, lane-dense row writes:
        #   row 0: per-lane weighted joint partials (wrapper sums them)
        #   row 1: running max of marginal scores
        #   row 2: running sum of exp(score - max)
        w2 = w2_ref[...].astype(jnp.float32)
        hdim = stats_ref.shape[1]
        stats_ref[0:1, :] = sumh_ref[...] * w2
        stats_ref[1:2, :] = jnp.broadcast_to(max_ref[...], (1, hdim))
        stats_ref[2:3, :] = jnp.broadcast_to(se_ref[...], (1, hdim))


def mine_objective(x, y, y_shuf, params, *, tile_n=512, num_slices=1,
                   compute_dtype=jnp.bfloat16):
    """objective_func(x, y): Donsker-Varadhan MI lower bound (scalar)."""
    wx, wy, b1, w2, b2 = params
    del b2  # cancels algebraically between mean(T) and logmeanexp(T)
    n, dx = x.shape
    _, dy = y.shape
    hdim = wx.shape[1]

    # Stream activations / first-layer weights in bf16 (half the HBM bytes on a
    # memory-bound kernel); all post-matmul math stays f32 inside the kernel.
    # In a training loop, cast x/y once outside and only y_shuf per step.
    x_c = x.astype(compute_dtype)
    y_c = y.astype(compute_dtype)
    ys_c = y_shuf.astype(compute_dtype)
    wx_c = wx.astype(compute_dtype)
    wy_c = wy.astype(compute_dtype)
    b1_row = b1.reshape(1, hdim).astype(jnp.float32)
    w2_row = w2.reshape(1, hdim).astype(jnp.float32)

    tiles_total = pl.cdiv(n, tile_n)
    tiles_per_slice = pl.cdiv(tiles_total, num_slices)
    last_blk = tiles_total - 1

    def _row_map(s, i):
        # Clamp so fully padded tiles (skipped by pl.when in the kernel) never
        # request an out-of-bounds DMA window; no wrapper jnp.pad needed.
        blk = jnp.minimum(s * tiles_per_slice + i, last_blk)
        return (blk, 0)

    kernel = functools.partial(_mine_kernel, actual_n=n, tile_n=tile_n,
                               tiles_per_slice=tiles_per_slice)

    stats = pl.pallas_call(
        kernel,
        out_shape=jax.ShapeDtypeStruct((num_slices * 8, hdim), jnp.float32),
        grid_spec=pltpu.PrefetchScalarGridSpec(
            num_scalar_prefetch=0,
            grid=(num_slices, tiles_per_slice),
            in_specs=[
                # Streamed activations: (tile_n, D) blocks, double-buffered.
                pl.BlockSpec((tile_n, dx), _row_map),
                pl.BlockSpec((tile_n, dy), _row_map),
                pl.BlockSpec((tile_n, dy), _row_map),
                # Weights: constant block index -> VMEM-resident, fetched once.
                pl.BlockSpec((dx, hdim), lambda s, i: (0, 0)),
                pl.BlockSpec((dy, hdim), lambda s, i: (0, 0)),
                pl.BlockSpec((1, hdim), lambda s, i: (0, 0)),
                pl.BlockSpec((1, hdim), lambda s, i: (0, 0)),
            ],
            out_specs=pl.BlockSpec((8, hdim), lambda s, i: (s, 0)),
            scratch_shapes=[
                pltpu.VMEM((1, hdim), jnp.float32),   # per-lane joint sums
                pltpu.VMEM((1, 1), jnp.float32),      # LSE running max
                pltpu.VMEM((1, 1), jnp.float32),      # LSE running sumexp
            ],
        ),
        # On v7x, pass pltpu.CORE_PARALLEL for axis 0 (with num_slices=2) to
        # shard slices across the two TensorCores.
        compiler_params=pltpu.CompilerParams(
            dimension_semantics=("parallel", "arbitrary")),
    )(x_c, y_c, ys_c, wx_c, wy_c, b1_row, w2_row)

    # Combine per-slice partials (tiny wrapper glue).
    stats = stats.reshape(num_slices, 8, hdim)
    joint_lanes = stats[:, 0, :]                      # (S, H)
    pmax = stats[:, 1, 0]                             # (S,)
    pse = stats[:, 2, 0]                              # (S,)
    mean_joint = jnp.sum(joint_lanes) / n
    gmax = jnp.max(pmax)
    total_se = jnp.sum(pse * jnp.exp(pmax - gmax))
    log_mean_exp = gmax + jnp.log(total_se / n)
    return mean_joint - log_mean_exp


def init_params(key, dx, dy, hidden):
    k1, k2, k3 = jax.random.split(key, 3)
    wx = jax.random.normal(k1, (dx, hidden), jnp.float32) * (1.0 / jnp.sqrt(dx))
    wy = jax.random.normal(k2, (dy, hidden), jnp.float32) * (1.0 / jnp.sqrt(dy))
    b1 = jnp.zeros((1, hidden), jnp.float32)
    w2 = jax.random.normal(k3, (hidden, 1), jnp.float32) * (1.0 / jnp.sqrt(hidden))
    b2 = jnp.zeros((1, 1), jnp.float32)
    return (wx, wy, b1, w2, b2)


if __name__ == "__main__":
    key = jax.random.PRNGKey(0)
    kx, ky, kp = jax.random.split(key, 3)

    # dx+dy = 128 lanes, H = 128.  N = 1300 gives two full 512-row tiles plus a
    # ragged 276-row tile, exercising both the unmasked fast path and the
    # masked straddling-tile path.
    N, DX, DY, H = 1300, 64, 64, 128
    x = jax.random.normal(kx, (N, DX), jnp.float32)
    y = jax.random.normal(ky, (N, DY), jnp.float32)
    # Deterministic "shuffle" of y for the marginal term (glue, not hot path).
    y_shuf = jnp.roll(y, shift=1, axis=0)

    params = init_params(kp, DX, DY, H)

    mi_lb = jax.block_until_ready(jax.jit(mine_objective)(x, y, y_shuf, params))

    # Pure-JAX reference with the same bf16 rounding of the streamed tensors
    # (matmul products of bf16-exact values are exact in f32; b2 cancels).
    wx, wy, b1, w2, b2 = params
    _r = lambda a: a.astype(jnp.bfloat16).astype(jnp.float32)
    h_j = jnp.maximum(_r(x) @ _r(wx) + _r(y) @ _r(wy) + b1, 0.0)
    h_m = jnp.maximum(_r(x) @ _r(wx) + _r(y_shuf) @ _r(wy) + b1, 0.0)
    t_j = jnp.sum(h_j * w2.reshape(1, -1), axis=-1) + b2[0, 0]
    t_m = jnp.sum(h_m * w2.reshape(1, -1), axis=-1) + b2[0, 0]
    m = jnp.max(t_m)
    ref = jnp.mean(t_j) - (m + jnp.log(jnp.mean(jnp.exp(t_m - m))))
    assert jnp.allclose(mi_lb, ref, atol=1e-3, rtol=1e-3), (mi_lb, ref)

    # Also exercise the multi-slice path (v7x-style num_slices=2): padded-tile
    # skip, clamped block indices, and the cross-slice LSE/sum combination.
    mi_lb2 = jax.block_until_ready(
        jax.jit(functools.partial(mine_objective, num_slices=2))(x, y, y_shuf, params))
    assert jnp.allclose(mi_lb2, ref, atol=1e-3, rtol=1e-3), (mi_lb2, ref)

    print("KERNEL_OK")
</pallas_src>

<mosaic_0001>
module attributes {stable_mosaic.version = 11 : i64} {
  func.func @_mine_kernel(%arg0: i32, %arg1: i32, %arg2: memref<512x64xbf16, #tpu.memory_space<vmem>>, %arg3: memref<512x64xbf16, #tpu.memory_space<vmem>>, %arg4: memref<512x64xbf16, #tpu.memory_space<vmem>>, %arg5: memref<64x128xbf16, #tpu.memory_space<vmem>>, %arg6: memref<64x128xbf16, #tpu.memory_space<vmem>>, %arg7: memref<1x128xf32, #tpu.memory_space<vmem>>, %arg8: memref<1x128xf32, #tpu.memory_space<vmem>>, %arg9: memref<8x128xf32, #tpu.memory_space<vmem>>, %arg10: memref<1x128xf32, #tpu.memory_space<vmem>>, %arg11: memref<1x1xf32, #tpu.memory_space<vmem>>, %arg12: memref<1x1xf32, #tpu.memory_space<vmem>>) attributes {dimension_semantics = [#tpu.dimension_semantics<parallel>, #tpu.dimension_semantics<arbitrary>], iteration_bounds = array<i64: 1, 3>, scalar_prefetch = 0 : i64, scratch_operands = 3 : i64, tpu.core_type = #tpu.core_type<tc>, window_params = [{transform_indices = @transform_0, window_bounds = array<i64: 512, 64>}, {transform_indices = @transform_1, window_bounds = array<i64: 512, 64>}, {transform_indices = @transform_2, window_bounds = array<i64: 512, 64>}, {pipeline_mode = #tpu.pipeline_mode<synchronous>, transform_indices = @transform_3, window_bounds = array<i64: 64, 128>}, {pipeline_mode = #tpu.pipeline_mode<synchronous>, transform_indices = @transform_4, window_bounds = array<i64: 64, 128>}, {pipeline_mode = #tpu.pipeline_mode<synchronous>, transform_indices = @transform_5, window_bounds = array<i64: 1, 128>}, {pipeline_mode = #tpu.pipeline_mode<synchronous>, transform_indices = @transform_6, window_bounds = array<i64: 1, 128>}, {transform_indices = @transform_7, window_bounds = array<i64: 8, 128>}]} {
    %c0_i32 = arith.constant 0 : i32
    %0 = arith.cmpi eq, %arg1, %c0_i32 : i32
    %1 = arith.extui %0 : i1 to i32
    %c0_i32_0 = arith.constant 0 : i32
    %2 = arith.cmpi ne, %1, %c0_i32_0 : i32
    scf.if %2 {
      %cst = arith.constant 0.000000e+00 : f32
      %12 = vector.broadcast %cst : f32 to vector<1x128xf32>
      %c0 = arith.constant 0 : index
      %c0_3 = arith.constant 0 : index
      %13 = vector.load %arg10[%c0, %c0_3] : memref<1x128xf32, #tpu.memory_space<vmem>>, vector<1x128xf32>
      tpu.vector_store %arg10[%c0, %c0_3], %12 {strides = array<i32>} : memref<1x128xf32, #tpu.memory_space<vmem>>, vector<1x128xf32>,
      %cst_4 = arith.constant -1.000000e+30 : f32
      %14 = vector.broadcast %cst_4 : f32 to vector<1x1xf32>
      %c0_5 = arith.constant 0 : index
      %c0_6 = arith.constant 0 : index
      %15 = vector.load %arg11[%c0_5, %c0_6] : memref<1x1xf32, #tpu.memory_space<vmem>>, vector<1x1xf32>
      tpu.vector_store %arg11[%c0_5, %c0_6], %14 {strides = array<i32>} : memref<1x1xf32, #tpu.memory_space<vmem>>, vector<1x1xf32>,
      %cst_7 = arith.constant 0.000000e+00 : f32
      %16 = vector.broadcast %cst_7 : f32 to vector<1x1xf32>
      %c0_8 = arith.constant 0 : index
      %c0_9 = arith.constant 0 : index
      %17 = vector.load %arg12[%c0_8, %c0_9] : memref<1x1xf32, #tpu.memory_space<vmem>>, vector<1x1xf32>
      tpu.vector_store %arg12[%c0_8, %c0_9], %16 {strides = array<i32>} : memref<1x1xf32, #tpu.memory_space<vmem>>, vector<1x1xf32>,
      %cst_10 = arith.constant 0.000000e+00 : f32
      %18 = vector.broadcast %cst_10 : f32 to vector<8x128xf32>
      %c0_11 = arith.constant 0 : index
      %c0_12 = arith.constant 0 : index
      %19 = vector.load %arg9[%c0_11, %c0_12] : memref<8x128xf32, #tpu.memory_space<vmem>>, vector<8x128xf32>
      tpu.vector_store %arg9[%c0_11, %c0_12], %18 {strides = array<i32>} : memref<8x128xf32, #tpu.memory_space<vmem>>, vector<8x128xf32>,
    } else {
    }
    %c3_i32 = arith.constant 3 : i32
    %3 = arith.muli %arg0, %c3_i32 : i32
    %4 = arith.addi %3, %arg1 : i32
    %c512_i32 = arith.constant 512 : i32
    %5 = arith.muli %4, %c512_i32 : i32
    %c1300_i32 = arith.constant 1300 : i32
    %6 = arith.cmpi slt, %5, %c1300_i32 : i32
    %7 = arith.extui %6 : i1 to i32
    %c0_i32_1 = arith.constant 0 : i32
    %8 = arith.cmpi ne, %7, %c0_i32_1 : i32
    scf.if %8 {
      %c0 = arith.constant 0 : index
      %c0_3 = arith.constant 0 : index
      %12 = vector.load %arg2[%c0, %c0_3] : memref<512x64xbf16, #tpu.memory_space<vmem>>, vector<512x64xbf16>
      %c0_4 = arith.constant 0 : index
      %c0_5 = arith.constant 0 : index
      %13 = vector.load %arg5[%c0_4, %c0_5] : memref<64x128xbf16, #tpu.memory_space<vmem>>, vector<64x128xbf16>
      %cst = arith.constant dense<0.000000e+00> : vector<512x128xf32>
      %14 = tpu.matmul %12, %13, %cst {dimension_numbers = #tpu.dot_dimension_numbers<[1], [0], [0], [1], [0, 0, 1, 1], [], []>} : vector<512x64xbf16>, vector<64x128xbf16>, vector<512x128xf32> -> vector<512x128xf32>
      %c0_6 = arith.constant 0 : index
      %c0_7 = arith.constant 0 : index
      %15 = vector.load %arg3[%c0_6, %c0_7] : memref<512x64xbf16, #tpu.memory_space<vmem>>, vector<512x64xbf16>
      %c0_8 = arith.constant 0 : index
      %c0_9 = arith.constant 0 : index
      %16 = vector.load %arg6[%c0_8, %c0_9] : memref<64x128xbf16, #tpu.memory_space<vmem>>, vector<64x128xbf16>
      %cst_10 = arith.constant dense<0.000000e+00> : vector<512x128xf32>
      %17 = tpu.matmul %15, %16, %cst_10 {dimension_numbers = #tpu.dot_dimension_numbers<[1], [0], [0], [1], [0, 0, 1, 1], [], []>} : vector<512x64xbf16>, vector<64x128xbf16>, vector<512x128xf32> -> vector<512x128xf32>
      %c0_11 = arith.constant 0 : index
      %c0_12 = arith.constant 0 : index
      %18 = vector.load %arg4[%c0_11, %c0_12] : memref<512x64xbf16, #tpu.memory_space<vmem>>, vector<512x64xbf16>
      %c0_13 = arith.constant 0 : index
      %c0_14 = arith.constant 0 : index
      %19 = vector.load %arg6[%c0_13, %c0_14] : memref<64x128xbf16, #tpu.memory_space<vmem>>, vector<64x128xbf16>
      %cst_15 = arith.constant dense<0.000000e+00> : vector<512x128xf32>
      %20 = tpu.matmul %18, %19, %cst_15 {dimension_numbers = #tpu.dot_dimension_numbers<[1], [0], [0], [1], [0, 0, 1, 1], [], []>} : vector<512x64xbf16>, vector<64x128xbf16>, vector<512x128xf32> -> vector<512x128xf32>
      %c0_16 = arith.constant 0 : index
      %c0_17 = arith.constant 0 : index
      %21 = vector.load %arg7[%c0_16, %c0_17] : memref<1x128xf32, #tpu.memory_space<vmem>>, vector<1x128xf32>
      %c0_18 = arith.constant 0 : index
      %c0_19 = arith.constant 0 : index
      %22 = vector.load %arg8[%c0_18, %c0_19] : memref<1x128xf32, #tpu.memory_space<vmem>>, vector<1x128xf32>
      %23 = arith.addf %14, %17 : vector<512x128xf32>
      %24 = vector.broadcast %21 : vector<1x128xf32> to vector<512x128xf32>
      %25 = arith.addf %23, %24 : vector<512x128xf32>
      %cst_20 = arith.constant 0.000000e+00 : f32
      %26 = vector.broadcast %cst_20 : f32 to vector<512x128xf32>
      %27 = arith.maximumf %25, %26 : vector<512x128xf32>
      %28 = arith.addf %14, %20 : vector<512x128xf32>
      %29 = vector.broadcast %21 : vector<1x128xf32> to vector<512x128xf32>
      %30 = arith.addf %28, %29 : vector<512x128xf32>
      %cst_21 = arith.constant 0.000000e+00 : f32
      %31 = vector.broadcast %cst_21 : f32 to vector<512x128xf32>
      %32 = arith.maximumf %30, %31 : vector<512x128xf32>
      %33 = vector.broadcast %22 : vector<1x128xf32> to vector<512x128xf32>
      %34 = arith.mulf %32, %33 : vector<512x128xf32>
      %cst_22 = arith.constant dense<0.000000e+00> : vector<512xf32>
      %35 = vector.multi_reduction <add>, %34, %cst_22 [1] : vector<512x128xf32> to vector<512xf32>
      %36 = vector.shape_cast %35 : vector<512xf32> to vector<512x1xf32>
      %c512_i32_23 = arith.constant 512 : i32
      %37 = arith.addi %5, %c512_i32_23 : i32
      %c1300_i32_24 = arith.constant 1300 : i32
      %38 = arith.cmpi sle, %37, %c1300_i32_24 : i32
      %39 = arith.extui %38 : i1 to i32
      %c0_i32_25 = arith.constant 0 : i32
      %40 = arith.cmpi ne, %39, %c0_i32_25 : i32
      scf.if %40 {
        %c0_27 = arith.constant 0 : index
        %c0_28 = arith.constant 0 : index
        %44 = vector.load %arg10[%c0_27, %c0_28] : memref<1x128xf32, #tpu.memory_space<vmem>>, vector<1x128xf32>
        %cst_29 = arith.constant dense<0.000000e+00> : vector<128xf32>
        %45 = vector.multi_reduction <add>, %27, %cst_29 [0] : vector<512x128xf32> to vector<128xf32>
        %46 = vector.shape_cast %45 : vector<128xf32> to vector<1x128xf32>
        %47 = arith.addf %44, %46 : vector<1x128xf32>
        %c0_30 = arith.constant 0 : index
        %c0_31 = arith.constant 0 : index
        %48 = vector.load %arg10[%c0_30, %c0_31] : memref<1x128xf32, #tpu.memory_space<vmem>>, vector<1x128xf32>
        tpu.vector_store %arg10[%c0_30, %c0_31], %47 {strides = array<i32>} : memref<1x128xf32, #tpu.memory_space<vmem>>, vector<1x128xf32>,
        %49 = vector.shape_cast %36 : vector<512x1xf32> to vector<1x512x1xf32>
        %cst_32 = arith.constant dense<0xFF800000> : vector<1xf32>
        %50 = vector.multi_reduction <maximumf>, %49, %cst_32 [1, 2] : vector<1x512x1xf32> to vector<1xf32>
        %51 = vector.shape_cast %50 : vector<1xf32> to vector<1x1x1xf32>
        %52 = vector.extract %51[0, 0, 0] : f32 from vector<1x1x1xf32>
        %53 = vector.broadcast %52 : f32 to vector<1x1xf32>
        %c0_33 = arith.constant 0 : index
        %c0_34 = arith.constant 0 : index
        %54 = vector.load %arg11[%c0_33, %c0_34] : memref<1x1xf32, #tpu.memory_space<vmem>>, vector<1x1xf32>
        %55 = arith.maximumf %54, %53 : vector<1x1xf32>
        %56 = vector.broadcast %55 : vector<1x1xf32> to vector<512x1xf32>
        %57 = arith.subf %36, %56 : vector<512x1xf32>
        %58 = math.exp %57 : vector<512x1xf32>
        %c0_35 = arith.constant 0 : index
        %c0_36 = arith.constant 0 : index
        %59 = vector.load %arg12[%c0_35, %c0_36] : memref<1x1xf32, #tpu.memory_space<vmem>>, vector<1x1xf32>
        %c0_37 = arith.constant 0 : index
        %c0_38 = arith.constant 0 : index
        %60 = vector.load %arg11[%c0_37, %c0_38] : memref<1x1xf32, #tpu.memory_space<vmem>>, vector<1x1xf32>
        %61 = arith.subf %60, %55 : vector<1x1xf32>
        %62 = math.exp %61 : vector<1x1xf32>
        %63 = arith.mulf %59, %62 : vector<1x1xf32>
        %64 = vector.shape_cast %58 : vector<512x1xf32> to vector<1x512x1xf32>
        %cst_39 = arith.constant dense<0.000000e+00> : vector<1xf32>
        %65 = vector.multi_reduction <add>, %64, %cst_39 [1, 2] : vector<1x512x1xf32> to vector<1xf32>
        %66 = vector.shape_cast %65 : vector<1xf32> to vector<1x1x1xf32>
        %67 = vector.extract %66[0, 0, 0] : f32 from vector<1x1x1xf32>
        %68 = vector.broadcast %67 : f32 to vector<1x1xf32>
        %69 = arith.addf %63, %68 : vector<1x1xf32>
        %c0_40 = arith.constant 0 : index
        %c0_41 = arith.constant 0 : index
        %70 = vector.load %arg12[%c0_40, %c0_41] : memref<1x1xf32, #tpu.memory_space<vmem>>, vector<1x1xf32>
        tpu.vector_store %arg12[%c0_40, %c0_41], %69 {strides = array<i32>} : memref<1x1xf32, #tpu.memory_space<vmem>>, vector<1x1xf32>,
        %c0_42 = arith.constant 0 : index
        %c0_43 = arith.constant 0 : index
        %71 = vector.load %arg11[%c0_42, %c0_43] : memref<1x1xf32, #tpu.memory_space<vmem>>, vector<1x1xf32>
        tpu.vector_store %arg11[%c0_42, %c0_43], %55 {strides = array<i32>} : memref<1x1xf32, #tpu.memory_space<vmem>>, vector<1x1xf32>,
      } else {
      }
      %true = arith.constant true
      %41 = arith.xori %38, %true : i1
      %42 = arith.extui %41 : i1 to i32
      %c0_i32_26 = arith.constant 0 : i32
      %43 = arith.cmpi ne, %42, %c0_i32_26 : i32
      scf.if %43 {
        %44 = tpu.iota {dimensions = array<i32: 0>} : vector<512x1xi32>
        %45 = vector.broadcast %5 : i32 to vector<512x1xi32>
        %46 = arith.addi %45, %44 : vector<512x1xi32>
        %c1300_i32_27 = arith.constant 1300 : i32
        %47 = vector.broadcast %c1300_i32_27 : i32 to vector<512x1xi32>
        %48 = arith.cmpi slt, %46, %47 : vector<512x1xi32>
        %cst_28 = arith.constant 0.000000e+00 : f32
        %49 = vector.shape_cast %48 : vector<512x1xi1> to vector<512x1xi1>
        %50 = vector.broadcast %49 : vector<512x1xi1> to vector<512x128xi1>
        %51 = vector.broadcast %cst_28 : f32 to vector<512x128xf32>
        %52 = arith.select %50, %27, %51 : vector<512x128xi1>, vector<512x128xf32>
        %cst_29 = arith.constant -1.000000e+30 : f32
        %53 = vector.broadcast %cst_29 : f32 to vector<512x1xf32>
        %54 = arith.select %48, %36, %53 : vector<512x1xi1>, vector<512x1xf32>
        %c0_30 = arith.constant 0 : index
        %c0_31 = arith.constant 0 : index
        %55 = vector.load %arg10[%c0_30, %c0_31] : memref<1x128xf32, #tpu.memory_space<vmem>>, vector<1x128xf32>
        %cst_32 = arith.constant dense<0.000000e+00> : vector<128xf32>
        %56 = vector.multi_reduction <add>, %52, %cst_32 [0] : vector<512x128xf32> to vector<128xf32>
        %57 = vector.shape_cast %56 : vector<128xf32> to vector<1x128xf32>
        %58 = arith.addf %55, %57 : vector<1x128xf32>
        %c0_33 = arith.constant 0 : index
        %c0_34 = arith.constant 0 : index
        %59 = vector.load %arg10[%c0_33, %c0_34] : memref<1x128xf32, #tpu.memory_space<vmem>>, vector<1x128xf32>
        tpu.vector_store %arg10[%c0_33, %c0_34], %58 {strides = array<i32>} : memref<1x128xf32, #tpu.memory_space<vmem>>, vector<1x128xf32>,
        %60 = vector.shape_cast %54 : vector<512x1xf32> to vector<1x512x1xf32>
        %cst_35 = arith.constant dense<0xFF800000> : vector<1xf32>
        %61 = vector.multi_reduction <maximumf>, %60, %cst_35 [1, 2] : vector<1x512x1xf32> to vector<1xf32>
        %62 = vector.shape_cast %61 : vector<1xf32> to vector<1x1x1xf32>
        %63 = vector.extract %62[0, 0, 0] : f32 from vector<1x1x1xf32>
        %64 = vector.broadcast %63 : f32 to vector<1x1xf32>
        %c0_36 = arith.constant 0 : index
        %c0_37 = arith.constant 0 : index
        %65 = vector.load %arg11[%c0_36, %c0_37] : memref<1x1xf32, #tpu.memory_space<vmem>>, vector<1x1xf32>
        %66 = arith.maximumf %65, %64 : vector<1x1xf32>
        %67 = vector.broadcast %66 : vector<1x1xf32> to vector<512x1xf32>
        %68 = arith.subf %54, %67 : vector<512x1xf32>
        %69 = math.exp %68 : vector<512x1xf32>
        %c0_38 = arith.constant 0 : index
        %c0_39 = arith.constant 0 : index
        %70 = vector.load %arg12[%c0_38, %c0_39] : memref<1x1xf32, #tpu.memory_space<vmem>>, vector<1x1xf32>
        %c0_40 = arith.constant 0 : index
        %c0_41 = arith.constant 0 : index
        %71 = vector.load %arg11[%c0_40, %c0_41] : memref<1x1xf32, #tpu.memory_space<vmem>>, vector<1x1xf32>
        %72 = arith.subf %71, %66 : vector<1x1xf32>
        %73 = math.exp %72 : vector<1x1xf32>
        %74 = arith.mulf %70, %73 : vector<1x1xf32>
        %75 = vector.shape_cast %69 : vector<512x1xf32> to vector<1x512x1xf32>
        %cst_42 = arith.constant dense<0.000000e+00> : vector<1xf32>
        %76 = vector.multi_reduction <add>, %75, %cst_42 [1, 2] : vector<1x512x1xf32> to vector<1xf32>
        %77 = vector.shape_cast %76 : vector<1xf32> to vector<1x1x1xf32>
        %78 = vector.extract %77[0, 0, 0] : f32 from vector<1x1x1xf32>
        %79 = vector.broadcast %78 : f32 to vector<1x1xf32>
        %80 = arith.addf %74, %79 : vector<1x1xf32>
        %c0_43 = arith.constant 0 : index
        %c0_44 = arith.constant 0 : index
        %81 = vector.load %arg12[%c0_43, %c0_44] : memref<1x1xf32, #tpu.memory_space<vmem>>, vector<1x1xf32>
        tpu.vector_store %arg12[%c0_43, %c0_44], %80 {strides = array<i32>} : memref<1x1xf32, #tpu.memory_space<vmem>>, vector<1x1xf32>,
        %c0_45 = arith.constant 0 : index
        %c0_46 = arith.constant 0 : index
        %82 = vector.load %arg11[%c0_45, %c0_46] : memref<1x1xf32, #tpu.memory_space<vmem>>, vector<1x1xf32>
        tpu.vector_store %arg11[%c0_45, %c0_46], %66 {strides = array<i32>} : memref<1x1xf32, #tpu.memory_space<vmem>>, vector<1x1xf32>,
      } else {
      }
    } else {
    }
    %c2_i32 = arith.constant 2 : i32
    %9 = arith.cmpi eq, %arg1, %c2_i32 : i32
    %10 = arith.extui %9 : i1 to i32
    %c0_i32_2 = arith.constant 0 : i32
    %11 = arith.cmpi ne, %10, %c0_i32_2 : i32
    scf.if %11 {
      %c0 = arith.constant 0 : index
      %c0_3 = arith.constant 0 : index
      %12 = vector.load %arg8[%c0, %c0_3] : memref<1x128xf32, #tpu.memory_space<vmem>>, vector<1x128xf32>
      %c0_4 = arith.constant 0 : index
      %c0_5 = arith.constant 0 : index
      %13 = vector.load %arg10[%c0_4, %c0_5] : memref<1x128xf32, #tpu.memory_space<vmem>>, vector<1x128xf32>
      %14 = arith.mulf %13, %12 : vector<1x128xf32>
      %c0_6 = arith.constant 0 : index
      %c0_7 = arith.constant 0 : index
      %15 = vector.load %arg9[%c0_6, %c0_7] : memref<8x128xf32, #tpu.memory_space<vmem>>, vector<1x128xf32>
      tpu.vector_store %arg9[%c0_6, %c0_7], %14 {strides = array<i32>} : memref<8x128xf32, #tpu.memory_space<vmem>>, vector<1x128xf32>,
      %c0_8 = arith.constant 0 : index
      %c0_9 = arith.constant 0 : index
      %16 = vector.load %arg11[%c0_8, %c0_9] : memref<1x1xf32, #tpu.memory_space<vmem>>, vector<1x1xf32>
      %17 = vector.shape_cast %16 : vector<1x1xf32> to vector<1x1xf32>
      %18 = vector.broadcast %17 : vector<1x1xf32> to vector<1x128xf32>
      %c1 = arith.constant 1 : index
      %c0_10 = arith.constant 0 : index
      %19 = vector.load %arg9[%c1, %c0_10] : memref<8x128xf32, #tpu.memory_space<vmem>>, vector<1x128xf32>
      tpu.vector_store %arg9[%c1, %c0_10], %18 {strides = array<i32>} : memref<8x128xf32, #tpu.memory_space<vmem>>, vector<1x128xf32>,
      %c0_11 = arith.constant 0 : index
      %c0_12 = arith.constant 0 : index
      %20 = vector.load %arg12[%c0_11, %c0_12] : memref<1x1xf32, #tpu.memory_space<vmem>>, vector<1x1xf32>
      %21 = vector.shape_cast %20 : vector<1x1xf32> to vector<1x1xf32>
      %22 = vector.broadcast %21 : vector<1x1xf32> to vector<1x128xf32>
      %c2 = arith.constant 2 : index
      %c0_13 = arith.constant 0 : index
      %23 = vector.load %arg9[%c2, %c0_13] : memref<8x128xf32, #tpu.memory_space<vmem>>, vector<1x128xf32>
      tpu.vector_store %arg9[%c2, %c0_13], %22 {strides = array<i32>} : memref<8x128xf32, #tpu.memory_space<vmem>>, vector<1x128xf32>,
    } else {
    }
    return
  }
  func.func @transform_0(%arg0: i32, %arg1: i32) -> (i32, i32) {
    %c3_i32 = arith.constant 3 : i32
    %0 = arith.muli %arg0, %c3_i32 : i32
    %1 = arith.addi %0, %arg1 : i32
    %c2_i32 = arith.constant 2 : i32
    %2 = arith.minsi %1, %c2_i32 : i32
    %c0_i32 = arith.constant 0 : i32
    %c0_i32_0 = arith.constant 0 : i32
    return %2, %c0_i32 : i32, i32
  }
  func.func @transform_1(%arg0: i32, %arg1: i32) -> (i32, i32) {
    %c3_i32 = arith.constant 3 : i32
    %0 = arith.muli %arg0, %c3_i32 : i32
    %1 = arith.addi %0, %arg1 : i32
    %c2_i32 = arith.constant 2 : i32
    %2 = arith.minsi %1, %c2_i32 : i32
    %c0_i32 = arith.constant 0 : i32
    %c0_i32_0 = arith.constant 0 : i32
    return %2, %c0_i32 : i32, i32
  }
  func.func @transform_2(%arg0: i32, %arg1: i32) -> (i32, i32) {
    %c3_i32 = arith.constant 3 : i32
    %0 = arith.muli %arg0, %c3_i32 : i32
    %1 = arith.addi %0, %arg1 : i32
    %c2_i32 = arith.constant 2 : i32
    %2 = arith.minsi %1, %c2_i32 : i32
    %c0_i32 = arith.constant 0 : i32
    %c0_i32_0 = arith.constant 0 : i32
    return %2, %c0_i32 : i32, i32
  }
  func.func @transform_3(%arg0: i32, %arg1: i32) -> (i32, i32) {
    %c0_i32 = arith.constant 0 : i32
    %c0_i32_0 = arith.constant 0 : i32
    %c0_i32_1 = arith.constant 0 : i32
    return %c0_i32, %c0_i32_0 : i32, i32
  }
  func.func @transform_4(%arg0: i32, %arg1: i32) -> (i32, i32) {
    %c0_i32 = arith.constant 0 : i32
    %c0_i32_0 = arith.constant 0 : i32
    %c0_i32_1 = arith.constant 0 : i32
    return %c0_i32, %c0_i32_0 : i32, i32
  }
  func.func @transform_5(%arg0: i32, %arg1: i32) -> (i32, i32) {
    %c0_i32 = arith.constant 0 : i32
    %c0_i32_0 = arith.constant 0 : i32
    %c0_i32_1 = arith.constant 0 : i32
    return %c0_i32, %c0_i32_0 : i32, i32
  }
  func.func @transform_6(%arg0: i32, %arg1: i32) -> (i32, i32) {
    %c0_i32 = arith.constant 0 : i32
    %c0_i32_0 = arith.constant 0 : i32
    %c0_i32_1 = arith.constant 0 : i32
    return %c0_i32, %c0_i32_0 : i32, i32
  }
  func.func @transform_7(%arg0: i32, %arg1: i32) -> (i32, i32) {
    %c0_i32 = arith.constant 0 : i32
    %c0_i32_0 = arith.constant 0 : i32
    return %arg0, %c0_i32 : i32, i32
  }
}

</mosaic_0001>

<llo_original>
// kernel: mine_objective.1
$region0: #{mine_objective.1}
  #allocation0 [shape = 'u32[]', space=smem, size = 0x4, offset = 0x4, fixed_abs, tag = 'smem constant byte address 0x4 - core index']
  #allocation1 [shape = 'u32[72,128]{1,0:T(1,128)}', space=vmem, size = 0x9000, scoped, tag = 'internal scratch']
  #allocation2 [shape = 'f32[1,128]{1,0:T(1,128)}', space=vmem, size = 0x200, scoped, tag = 'scratch operand']
  #allocation3 [shape = 'f32[1,1]{1,0:T(1,128)}', space=vmem, size = 0x200, scoped, tag = 'scratch operand']
  #allocation4 [shape = 'f32[1,1]{1,0:T(1,128)}', space=vmem, size = 0x200, scoped, tag = 'scratch operand']
  %s0 = inlined_call_operand.vmem [shape: bf16[1300,64], index: 0, kind: input, shape index: {}]
  %s1 = inlined_call_operand.vmem [shape: bf16[1300,64], index: 1, kind: input, shape index: {}]
  %s2 = inlined_call_operand.vmem [shape: bf16[1300,64], index: 2, kind: input, shape index: {}]
  %s3 = inlined_call_operand.vmem [shape: bf16[64,128], index: 3, kind: input, shape index: {}]
  %s4 = inlined_call_operand.vmem [shape: bf16[64,128], index: 4, kind: input, shape index: {}]
  %s5 = inlined_call_operand.vmem [shape: f32[1,128], index: 5, kind: input, shape index: {}]
  %s6 = inlined_call_operand.vmem [shape: f32[1,128], index: 6, kind: input, shape index: {}]
  %s7 = inlined_call_operand.vmem [shape: f32[8,128], index: 7, kind: output, shape index: {}]
  %s8 = sld [smem:[#allocation0]]
  $region81: #{mine_objective.1} parent=0
    _
  %s10 = ssub.s32 1, %s8
  %s11 = scalar_select 0, %s10, %s8
  loop: start=0, step=1, limit=5
  $region2: #{mine_objective.1} parent=0 // loop_pre_header
    _
  $region3: #{mine_objective.1} parent=0 // loop_header
    %s13 = sphi 0, %s17
    %p14 = scmp.ge.s32.totalorder %s13, 5
    %s20 = sphi 0, %s32
    %s21 = sphi 0, %s28
    %s22 = sphi 0, %s20
    %s23 = sphi 0, %s21
    %s24 = sphi 0, %s22
    %s25 = sphi 0, %s23
    %s43 = sphi 0, %s45
    %s46 = sphi 0, %s43
    %s47 = sphi 0, %s46
    %s63 = sphi 0, %s47
    %s77 = sphi 0, %s79
    %s80 = sphi 0, %s77
    %s81 = sphi 0, %s80
    %s97 = sphi 0, %s81
    %s111 = sphi 0, %s113
    %s114 = sphi 0, %s111
    %s115 = sphi 0, %s114
    %s131 = sphi 0, %s115
    %s135 = sphi 0, %s135
    %s137 = sphi 0, %s135
    %s138 = sphi 0, %s137
    %s152 = sphi 0, %s138
    %s156 = sphi 0, %s156
    %s158 = sphi 0, %s156
    %s159 = sphi 0, %s158
    %s173 = sphi 0, %s159
    %s177 = sphi 0, %s177
    %s179 = sphi 0, %s177
    %s180 = sphi 0, %s179
    %s194 = sphi 0, %s180
    %s198 = sphi 0, %s198
    %s200 = sphi 0, %s198
    %s201 = sphi 0, %s200
    %s215 = sphi 0, %s201
    %s221 = sphi 0, %s223
    %s224 = sphi 0, %s221
    %s225 = sphi 0, %s224
    %s241 = sphi 0, %s225
  $region4: #{mine_objective.1} parent=0 // loop_header_branch
    %16 = sbr.rel (%p14) target = $region8
  $region5: #{mine_objective.1} parent=0 // loop_body
    %s18 = ssub.s32 %s13, 1
    %s19 = ssub.s32 %s13, 2
    %s26 = sadd.s32 1, %s21
    %p27 = scmp.ge.s32.totalorder %s26, 3
    %s28 = scalar_select %p27, 0, %s26
    %s29 = sadd.s32 1, %s20
    %s30 = scalar_select %p27, %s29, %s20
    %p31 = scmp.ge.s32.totalorder %s30, 1
    %s32 = scalar_select %p31, 0, %s30
    %s33 = smul.u32 %s20, 3
    %s34 = sadd.s32 %s33, %s21
    %p35 = scmp.lt.s32.totalorder %s34, 2
    %s36 = scalar_select %p35, %s34, 2
    %s37 = smul.u32 %s32, 3
    %s38 = sadd.s32 %s37, %s28
    %p39 = scmp.lt.s32.totalorder %s38, 2
    %s40 = scalar_select %p39, %s38, 2
    %s41 = ssub.s32 %s36, %s40
    %p42 = scmp.eq.s32.totalorder %s41, 0
    %s44 = sadd.s32 %s43, 1
    %s45 = scalar_select %p42, %s43, %s44
    %p48 = pneg %p42
    %p49 = scmp.eq.s32.totalorder %s13, 2
    %p50 = por %p48, %p49
    %p51 = scmp.ne.s32.totalorder %s43, %s46
    %p52 = scmp.eq.s32.totalorder %s13, 0
    %p53 = por %p51, %p52
    %p54 = scmp.ne.s32.totalorder %s43, %s46
    %p55 = scmp.eq.s32.totalorder %s18, 2
    %p56 = por %p54, %p55
    %p57 = scmp.ne.s32.totalorder %s46, %s47
    %p58 = scmp.eq.s32.totalorder %s18, 0
    %p59 = por %p57, %p58
    %p60 = scmp.ne.s32.totalorder %s46, %s47
    %p61 = scmp.eq.s32.totalorder %s19, 2
    %p62 = por %p60, %p61
    %p64 = scmp.ne.s32.totalorder %s47, %s63
    %p65 = scmp.eq.s32.totalorder %s19, 0
    %p66 = por %p64, %p65
    %s67 = smul.u32 %s20, 3
    %s68 = sadd.s32 %s67, %s21
    %p69 = scmp.lt.s32.totalorder %s68, 2
    %s70 = scalar_select %p69, %s68, 2
    %s71 = smul.u32 %s32, 3
    %s72 = sadd.s32 %s71, %s28
    %p73 = scmp.lt.s32.totalorder %s72, 2
    %s74 = scalar_select %p73, %s72, 2
    %s75 = ssub.s32 %s70, %s74
    %p76 = scmp.eq.s32.totalorder %s75, 0
    %s78 = sadd.s32 %s77, 1
    %s79 = scalar_select %p76, %s77, %s78
    %p82 = pneg %p76
    %p83 = scmp.eq.s32.totalorder %s13, 2
    %p84 = por %p82, %p83
    %p85 = scmp.ne.s32.totalorder %s77, %s80
    %p86 = scmp.eq.s32.totalorder %s13, 0
    %p87 = por %p85, %p86
    %p88 = scmp.ne.s32.totalorder %s77, %s80
    %p89 = scmp.eq.s32.totalorder %s18, 2
    %p90 = por %p88, %p89
    %p91 = scmp.ne.s32.totalorder %s80, %s81
    %p92 = scmp.eq.s32.totalorder %s18, 0
    %p93 = por %p91, %p92
    %p94 = scmp.ne.s32.totalorder %s80, %s81
    %p95 = scmp.eq.s32.totalorder %s19, 2
    %p96 = por %p94, %p95
    %p98 = scmp.ne.s32.totalorder %s81, %s97
    %p99 = scmp.eq.s32.totalorder %s19, 0
    %p100 = por %p98, %p99
    %s101 = smul.u32 %s20, 3
    %s102 = sadd.s32 %s101, %s21
    %p103 = scmp.lt.s32.totalorder %s102, 2
    %s104 = scalar_select %p103, %s102, 2
    %s105 = smul.u32 %s32, 3
    %s106 = sadd.s32 %s105, %s28
    %p107 = scmp.lt.s32.totalorder %s106, 2
    %s108 = scalar_select %p107, %s106, 2
    %s109 = ssub.s32 %s104, %s108
    %p110 = scmp.eq.s32.totalorder %s109, 0
    %s112 = sadd.s32 %s111, 1
    %s113 = scalar_select %p110, %s111, %s112
    %p116 = pneg %p110
    %p117 = scmp.eq.s32.totalorder %s13, 2
    %p118 = por %p116, %p117
    %p119 = scmp.ne.s32.totalorder %s111, %s114
    %p120 = scmp.eq.s32.totalorder %s13, 0
    %p121 = por %p119, %p120
    %p122 = scmp.ne.s32.totalorder %s111, %s114
    %p123 = scmp.eq.s32.totalorder %s18, 2
    %p124 = por %p122, %p123
    %p125 = scmp.ne.s32.totalorder %s114, %s115
    %p126 = scmp.eq.s32.totalorder %s18, 0
    %p127 = por %p125, %p126
    %p128 = scmp.ne.s32.totalorder %s114, %s115
    %p129 = scmp.eq.s32.totalorder %s19, 2
    %p130 = por %p128, %p129
    %p132 = scmp.ne.s32.totalorder %s115, %s131
    %p133 = scmp.eq.s32.totalorder %s19, 0
    %p134 = por %p132, %p133
    %s136 = sadd.s32 %s135, 1
    %p139 = scmp.eq.s32.totalorder %s13, 2
    %p140 = scmp.ne.s32.totalorder %s135, %s137
    %p141 = scmp.eq.s32.totalorder %s13, 0
    %p142 = por %p140, %p141
    %p143 = scmp.ne.s32.totalorder %s135, %s137
    %p144 = scmp.eq.s32.totalorder %s18, 2
    %p145 = por %p143, %p144
    %p146 = scmp.ne.s32.totalorder %s137, %s138
    %p147 = scmp.eq.s32.totalorder %s18, 0
    %p148 = por %p146, %p147
    %p149 = scmp.ne.s32.totalorder %s137, %s138
    %p150 = scmp.eq.s32.totalorder %s19, 2
    %p151 = por %p149, %p150
    %p153 = scmp.ne.s32.totalorder %s138, %s152
    %p154 = scmp.eq.s32.totalorder %s19, 0
    %p155 = por %p153, %p154
    %s157 = sadd.s32 %s156, 1
    %p160 = scmp.eq.s32.totalorder %s13, 2
    %p161 = scmp.ne.s32.totalorder %s156, %s158
    %p162 = scmp.eq.s32.totalorder %s13, 0
    %p163 = por %p161, %p162
    %p164 = scmp.ne.s32.totalorder %s156, %s158
    %p165 = scmp.eq.s32.totalorder %s18, 2
    %p166 = por %p164, %p165
    %p167 = scmp.ne.s32.totalorder %s158, %s159
    %p168 = scmp.eq.s32.totalorder %s18, 0
    %p169 = por %p167, %p168
    %p170 = scmp.ne.s32.totalorder %s158, %s159
    %p171 = scmp.eq.s32.totalorder %s19, 2
    %p172 = por %p170, %p171
    %p174 = scmp.ne.s32.totalorder %s159, %s173
    %p175 = scmp.eq.s32.totalorder %s19, 0
    %p176 = por %p174, %p175
    %s178 = sadd.s32 %s177, 1
    %p181 = scmp.eq.s32.totalorder %s13, 2
    %p182 = scmp.ne.s32.totalorder %s177, %s179
    %p183 = scmp.eq.s32.totalorder %s13, 0
    %p184 = por %p182, %p183
    %p185 = scmp.ne.s32.totalorder %s177, %s179
    %p186 = scmp.eq.s32.totalorder %s18, 2
    %p187 = por %p185, %p186
    %p188 = scmp.ne.s32.totalorder %s179, %s180
    %p189 = scmp.eq.s32.totalorder %s18, 0
    %p190 = por %p188, %p189
    %p191 = scmp.ne.s32.totalorder %s179, %s180
    %p192 = scmp.eq.s32.totalorder %s19, 2
    %p193 = por %p191, %p192
    %p195 = scmp.ne.s32.totalorder %s180, %s194
    %p196 = scmp.eq.s32.totalorder %s19, 0
    %p197 = por %p195, %p196
    %s199 = sadd.s32 %s198, 1
    %p202 = scmp.eq.s32.totalorder %s13, 2
    %p203 = scmp.ne.s32.totalorder %s198, %s200
    %p204 = scmp.eq.s32.totalorder %s13, 0
    %p205 = por %p203, %p204
    %p206 = scmp.ne.s32.totalorder %s198, %s200
    %p207 = scmp.eq.s32.totalorder %s18, 2
    %p208 = por %p206, %p207
    %p209 = scmp.ne.s32.totalorder %s200, %s201
    %p210 = scmp.eq.s32.totalorder %s18, 0
    %p211 = por %p209, %p210
    %p212 = scmp.ne.s32.totalorder %s200, %s201
    %p213 = scmp.eq.s32.totalorder %s19, 2
    %p214 = por %p212, %p213
    %p216 = scmp.ne.s32.totalorder %s201, %s215
    %p217 = scmp.eq.s32.totalorder %s19, 0
    %p218 = por %p216, %p217
    %s219 = ssub.s32 %s20, %s32
    %p220 = scmp.eq.s32.totalorder %s219, 0
    %s222 = sadd.s32 %s221, 1
    %s223 = scalar_select %p220, %s221, %s222
    %p226 = pneg %p220
    %p227 = scmp.eq.s32.totalorder %s13, 2
    %p228 = por %p226, %p227
    %p229 = scmp.ne.s32.totalorder %s221, %s224
    %p230 = scmp.eq.s32.totalorder %s13, 0
    %p231 = por %p229, %p230
    %p232 = scmp.ne.s32.totalorder %s221, %s224
    %p233 = scmp.eq.s32.totalorder %s18, 2
    %p234 = por %p232, %p233
    %p235 = scmp.ne.s32.totalorder %s224, %s225
    %p236 = scmp.eq.s32.totalorder %s18, 0
    %p237 = por %p235, %p236
    %p238 = scmp.ne.s32.totalorder %s224, %s225
    %p239 = scmp.eq.s32.totalorder %s19, 2
    %p240 = por %p238, %p239
    %p242 = scmp.ne.s32.totalorder %s225, %s241
    %p243 = scmp.eq.s32.totalorder %s19, 0
    %p244 = por %p242, %p243
    %p245 = scmp.le.s32.totalorder 1, %s13
    %p246 = scmp.lt.s32.totalorder %s13, 4
    %p247 = pnand %p245, %p246
    %p248 = pneg %p247
    // Predicated region
    $region9: #{mine_objective.1} parent=5 // pred_check
      _
    $region10: #{mine_objective.1} parent=5 // pred_check_branch
      %250 = sbr.rel (%p247) target = $region12
    $region11: #{mine_objective.1} parent=5 // pred_region
      %s251 = ssub.s32 %s13, 1
      // Predicated region
      $region13: #{mine_objective.1} parent=11 // pred_check
        %p252 = pneg %p148
      $region14: #{mine_objective.1} parent=11 // pred_check_branch
        %254 = sbr.rel (%p252) target = $region16
      $region15: #{mine_objective.1} parent=11 // pred_region
        _
      $region16: #{mine_objective.1} parent=11 // pred_fallthru
        _
      // Predicated region
      $region17: #{mine_objective.1} parent=11 // pred_check
        %p255 = pneg %p169
      $region18: #{mine_objective.1} parent=11 // pred_check_branch
        %257 = sbr.rel (%p255) target = $region20
      $region19: #{mine_objective.1} parent=11 // pred_region
        _
      $region20: #{mine_objective.1} parent=11 // pred_fallthru
        _
      // Predicated region
      $region21: #{mine_objective.1} parent=11 // pred_check
        %p258 = pneg %p190
      $region22: #{mine_objective.1} parent=11 // pred_check_branch
        %260 = sbr.rel (%p258) target = $region24
      $region23: #{mine_objective.1} parent=11 // pred_region
        _
      $region24: #{mine_objective.1} parent=11 // pred_fallthru
        _
      // Predicated region
      $region25: #{mine_objective.1} parent=11 // pred_check
        %p261 = pneg %p211
      $region26: #{mine_objective.1} parent=11 // pred_check_branch
        %263 = sbr.rel (%p261) target = $region28
      $region27: #{mine_objective.1} parent=11 // pred_region
        _
      $region28: #{mine_objective.1} parent=11 // pred_fallthru
        _
    $region12: #{mine_objective.1} parent=5 // pred_fallthru
      _
    %p264 = scmp.lt.s32.totalorder %s13, 3
    // Predicated region
    $region29: #{mine_objective.1} parent=5 // pred_check
      %p265 = pneg %p264
    $region30: #{mine_objective.1} parent=5 // pred_check_branch
      %267 = sbr.rel (%p265) target = $region32
    $region31: #{mine_objective.1} parent=5 // pred_region
      // Predicated region
      $region33: #{mine_objective.1} parent=31 // pred_check
        %p268 = pneg %p53
      $region34: #{mine_objective.1} parent=31 // pred_check_branch
        %270 = sbr.rel (%p268) target = $region36
      $region35: #{mine_objective.1} parent=31 // pred_region
        %s271 = smul.u32 %s20, 3
        %s272 = sadd.s32 %s271, %s21
        %p273 = scmp.lt.s32.totalorder %s272, 2
        %s274 = scalar_select %p273, %s272, 2
        %s275 = smul.u32 64, %s274
        %s276 = ssub.s32 163, %s275
        %p277 = scmp.lt.s32.totalorder %s276, 64
        %s278 = scalar_select %p277, %s276, 64
        %s279 = smul.u32 4, %s278
        %p280 = scmp.lt.s32.totalorder %s275, 162
        %s281 = scalar_select %p280, %s275, 162
        %s282 = smul.addr %s281, 4
        %s283 = scalar_lea.vmem %s0, %s282
        %s284 = smul.u32 %s20, 3
        %s285 = sadd.s32 %s284, %s21
        %p286 = scmp.lt.s32.totalorder %s285, 2
        %s287 = scalar_select %p286, %s285, 2
        %s288 = smul.u32 64, %s287
        %s289 = ssub.s32 163, %s288
        %p290 = scmp.lt.s32.totalorder %s289, 64
        %s291 = scalar_select %p290, %s289, 64
        %s292 = smul.u32 4, %s291
      $region36: #{mine_objective.1} parent=31 // pred_fallthru
        _
      // Predicated region
      $region37: #{mine_objective.1} parent=31 // pred_check
        %p293 = pneg %p87
      $region38: #{mine_objective.1} parent=31 // pred_check_branch
        %295 = sbr.rel (%p293) target = $region40
      $region39: #{mine_objective.1} parent=31 // pred_region
        %s296 = smul.u32 %s20, 3
        %s297 = sadd.s32 %s296, %s21
        %p298 = scmp.lt.s32.totalorder %s297, 2
        %s299 = scalar_select %p298, %s297, 2
        %s300 = smul.u32 64, %s299
        %s301 = ssub.s32 163, %s300
        %p302 = scmp.lt.s32.totalorder %s301, 64
        %s303 = scalar_select %p302, %s301, 64
        %s304 = smul.u32 4, %s303
        %p305 = scmp.lt.s32.totalorder %s300, 162
        %s306 = scalar_select %p305, %s300, 162
        %s307 = smul.addr %s306, 4
        %s308 = scalar_lea.vmem %s1, %s307
        %s309 = smul.u32 %s20, 3
        %s310 = sadd.s32 %s309, %s21
        %p311 = scmp.lt.s32.totalorder %s310, 2
        %s312 = scalar_select %p311, %s310, 2
        %s313 = smul.u32 64, %s312
        %s314 = ssub.s32 163, %s313
        %p315 = scmp.lt.s32.totalorder %s314, 64
        %s316 = scalar_select %p315, %s314, 64
        %s317 = smul.u32 4, %s316
      $region40: #{mine_objective.1} parent=31 // pred_fallthru
        _
      // Predicated region
      $region41: #{mine_objective.1} parent=31 // pred_check
        %p318 = pneg %p121
      $region42: #{mine_objective.1} parent=31 // pred_check_branch
        %320 = sbr.rel (%p318) target = $region44
      $region43: #{mine_objective.1} parent=31 // pred_region
        %s321 = smul.u32 %s20, 3
        %s322 = sadd.s32 %s321, %s21
        %p323 = scmp.lt.s32.totalorder %s322, 2
        %s324 = scalar_select %p323, %s322, 2
        %s325 = smul.u32 64, %s324
        %s326 = ssub.s32 163, %s325
        %p327 = scmp.lt.s32.totalorder %s326, 64
        %s328 = scalar_select %p327, %s326, 64
        %s329 = smul.u32 4, %s328
        %p330 = scmp.lt.s32.totalorder %s325, 162
        %s331 = scalar_select %p330, %s325, 162
        %s332 = smul.addr %s331, 4
        %s333 = scalar_lea.vmem %s2, %s332
        %s334 = smul.u32 %s20, 3
        %s335 = sadd.s32 %s334, %s21
        %p336 = scmp.lt.s32.totalorder %s335, 2
        %s337 = scalar_select %p336, %s335, 2
        %s338 = smul.u32 64, %s337
        %s339 = ssub.s32 163, %s338
        %p340 = scmp.lt.s32.totalorder %s339, 64
        %s341 = scalar_select %p340, %s339, 64
        %s342 = smul.u32 4, %s341
      $region44: #{mine_objective.1} parent=31 // pred_fallthru
        _
    $region32: #{mine_objective.1} parent=5 // pred_fallthru
      _
    %p343 = scmp.le.s32.totalorder 1, %s13
    %p344 = scmp.lt.s32.totalorder %s13, 4
    %p345 = pnand %p343, %p344
    %p346 = pneg %p345
    // Predicated region
    $region45: #{mine_objective.1} parent=5 // pred_check
      _
    $region46: #{mine_objective.1} parent=5 // pred_check_branch
      %348 = sbr.rel (%p345) target = $region48
    $region47: #{mine_objective.1} parent=5 // pred_region
      %s349 = ssub.s32 %s13, 1
      %s350 = smul.u32 %s22, 3
      %s351 = sadd.s32 %s350, %s23
      %p352 = scmp.lt.s32.totalorder %s351, 2
      %s353 = scalar_select %p352, %s351, 2
      %s354 = smul.u32 64, %s353
      %s355 = ssub.s32 163, %s354
      %p356 = scmp.lt.s32.totalorder %s355, 64
      %s357 = scalar_select %p356, %s355, 64
      %s358 = smul.u32 4, %s357
      %p359 = scmp.lt.s32.totalorder %s354, 162
      %s360 = scalar_select %p359, %s354, 162
      %s361 = smul.addr %s360, 4
      %s362 = scalar_lea.vmem %s0, %s361
      %p363 = pneg %p59
      %p364 = pneg %p56
      %s365 = smul.u32 %s22, 3
      %s366 = sadd.s32 %s365, %s23
      %p367 = scmp.lt.s32.totalorder %s366, 2
      %s368 = scalar_select %p367, %s366, 2
      %s369 = smul.u32 64, %s368
      %s370 = ssub.s32 163, %s369
      %p371 = scmp.lt.s32.totalorder %s370, 64
      %s372 = scalar_select %p371, %s370, 64
      %s373 = smul.u32 4, %s372
      %p374 = scmp.lt.s32.totalorder %s369, 162
      %s375 = scalar_select %p374, %s369, 162
      %s376 = smul.addr %s375, 4
      %s377 = scalar_lea.vmem %s1, %s376
      %p378 = pneg %p93
      %p379 = pneg %p90
      %s380 = smul.u32 %s22, 3
      %s381 = sadd.s32 %s380, %s23
      %p382 = scmp.lt.s32.totalorder %s381, 2
      %s383 = scalar_select %p382, %s381, 2
      %s384 = smul.u32 64, %s383
      %s385 = ssub.s32 163, %s384
      %p386 = scmp.lt.s32.totalorder %s385, 64
      %s387 = scalar_select %p386, %s385, 64
      %s388 = smul.u32 4, %s387
      %p389 = scmp.lt.s32.totalorder %s384, 162
      %s390 = scalar_select %p389, %s384, 162
      %s391 = smul.addr %s390, 4
      %s392 = scalar_lea.vmem %s2, %s391
      %p393 = pneg %p127
      %p394 = pneg %p124
      %p395 = pneg %p148
      %p396 = pneg %p145
      %p397 = pneg %p169
      %p398 = pneg %p166
      %p399 = pneg %p190
      %p400 = pneg %p187
      %p401 = pneg %p211
      %p402 = pneg %p208
      %p403 = pneg %p237
      %p404 = pneg %p234
      %p405 = scmp.lt.s32.totalorder %s22, 0
      %s406 = scalar_select %p405, %s22, 0
      %s407 = smul.addr %s406, 8
      %s408 = scalar_lea.vmem %s7, %s407
      %s409 = smul.u32 %s22, 3
      %s410 = sadd.s32 %s409, %s23
      %p411 = scmp.lt.s32.totalorder %s410, 2
      %s412 = scalar_select %p411, %s410, 2
      %s413 = smul.u32 64, %s412
      %s414 = ssub.s32 163, %s413
      %p415 = scmp.lt.s32.totalorder %s414, 64
      %s416 = scalar_select %p415, %s414, 64
      %s417 = smul.u32 4, %s416
      %p418 = scmp.lt.s32.totalorder %s413, 162
      %s419 = scalar_select %p418, %s413, 162
      %s420 = smul.addr %s419, 4
      %s421 = scalar_lea.vmem %s0, %s420
      %s422 = smul.u32 %s22, 3
      %s423 = sadd.s32 %s422, %s23
      %p424 = scmp.lt.s32.totalorder %s423, 2
      %s425 = scalar_select %p424, %s423, 2
      %s426 = smul.u32 64, %s425
      %s427 = ssub.s32 163, %s426
      %p428 = scmp.lt.s32.totalorder %s427, 64
      %s429 = scalar_select %p428, %s427, 64
      %s430 = smul.u32 4, %s429
      %s431 = smul.u32 %s22, 3
      %s432 = sadd.s32 %s431, %s23
      %p433 = scmp.lt.s32.totalorder %s432, 2
      %s434 = scalar_select %p433, %s432, 2
      %s435 = smul.u32 64, %s434
      %s436 = ssub.s32 163, %s435
      %p437 = scmp.lt.s32.totalorder %s436, 64
      %s438 = scalar_select %p437, %s436, 64
      %s439 = smul.u32 4, %s438
      %p440 = scmp.lt.s32.totalorder %s435, 162
      %s441 = scalar_select %p440, %s435, 162
      %s442 = smul.addr %s441, 4
      %s443 = scalar_lea.vmem %s1, %s442
      %s444 = smul.u32 %s22, 3
      %s445 = sadd.s32 %s444, %s23
      %p446 = scmp.lt.s32.totalorder %s445, 2
      %s447 = scalar_select %p446, %s445, 2
      %s448 = smul.u32 64, %s447
      %s449 = ssub.s32 163, %s448
      %p450 = scmp.lt.s32.totalorder %s449, 64
      %s451 = scalar_select %p450, %s449, 64
      %s452 = smul.u32 4, %s451
      %s453 = smul.u32 %s22, 3
      %s454 = sadd.s32 %s453, %s23
      %p455 = scmp.lt.s32.totalorder %s454, 2
      %s456 = scalar_select %p455, %s454, 2
      %s457 = smul.u32 64, %s456
      %s458 = ssub.s32 163, %s457
      %p459 = scmp.lt.s32.totalorder %s458, 64
      %s460 = scalar_select %p459, %s458, 64
      %s461 = smul.u32 4, %s460
      %p462 = scmp.lt.s32.totalorder %s457, 162
      %s463 = scalar_select %p462, %s457, 162
      %s464 = smul.addr %s463, 4
      %s465 = scalar_lea.vmem %s2, %s464
      %s466 = smul.u32 %s22, 3
      %s467 = sadd.s32 %s466, %s23
      %p468 = scmp.lt.s32.totalorder %s467, 2
      %s469 = scalar_select %p468, %s467, 2
      %s470 = smul.u32 64, %s469
      %s471 = ssub.s32 163, %s470
      %p472 = scmp.lt.s32.totalorder %s471, 64
      %s473 = scalar_select %p472, %s471, 64
      %s474 = smul.u32 4, %s473
      %p475 = scmp.lt.s32.totalorder %s22, 0
      %s476 = scalar_select %p475, %s22, 0
      %s477 = smul.addr %s476, 8
      %s478 = scalar_lea.vmem %s7, %s477
      %p480 = scmp.eq.s32.totalorder %s23, 0
      // Predicated region
      $region49: #{mine_objective.1} parent=47 // pred_check
        %p481 = pneg %p480
      $region50: #{mine_objective.1} parent=47 // pred_check_branch
        %483 = sbr.rel (%p481) target = $region52
      $region51: #{mine_objective.1} parent=47 // pred_region
        %484 = vst [vmem:[#allocation2] sm:$0x1] 0.0
        %vm485 = vcmask 0
        %486 = vst.msk [vmem:[#allocation3] sm:$0x1] %vm485, -1e+30
        %487 = vst.msk [vmem:[#allocation4] sm:$0x1] %vm485, 0.0
        %488 = vst [vmem:[%s478] sm:$0xff] 0.0
      $region52: #{mine_objective.1} parent=47 // pred_fallthru
        _
      %s489 = smul.u32 %s22, 3
      %s490 = sadd.s32 %s489, %s23
      %s491 = smul.u32 %s490, 512
      %p492 = scmp.lt.s32.totalorder %s491, 1300
      // Predicated region
      $region53: #{mine_objective.1} parent=47 // pred_check
        %p493 = pneg %p492
      $region54: #{mine_objective.1} parent=47 // pred_check_branch
        %495 = sbr.rel (%p493) target = $region56
      $region55: #{mine_objective.1} parent=47 // pred_region
        %v496 = vld [vmem:[%s421] sm:$0xf]
        %v497 = vld [vmem:[%s421 + $0x4] sm:$0xf]
        %v498 = vld [vmem:[%s421 + $0x8] sm:$0xf]
        %v499 = vld [vmem:[%s421 + $0xc] sm:$0xf]
        %v500 = vld [vmem:[%s421 + $0x10] sm:$0xf]
        %v501 = vld [vmem:[%s421 + $0x14] sm:$0xf]
        %v502 = vld [vmem:[%s421 + $0x18] sm:$0xf]
        %v503 = vld [vmem:[%s421 + $0x1c] sm:$0xf]
        %v504 = vld [vmem:[%s421 + $0x20] sm:$0xf]
        %v505 = vld [vmem:[%s421 + $0x24] sm:$0xf]
        %v506 = vld [vmem:[%s421 + $0x28] sm:$0xf]
        %v507 = vld [vmem:[%s421 + $0x2c] sm:$0xf]
        %v508 = vld [vmem:[%s421 + $0x30] sm:$0xf]
        %v509 = vld [vmem:[%s421 + $0x34] sm:$0xf]
        %v510 = vld [vmem:[%s421 + $0x38] sm:$0xf]
        %v511 = vld [vmem:[%s421 + $0x3c] sm:$0xf]
        %v512 = vld [vmem:[%s421 + $0x40] sm:$0xf]
        %v513 = vld [vmem:[%s421 + $0x44] sm:$0xf]
        %v514 = vld [vmem:[%s421 + $0x48] sm:$0xf]
        %v515 = vld [vmem:[%s421 + $0x4c] sm:$0xf]
        %v516 = vld [vmem:[%s421 + $0x50] sm:$0xf]
        %v517 = vld [vmem:[%s421 + $0x54] sm:$0xf]
        %v518 = vld [vmem:[%s421 + $0x58] sm:$0xf]
        %v519 = vld [vmem:[%s421 + $0x5c] sm:$0xf]
        %v520 = vld [vmem:[%s421 + $0x60] sm:$0xf]
        %v521 = vld [vmem:[%s421 + $0x64] sm:$0xf]
        %v522 = vld [vmem:[%s421 + $0x68] sm:$0xf]
        %v523 = vld [vmem:[%s421 + $0x6c] sm:$0xf]
        %v524 = vld [vmem:[%s421 + $0x70] sm:$0xf]
        %v525 = vld [vmem:[%s421 + $0x74] sm:$0xf]
        %v526 = vld [vmem:[%s421 + $0x78] sm:$0xf]
        %v527 = vld [vmem:[%s421 + $0x7c] sm:$0xf]
        %v528 = vld [vmem:[%s421 + $0x80] sm:$0xf]
        %v529 = vld [vmem:[%s421 + $0x84] sm:$0xf]
        %v530 = vld [vmem:[%s421 + $0x88] sm:$0xf]
        %v531 = vld [vmem:[%s421 + $0x8c] sm:$0xf]
        %v532 = vld [vmem:[%s421 + $0x90] sm:$0xf]
        %v533 = vld [vmem:[%s421 + $0x94] sm:$0xf]
        %v534 = vld [vmem:[%s421 + $0x98] sm:$0xf]
        %v535 = vld [vmem:[%s421 + $0x9c] sm:$0xf]
        %v536 = vld [vmem:[%s421 + $0xa0] sm:$0xf]
        %v537 = vld [vmem:[%s421 + $0xa4] sm:$0xf]
        %v538 = vld [vmem:[%s421 + $0xa8] sm:$0xf]
        %v539 = vld [vmem:[%s421 + $0xac] sm:$0xf]
        %v540 = vld [vmem:[%s421 + $0xb0] sm:$0xf]
        %v541 = vld [vmem:[%s421 + $0xb4] sm:$0xf]
        %v542 = vld [vmem:[%s421 + $0xb8] sm:$0xf]
        %v543 = vld [vmem:[%s421 + $0xbc] sm:$0xf]
        %v544 = vld [vmem:[%s421 + $0xc0] sm:$0xf]
        %v545 = vld [vmem:[%s421 + $0xc4] sm:$0xf]
        %v546 = vld [vmem:[%s421 + $0xc8] sm:$0xf]
        %v547 = vld [vmem:[%s421 + $0xcc] sm:$0xf]
        %v548 = vld [vmem:[%s421 + $0xd0] sm:$0xf]
        %v549 = vld [vmem:[%s421 + $0xd4] sm:$0xf]
        %v550 = vld [vmem:[%s421 + $0xd8] sm:$0xf]
        %v551 = vld [vmem:[%s421 + $0xdc] sm:$0xf]
        %v552 = vld [vmem:[%s421 + $0xe0] sm:$0xf]
        %v553 = vld [vmem:[%s421 + $0xe4] sm:$0xf]
        %v554 = vld [vmem:[%s421 + $0xe8] sm:$0xf]
        %v555 = vld [vmem:[%s421 + $0xec] sm:$0xf]
        %v556 = vld [vmem:[%s421 + $0xf0] sm:$0xf]
        %v557 = vld [vmem:[%s421 + $0xf4] sm:$0xf]
        %v558 = vld [vmem:[%s421 + $0xf8] sm:$0xf]
        %v559 = vld [vmem:[%s421 + $0xfc] sm:$0xf]
        %v560 = vld [vmem:[%s3] sm:$0xf]
        %v561 = vld [vmem:[%s3 + $0x4] sm:$0xf]
        %v562 = vld [vmem:[%s3 + $0x8] sm:$0xf]
        %v563 = vld [vmem:[%s3 + $0xc] sm:$0xf]
        %v564 = vld [vmem:[%s3 + $0x10] sm:$0xf]
        %v565 = vld [vmem:[%s3 + $0x14] sm:$0xf]
        %v566 = vld [vmem:[%s3 + $0x18] sm:$0xf]
        %v567 = vld [vmem:[%s3 + $0x1c] sm:$0xf]
        %v632 = vunpack.c.l.b16 %v496
        %v633 = vunpack.c.l.b16 %v497
        %v634 = vunpack.c.l.b16 %v498
        %v635 = vunpack.c.l.b16 %v499
        %v636 = vunpack.c.l.b16 %v500
        %v637 = vunpack.c.l.b16 %v501
        %v638 = vunpack.c.l.b16 %v502
        %v639 = vunpack.c.l.b16 %v503
        %v640 = vunpack.c.l.b16 %v504
        %v641 = vunpack.c.l.b16 %v505
        %v642 = vunpack.c.l.b16 %v506
        %v643 = vunpack.c.l.b16 %v507
        %v644 = vunpack.c.l.b16 %v508
        %v645 = vunpack.c.l.b16 %v509
        %v646 = vunpack.c.l.b16 %v510
        %v647 = vunpack.c.l.b16 %v511
        %v648 = vunpack.c.l.b16 %v512
        %v649 = vunpack.c.l.b16 %v513
        %v650 = vunpack.c.l.b16 %v514
        %v651 = vunpack.c.l.b16 %v515
        %v652 = vunpack.c.l.b16 %v516
        %v653 = vunpack.c.l.b16 %v517
        %v654 = vunpack.c.l.b16 %v518
        %v655 = vunpack.c.l.b16 %v519
        %v656 = vunpack.c.l.b16 %v520
        %v657 = vunpack.c.l.b16 %v521
        %v658 = vunpack.c.l.b16 %v522
        %v659 = vunpack.c.l.b16 %v523
        %v660 = vunpack.c.l.b16 %v524
        %v661 = vunpack.c.l.b16 %v525
        %v662 = vunpack.c.l.b16 %v526
        %v663 = vunpack.c.l.b16 %v527
        %v664 = vunpack.c.l.b16 %v528
        %v665 = vunpack.c.l.b16 %v529
        %v666 = vunpack.c.l.b16 %v530
        %v667 = vunpack.c.l.b16 %v531
        %v668 = vunpack.c.l.b16 %v532
        %v669 = vunpack.c.l.b16 %v533
        %v670 = vunpack.c.l.b16 %v534
        %v671 = vunpack.c.l.b16 %v535
        %v672 = vunpack.c.l.b16 %v536
        %v673 = vunpack.c.l.b16 %v537
        %v674 = vunpack.c.l.b16 %v538
        %v675 = vunpack.c.l.b16 %v539
        %v676 = vunpack.c.l.b16 %v540
        %v677 = vunpack.c.l.b16 %v541
        %v678 = vunpack.c.l.b16 %v542
        %v679 = vunpack.c.l.b16 %v543
        %v680 = vunpack.c.l.b16 %v544
        %v681 = vunpack.c.l.b16 %v545
        %v682 = vunpack.c.l.b16 %v546
        %v683 = vunpack.c.l.b16 %v547
        %v684 = vunpack.c.l.b16 %v548
        %v685 = vunpack.c.l.b16 %v549
        %v686 = vunpack.c.l.b16 %v550
        %v687 = vunpack.c.l.b16 %v551
        %v688 = vunpack.c.l.b16 %v552
        %v689 = vunpack.c.l.b16 %v553
        %v690 = vunpack.c.l.b16 %v554
        %v691 = vunpack.c.l.b16 %v555
        %v692 = vunpack.c.l.b16 %v556
        %v693 = vunpack.c.l.b16 %v557
        %v694 = vunpack.c.l.b16 %v558
        %v695 = vunpack.c.l.b16 %v559
        %v696 = vpack.c.b16 %v633, %v632
        %v697 = vpack.c.b16 %v635, %v634
        %v698 = vpack.c.b16 %v637, %v636
        %v699 = vpack.c.b16 %v639, %v638
        %v700 = vpack.c.b16 %v641, %v640
        %v701 = vpack.c.b16 %v643, %v642
        %v702 = vpack.c.b16 %v645, %v644
        %v703 = vpack.c.b16 %v647, %v646
        %v704 = vpack.c.b16 %v649, %v648
        %v705 = vpack.c.b16 %v651, %v650
        %v706 = vpack.c.b16 %v653, %v652
        %v707 = vpack.c.b16 %v655, %v654
        %v708 = vpack.c.b16 %v657, %v656
        %v709 = vpack.c.b16 %v659, %v658
        %v710 = vpack.c.b16 %v661, %v660
        %v711 = vpack.c.b16 %v663, %v662
        %v712 = vpack.c.b16 %v665, %v664
        %v713 = vpack.c.b16 %v667, %v666
        %v714 = vpack.c.b16 %v669, %v668
        %v715 = vpack.c.b16 %v671, %v670
        %v716 = vpack.c.b16 %v673, %v672
        %v717 = vpack.c.b16 %v675, %v674
        %v718 = vpack.c.b16 %v677, %v676
        %v719 = vpack.c.b16 %v679, %v678
        %v720 = vpack.c.b16 %v681, %v680
        %v721 = vpack.c.b16 %v683, %v682
        %v722 = vpack.c.b16 %v685, %v684
        %v723 = vpack.c.b16 %v687, %v686
        %v724 = vpack.c.b16 %v689, %v688
        %v725 = vpack.c.b16 %v691, %v690
        %v726 = vpack.c.b16 %v693, %v692
        %v727 = vpack.c.b16 %v695, %v694
        %v736 = vunpack.c.l.b16 %v560
        %v737 = vunpack.c.l.b16 %v561
        %v738 = vunpack.c.l.b16 %v562
        %v739 = vunpack.c.l.b16 %v563
        %v740 = vunpack.c.l.b16 %v564
        %v741 = vunpack.c.l.b16 %v565
        %v742 = vunpack.c.l.b16 %v566
        %v743 = vunpack.c.l.b16 %v567
        %v744 = vpack.c.b16 %v737, %v736
        %v745 = vpack.c.b16 %v739, %v738
        %v746 = vpack.c.b16 %v741, %v740
        %v747 = vpack.c.b16 %v743, %v742
        %vm752 = vcmask 523264
        %v754 = vsel %vm752, %v696, 0
        %v757 = vsel %vm752, %v697, 0
        %v760 = vsel %vm752, %v698, 0
        %v763 = vsel %vm752, %v699, 0
        %v766 = vsel %vm752, %v700, 0
        %v769 = vsel %vm752, %v701, 0
        %v772 = vsel %vm752, %v702, 0
        %v775 = vsel %vm752, %v703, 0
        %v778 = vsel %vm752, %v704, 0
        %v781 = vsel %vm752, %v705, 0
        %v784 = vsel %vm752, %v706, 0
        %v787 = vsel %vm752, %v707, 0
        %v790 = vsel %vm752, %v708, 0
        %v793 = vsel %vm752, %v709, 0
        %v796 = vsel %vm752, %v710, 0
        %v799 = vsel %vm752, %v711, 0
        %v802 = vsel %vm752, %v712, 0
        %v805 = vsel %vm752, %v713, 0
        %v808 = vsel %vm752, %v714, 0
        %v811 = vsel %vm752, %v715, 0
        %v814 = vsel %vm752, %v716, 0
        %v817 = vsel %vm752, %v717, 0
        %v820 = vsel %vm752, %v718, 0
        %v823 = vsel %vm752, %v719, 0
        %v826 = vsel %vm752, %v720, 0
        %v829 = vsel %vm752, %v721, 0
        %v832 = vsel %vm752, %v722, 0
        %v835 = vsel %vm752, %v723, 0
        %v838 = vsel %vm752, %v724, 0
        %v841 = vsel %vm752, %v725, 0
        %v844 = vsel %vm752, %v726, 0
        %v847 = vsel %vm752, %v727, 0
        %849 = vmatpush.bf16.msra.mxu0 0
        %850 = vmatpush.bf16.msra.mxu0 0
        %851 = vmatpush.bf16.msra.mxu0 0
        %852 = vmatpush.bf16.msra.mxu0 0
        %853 = vmatpush.bf16.msra.mxu0 %v747
        %854 = vmatpush.bf16.msra.mxu0 %v746
        %855 = vmatpush.bf16.msra.mxu0 %v745
        %856 = vmatpush.bf16.msra.mxu0 %v744
        %857 = vmatmul.bf16.gmra.mxu0 %v754
        %v858 = vpop.f32.mrf.mxu0
        %v859 = vadd.f32 0.0, %v858
        %v860 = vpop.f32.mrf.mxu0
        %v861 = vadd.f32 0.0, %v860
        %862 = vmatmul.bf16.gmra.mxu0 %v757
        %v863 = vpop.f32.mrf.mxu0
        %v864 = vadd.f32 0.0, %v863
        %v865 = vpop.f32.mrf.mxu0
        %v866 = vadd.f32 0.0, %v865
        %867 = vmatmul.bf16.gmra.mxu0 %v760
        %v868 = vpop.f32.mrf.mxu0
        %v869 = vadd.f32 0.0, %v868
        %v870 = vpop.f32.mrf.mxu0
        %v871 = vadd.f32 0.0, %v870
        %872 = vmatmul.bf16.gmra.mxu0 %v763
        %v873 = vpop.f32.mrf.mxu0
        %v874 = vadd.f32 0.0, %v873
        %v875 = vpop.f32.mrf.mxu0
        %v876 = vadd.f32 0.0, %v875
        %877 = vmatmul.bf16.gmra.mxu0 %v766
        %v878 = vpop.f32.mrf.mxu0
        %v879 = vadd.f32 0.0, %v878
        %v880 = vpop.f32.mrf.mxu0
        %v881 = vadd.f32 0.0, %v880
        %882 = vmatmul.bf16.gmra.mxu0 %v769
        %v883 = vpop.f32.mrf.mxu0
        %v884 = vadd.f32 0.0, %v883
        %v885 = vpop.f32.mrf.mxu0
        %v886 = vadd.f32 0.0, %v885
        %887 = vmatmul.bf16.gmra.mxu0 %v772
        %v888 = vpop.f32.mrf.mxu0
        %v889 = vadd.f32 0.0, %v888
        %v890 = vpop.f32.mrf.mxu0
        %v891 = vadd.f32 0.0, %v890
        %892 = vmatmul.bf16.gmra.mxu0 %v775
        %v893 = vpop.f32.mrf.mxu0
        %v894 = vadd.f32 0.0, %v893
        %v895 = vpop.f32.mrf.mxu0
        %v896 = vadd.f32 0.0, %v895
        %897 = vmatmul.bf16.gmra.mxu0 %v778
        %v898 = vpop.f32.mrf.mxu0
        %v899 = vadd.f32 0.0, %v898
        %v900 = vpop.f32.mrf.mxu0
        %v901 = vadd.f32 0.0, %v900
        %902 = vmatmul.bf16.gmra.mxu0 %v781
        %v903 = vpop.f32.mrf.mxu0
        %v904 = vadd.f32 0.0, %v903
        %v905 = vpop.f32.mrf.mxu0
        %v906 = vadd.f32 0.0, %v905
        %907 = vmatmul.bf16.gmra.mxu0 %v784
        %v908 = vpop.f32.mrf.mxu0
        %v909 = vadd.f32 0.0, %v908
        %v910 = vpop.f32.mrf.mxu0
        %v911 = vadd.f32 0.0, %v910
        %912 = vmatmul.bf16.gmra.mxu0 %v787
        %v913 = vpop.f32.mrf.mxu0
        %v914 = vadd.f32 0.0, %v913
        %v915 = vpop.f32.mrf.mxu0
        %v916 = vadd.f32 0.0, %v915
        %917 = vmatmul.bf16.gmra.mxu0 %v790
        %v918 = vpop.f32.mrf.mxu0
        %v919 = vadd.f32 0.0, %v918
        %v920 = vpop.f32.mrf.mxu0
        %v921 = vadd.f32 0.0, %v920
        %922 = vmatmul.bf16.gmra.mxu0 %v793
        %v923 = vpop.f32.mrf.mxu0
        %v924 = vadd.f32 0.0, %v923
        %v925 = vpop.f32.mrf.mxu0
        %v926 = vadd.f32 0.0, %v925
        %927 = vmatmul.bf16.gmra.mxu0 %v796
        %v928 = vpop.f32.mrf.mxu0
        %v929 = vadd.f32 0.0, %v928
        %v930 = vpop.f32.mrf.mxu0
        %v931 = vadd.f32 0.0, %v930
        %932 = vmatmul.bf16.gmra.mxu0 %v799
        %v933 = vpop.f32.mrf.mxu0
        %v934 = vadd.f32 0.0, %v933
        %v935 = vpop.f32.mrf.mxu0
        %v936 = vadd.f32 0.0, %v935
        %937 = vmatmul.bf16.gmra.mxu0 %v802
        %v938 = vpop.f32.mrf.mxu0
        %v939 = vadd.f32 0.0, %v938
        %v940 = vpop.f32.mrf.mxu0
        %v941 = vadd.f32 0.0, %v940
        %942 = vmatmul.bf16.gmra.mxu0 %v805
        %v943 = vpop.f32.mrf.mxu0
        %v944 = vadd.f32 0.0, %v943
        %v945 = vpop.f32.mrf.mxu0
        %v946 = vadd.f32 0.0, %v945
        %947 = vmatmul.bf16.gmra.mxu0 %v808
        %v948 = vpop.f32.mrf.mxu0
        %v949 = vadd.f32 0.0, %v948
        %v950 = vpop.f32.mrf.mxu0
        %v951 = vadd.f32 0.0, %v950
        %952 = vmatmul.bf16.gmra.mxu0 %v811
        %v953 = vpop.f32.mrf.mxu0
        %v954 = vadd.f32 0.0, %v953
        %v955 = vpop.f32.mrf.mxu0
        %v956 = vadd.f32 0.0, %v955
        %957 = vmatmul.bf16.gmra.mxu0 %v814
        %v958 = vpop.f32.mrf.mxu0
        %v959 = vadd.f32 0.0, %v958
        %v960 = vpop.f32.mrf.mxu0
        %v961 = vadd.f32 0.0, %v960
        %962 = vmatmul.bf16.gmra.mxu0 %v817
        %v963 = vpop.f32.mrf.mxu0
        %v964 = vadd.f32 0.0, %v963
        %v965 = vpop.f32.mrf.mxu0
        %v966 = vadd.f32 0.0, %v965
        %967 = vmatmul.bf16.gmra.mxu0 %v820
        %v968 = vpop.f32.mrf.mxu0
        %v969 = vadd.f32 0.0, %v968
        %v970 = vpop.f32.mrf.mxu0
        %v971 = vadd.f32 0.0, %v970
        %972 = vmatmul.bf16.gmra.mxu0 %v823
        %v973 = vpop.f32.mrf.mxu0
        %v974 = vadd.f32 0.0, %v973
        %v975 = vpop.f32.mrf.mxu0
        %v976 = vadd.f32 0.0, %v975
        %977 = vmatmul.bf16.gmra.mxu0 %v826
        %v978 = vpop.f32.mrf.mxu0
        %v979 = vadd.f32 0.0, %v978
        %v980 = vpop.f32.mrf.mxu0
        %v981 = vadd.f32 0.0, %v980
        %982 = vmatmul.bf16.gmra.mxu0 %v829
        %v983 = vpop.f32.mrf.mxu0
        %v984 = vadd.f32 0.0, %v983
        %v985 = vpop.f32.mrf.mxu0
        %v986 = vadd.f32 0.0, %v985
        %987 = vmatmul.bf16.gmra.mxu0 %v832
        %v988 = vpop.f32.mrf.mxu0
        %v989 = vadd.f32 0.0, %v988
        %v990 = vpop.f32.mrf.mxu0
        %v991 = vadd.f32 0.0, %v990
        %992 = vmatmul.bf16.gmra.mxu0 %v835
        %v993 = vpop.f32.mrf.mxu0
        %v994 = vadd.f32 0.0, %v993
        %v995 = vpop.f32.mrf.mxu0
        %v996 = vadd.f32 0.0, %v995
        %997 = vmatmul.bf16.gmra.mxu0 %v838
        %v998 = vpop.f32.mrf.mxu0
        %v999 = vadd.f32 0.0, %v998
        %v1000 = vpop.f32.mrf.mxu0
        %v1001 = vadd.f32 0.0, %v1000
        %1002 = vmatmul.bf16.gmra.mxu0 %v841
        %v1003 = vpop.f32.mrf.mxu0
        %v1004 = vadd.f32 0.0, %v1003
        %v1005 = vpop.f32.mrf.mxu0
        %v1006 = vadd.f32 0.0, %v1005
        %1007 = vmatmul.bf16.gmra.mxu0 %v844
        %v1008 = vpop.f32.mrf.mxu0
        %v1009 = vadd.f32 0.0, %v1008
        %v1010 = vpop.f32.mrf.mxu0
        %v1011 = vadd.f32 0.0, %v1010
        %1012 = vmatmul.bf16.gmra.mxu0 %v847
        %v1013 = vpop.f32.mrf.mxu0
        %v1014 = vadd.f32 0.0, %v1013
        %v1015 = vpop.f32.mrf.mxu0
        %v1016 = vadd.f32 0.0, %v1015
        %1017 = vdwg.mxu0
        %v1018 = vld [vmem:[%s443] sm:$0xf]
        %v1019 = vld [vmem:[%s443 + $0x4] sm:$0xf]
        %v1020 = vld [vmem:[%s443 + $0x8] sm:$0xf]
        %v1021 = vld [vmem:[%s443 + $0xc] sm:$0xf]
        %v1022 = vld [vmem:[%s443 + $0x10] sm:$0xf]
        %v1023 = vld [vmem:[%s443 + $0x14] sm:$0xf]
        %v1024 = vld [vmem:[%s443 + $0x18] sm:$0xf]
        %v1025 = vld [vmem:[%s443 + $0x1c] sm:$0xf]
        %v1026 = vld [vmem:[%s443 + $0x20] sm:$0xf]
        %v1027 = vld [vmem:[%s443 + $0x24] sm:$0xf]
        %v1028 = vld [vmem:[%s443 + $0x28] sm:$0xf]
        %v1029 = vld [vmem:[%s443 + $0x2c] sm:$0xf]
        %v1030 = vld [vmem:[%s443 + $0x30] sm:$0xf]
        %v1031 = vld [vmem:[%s443 + $0x34] sm:$0xf]
        %v1032 = vld [vmem:[%s443 + $0x38] sm:$0xf]
        %v1033 = vld [vmem:[%s443 + $0x3c] sm:$0xf]
        %v1034 = vld [vmem:[%s443 + $0x40] sm:$0xf]
        %v1035 = vld [vmem:[%s443 + $0x44] sm:$0xf]
        %v1036 = vld [vmem:[%s443 + $0x48] sm:$0xf]
        %v1037 = vld [vmem:[%s443 + $0x4c] sm:$0xf]
        %v1038 = vld [vmem:[%s443 + $0x50] sm:$0xf]
        %v1039 = vld [vmem:[%s443 + $0x54] sm:$0xf]
        %v1040 = vld [vmem:[%s443 + $0x58] sm:$0xf]
        %v1041 = vld [vmem:[%s443 + $0x5c] sm:$0xf]
        %v1042 = vld [vmem:[%s443 + $0x60] sm:$0xf]
        %v1043 = vld [vmem:[%s443 + $0x64] sm:$0xf]
        %v1044 = vld [vmem:[%s443 + $0x68] sm:$0xf]
        %v1045 = vld [vmem:[%s443 + $0x6c] sm:$0xf]
        %v1046 = vld [vmem:[%s443 + $0x70] sm:$0xf]
        %v1047 = vld [vmem:[%s443 + $0x74] sm:$0xf]
        %v1048 = vld [vmem:[%s443 + $0x78] sm:$0xf]
        %v1049 = vld [vmem:[%s443 + $0x7c] sm:$0xf]
        %v1050 = vld [vmem:[%s443 + $0x80] sm:$0xf]
        %v1051 = vld [vmem:[%s443 + $0x84] sm:$0xf]
        %v1052 = vld [vmem:[%s443 + $0x88] sm:$0xf]
        %v1053 = vld [vmem:[%s443 + $0x8c] sm:$0xf]
        %v1054 = vld [vmem:[%s443 + $0x90] sm:$0xf]
        %v1055 = vld [vmem:[%s443 + $0x94] sm:$0xf]
        %v1056 = vld [vmem:[%s443 + $0x98] sm:$0xf]
        %v1057 = vld [vmem:[%s443 + $0x9c] sm:$0xf]
        %v1058 = vld [vmem:[%s443 + $0xa0] sm:$0xf]
        %v1059 = vld [vmem:[%s443 + $0xa4] sm:$0xf]
        %v1060 = vld [vmem:[%s443 + $0xa8] sm:$0xf]
        %v1061 = vld [vmem:[%s443 + $0xac] sm:$0xf]
        %v1062 = vld [vmem:[%s443 + $0xb0] sm:$0xf]
        %v1063 = vld [vmem:[%s443 + $0xb4] sm:$0xf]
        %v1064 = vld [vmem:[%s443 + $0xb8] sm:$0xf]
        %v1065 = vld [vmem:[%s443 + $0xbc] sm:$0xf]
        %v1066 = vld [vmem:[%s443 + $0xc0] sm:$0xf]
        %v1067 = vld [vmem:[%s443 + $0xc4] sm:$0xf]
        %v1068 = vld [vmem:[%s443 + $0xc8] sm:$0xf]
        %v1069 = vld [vmem:[%s443 + $0xcc] sm:$0xf]
        %v1070 = vld [vmem:[%s443 + $0xd0] sm:$0xf]
        %v1071 = vld [vmem:[%s443 + $0xd4] sm:$0xf]
        %v1072 = vld [vmem:[%s443 + $0xd8] sm:$0xf]
        %v1073 = vld [vmem:[%s443 + $0xdc] sm:$0xf]
        %v1074 = vld [vmem:[%s443 + $0xe0] sm:$0xf]
        %v1075 = vld [vmem:[%s443 + $0xe4] sm:$0xf]
        %v1076 = vld [vmem:[%s443 + $0xe8] sm:$0xf]
        %v1077 = vld [vmem:[%s443 + $0xec] sm:$0xf]
        %v1078 = vld [vmem:[%s443 + $0xf0] sm:$0xf]
        %v1079 = vld [vmem:[%s443 + $0xf4] sm:$0xf]
        %v1080 = vld [vmem:[%s443 + $0xf8] sm:$0xf]
        %v1081 = vld [vmem:[%s443 + $0xfc] sm:$0xf]
        %v1082 = vld [vmem:[%s4] sm:$0xf]
        %v1083 = vld [vmem:[%s4 + $0x4] sm:$0xf]
        %v1084 = vld [vmem:[%s4 + $0x8] sm:$0xf]
        %v1085 = vld [vmem:[%s4 + $0xc] sm:$0xf]
        %v1086 = vld [vmem:[%s4 + $0x10] sm:$0xf]
        %v1087 = vld [vmem:[%s4 + $0x14] sm:$0xf]
        %v1088 = vld [vmem:[%s4 + $0x18] sm:$0xf]
        %v1089 = vld [vmem:[%s4 + $0x1c] sm:$0xf]
        %v1154 = vunpack.c.l.b16 %v1018
        %v1155 = vunpack.c.l.b16 %v1019
        %v1156 = vunpack.c.l.b16 %v1020
        %v1157 = vunpack.c.l.b16 %v1021
        %v1158 = vunpack.c.l.b16 %v1022
        %v1159 = vunpack.c.l.b16 %v1023
        %v1160 = vunpack.c.l.b16 %v1024
        %v1161 = vunpack.c.l.b16 %v1025
        %v1162 = vunpack.c.l.b16 %v1026
        %v1163 = vunpack.c.l.b16 %v1027
        %v1164 = vunpack.c.l.b16 %v1028
        %v1165 = vunpack.c.l.b16 %v1029
        %v1166 = vunpack.c.l.b16 %v1030
        %v1167 = vunpack.c.l.b16 %v1031
        %v1168 = vunpack.c.l.b16 %v1032
        %v1169 = vunpack.c.l.b16 %v1033
        %v1170 = vunpack.c.l.b16 %v1034
        %v1171 = vunpack.c.l.b16 %v1035
        %v1172 = vunpack.c.l.b16 %v1036
        %v1173 = vunpack.c.l.b16 %v1037
        %v1174 = vunpack.c.l.b16 %v1038
        %v1175 = vunpack.c.l.b16 %v1039
        %v1176 = vunpack.c.l.b16 %v1040
        %v1177 = vunpack.c.l.b16 %v1041
        %v1178 = vunpack.c.l.b16 %v1042
        %v1179 = vunpack.c.l.b16 %v1043
        %v1180 = vunpack.c.l.b16 %v1044
        %v1181 = vunpack.c.l.b16 %v1045
        %v1182 = vunpack.c.l.b16 %v1046
        %v1183 = vunpack.c.l.b16 %v1047
        %v1184 = vunpack.c.l.b16 %v1048
        %v1185 = vunpack.c.l.b16 %v1049
        %v1186 = vunpack.c.l.b16 %v1050
        %v1187 = vunpack.c.l.b16 %v1051
        %v1188 = vunpack.c.l.b16 %v1052
        %v1189 = vunpack.c.l.b16 %v1053
        %v1190 = vunpack.c.l.b16 %v1054
        %v1191 = vunpack.c.l.b16 %v1055
        %v1192 = vunpack.c.l.b16 %v1056
        %v1193 = vunpack.c.l.b16 %v1057
        %v1194 = vunpack.c.l.b16 %v1058
        %v1195 = vunpack.c.l.b16 %v1059
        %v1196 = vunpack.c.l.b16 %v1060
        %v1197 = vunpack.c.l.b16 %v1061
        %v1198 = vunpack.c.l.b16 %v1062
        %v1199 = vunpack.c.l.b16 %v1063
        %v1200 = vunpack.c.l.b16 %v1064
        %v1201 = vunpack.c.l.b16 %v1065
        %v1202 = vunpack.c.l.b16 %v1066
        %v1203 = vunpack.c.l.b16 %v1067
        %v1204 = vunpack.c.l.b16 %v1068
        %v1205 = vunpack.c.l.b16 %v1069
        %v1206 = vunpack.c.l.b16 %v1070
        %v1207 = vunpack.c.l.b16 %v1071
        %v1208 = vunpack.c.l.b16 %v1072
        %v1209 = vunpack.c.l.b16 %v1073
        %v1210 = vunpack.c.l.b16 %v1074
        %v1211 = vunpack.c.l.b16 %v1075
        %v1212 = vunpack.c.l.b16 %v1076
        %v1213 = vunpack.c.l.b16 %v1077
        %v1214 = vunpack.c.l.b16 %v1078
        %v1215 = vunpack.c.l.b16 %v1079
        %v1216 = vunpack.c.l.b16 %v1080
        %v1217 = vunpack.c.l.b16 %v1081
        %v1218 = vpack.c.b16 %v1155, %v1154
        %v1219 = vpack.c.b16 %v1157, %v1156
        %v1220 = vpack.c.b16 %v1159, %v1158
        %v1221 = vpack.c.b16 %v1161, %v1160
        %v1222 = vpack.c.b16 %v1163, %v1162
        %v1223 = vpack.c.b16 %v1165, %v1164
        %v1224 = vpack.c.b16 %v1167, %v1166
        %v1225 = vpack.c.b16 %v1169, %v1168
        %v1226 = vpack.c.b16 %v1171, %v1170
        %v1227 = vpack.c.b16 %v1173, %v1172
        %v1228 = vpack.c.b16 %v1175, %v1174
        %v1229 = vpack.c.b16 %v1177, %v1176
        %v1230 = vpack.c.b16 %v1179, %v1178
        %v1231 = vpack.c.b16 %v1181, %v1180
        %v1232 = vpack.c.b16 %v1183, %v1182
        %v1233 = vpack.c.b16 %v1185, %v1184
        %v1234 = vpack.c.b16 %v1187, %v1186
        %v1235 = vpack.c.b16 %v1189, %v1188
        %v1236 = vpack.c.b16 %v1191, %v1190
        %v1237 = vpack.c.b16 %v1193, %v1192
        %v1238 = vpack.c.b16 %v1195, %v1194
        %v1239 = vpack.c.b16 %v1197, %v1196
        %v1240 = vpack.c.b16 %v1199, %v1198
        %v1241 = vpack.c.b16 %v1201, %v1200
        %v1242 = vpack.c.b16 %v1203, %v1202
        %v1243 = vpack.c.b16 %v1205, %v1204
        %v1244 = vpack.c.b16 %v1207, %v1206
        %v1245 = vpack.c.b16 %v1209, %v1208
        %v1246 = vpack.c.b16 %v1211, %v1210
        %v1247 = vpack.c.b16 %v1213, %v1212
        %v1248 = vpack.c.b16 %v1215, %v1214
        %v1249 = vpack.c.b16 %v1217, %v1216
        %v1258 = vunpack.c.l.b16 %v1082
        %v1259 = vunpack.c.l.b16 %v1083
        %v1260 = vunpack.c.l.b16 %v1084
        %v1261 = vunpack.c.l.b16 %v1085
        %v1262 = vunpack.c.l.b16 %v1086
        %v1263 = vunpack.c.l.b16 %v1087
        %v1264 = vunpack.c.l.b16 %v1088
        %v1265 = vunpack.c.l.b16 %v1089
        %v1266 = vpack.c.b16 %v1259, %v1258
        %v1267 = vpack.c.b16 %v1261, %v1260
        %v1268 = vpack.c.b16 %v1263, %v1262
        %v1269 = vpack.c.b16 %v1265, %v1264
        %v1275 = vsel %vm752, %v1218, 0
        %v1278 = vsel %vm752, %v1219, 0
        %v1281 = vsel %vm752, %v1220, 0
        %v1284 = vsel %vm752, %v1221, 0
        %v1287 = vsel %vm752, %v1222, 0
        %v1290 = vsel %vm752, %v1223, 0
        %v1293 = vsel %vm752, %v1224, 0
        %v1296 = vsel %vm752, %v1225, 0
        %v1299 = vsel %vm752, %v1226, 0
        %v1302 = vsel %vm752, %v1227, 0
        %v1305 = vsel %vm752, %v1228, 0
        %v1308 = vsel %vm752, %v1229, 0
        %v1311 = vsel %vm752, %v1230, 0
        %v1314 = vsel %vm752, %v1231, 0
        %v1317 = vsel %vm752, %v1232, 0
        %v1320 = vsel %vm752, %v1233, 0
        %v1323 = vsel %vm752, %v1234, 0
        %v1326 = vsel %vm752, %v1235, 0
        %v1329 = vsel %vm752, %v1236, 0
        %v1332 = vsel %vm752, %v1237, 0
        %v1335 = vsel %vm752, %v1238, 0
        %v1338 = vsel %vm752, %v1239, 0
        %v1341 = vsel %vm752, %v1240, 0
        %v1344 = vsel %vm752, %v1241, 0
        %v1347 = vsel %vm752, %v1242, 0
        %v1350 = vsel %vm752, %v1243, 0
        %v1353 = vsel %vm752, %v1244, 0
        %v1356 = vsel %vm752, %v1245, 0
        %v1359 = vsel %vm752, %v1246, 0
        %v1362 = vsel %vm752, %v1247, 0
        %v1365 = vsel %vm752, %v1248, 0
        %v1368 = vsel %vm752, %v1249, 0
        %1370 = vmatpush.bf16.msra.mxu0 0
        %1371 = vmatpush.bf16.msra.mxu0 0
        %1372 = vmatpush.bf16.msra.mxu0 0
        %1373 = vmatpush.bf16.msra.mxu0 0
        %1374 = vmatpush.bf16.msra.mxu0 %v1269
        %1375 = vmatpush.bf16.msra.mxu0 %v1268
        %1376 = vmatpush.bf16.msra.mxu0 %v1267
        %1377 = vmatpush.bf16.msra.mxu0 %v1266
        %1378 = vmatmul.bf16.gmra.mxu0 %v1275
        %v1379 = vpop.f32.mrf.mxu0
        %v1380 = vadd.f32 0.0, %v1379
        %v1381 = vpop.f32.mrf.mxu0
        %v1382 = vadd.f32 0.0, %v1381
        %1383 = vmatmul.bf16.gmra.mxu0 %v1278
        %v1384 = vpop.f32.mrf.mxu0
        %v1385 = vadd.f32 0.0, %v1384
        %v1386 = vpop.f32.mrf.mxu0
        %v1387 = vadd.f32 0.0, %v1386
        %1388 = vmatmul.bf16.gmra.mxu0 %v1281
        %v1389 = vpop.f32.mrf.mxu0
        %v1390 = vadd.f32 0.0, %v1389
        %v1391 = vpop.f32.mrf.mxu0
        %v1392 = vadd.f32 0.0, %v1391
        %1393 = vmatmul.bf16.gmra.mxu0 %v1284
        %v1394 = vpop.f32.mrf.mxu0
        %v1395 = vadd.f32 0.0, %v1394
        %v1396 = vpop.f32.mrf.mxu0
        %v1397 = vadd.f32 0.0, %v1396
        %1398 = vmatmul.bf16.gmra.mxu0 %v1287
        %v1399 = vpop.f32.mrf.mxu0
        %v1400 = vadd.f32 0.0, %v1399
        %v1401 = vpop.f32.mrf.mxu0
        %v1402 = vadd.f32 0.0, %v1401
        %1403 = vmatmul.bf16.gmra.mxu0 %v1290
        %v1404 = vpop.f32.mrf.mxu0
        %v1405 = vadd.f32 0.0, %v1404
        %v1406 = vpop.f32.mrf.mxu0
        %v1407 = vadd.f32 0.0, %v1406
        %1408 = vmatmul.bf16.gmra.mxu0 %v1293
        %v1409 = vpop.f32.mrf.mxu0
        %v1410 = vadd.f32 0.0, %v1409
        %v1411 = vpop.f32.mrf.mxu0
        %v1412 = vadd.f32 0.0, %v1411
        %1413 = vmatmul.bf16.gmra.mxu0 %v1296
        %v1414 = vpop.f32.mrf.mxu0
        %v1415 = vadd.f32 0.0, %v1414
        %v1416 = vpop.f32.mrf.mxu0
        %v1417 = vadd.f32 0.0, %v1416
        %1418 = vmatmul.bf16.gmra.mxu0 %v1299
        %v1419 = vpop.f32.mrf.mxu0
        %v1420 = vadd.f32 0.0, %v1419
        %v1421 = vpop.f32.mrf.mxu0
        %v1422 = vadd.f32 0.0, %v1421
        %1423 = vmatmul.bf16.gmra.mxu0 %v1302
        %v1424 = vpop.f32.mrf.mxu0
        %v1425 = vadd.f32 0.0, %v1424
        %v1426 = vpop.f32.mrf.mxu0
        %v1427 = vadd.f32 0.0, %v1426
        %1428 = vmatmul.bf16.gmra.mxu0 %v1305
        %v1429 = vpop.f32.mrf.mxu0
        %v1430 = vadd.f32 0.0, %v1429
        %v1431 = vpop.f32.mrf.mxu0
        %v1432 = vadd.f32 0.0, %v1431
        %1433 = vmatmul.bf16.gmra.mxu0 %v1308
        %v1434 = vpop.f32.mrf.mxu0
        %v1435 = vadd.f32 0.0, %v1434
        %v1436 = vpop.f32.mrf.mxu0
        %v1437 = vadd.f32 0.0, %v1436
        %1438 = vmatmul.bf16.gmra.mxu0 %v1311
        %v1439 = vpop.f32.mrf.mxu0
        %v1440 = vadd.f32 0.0, %v1439
        %v1441 = vpop.f32.mrf.mxu0
        %v1442 = vadd.f32 0.0, %v1441
        %1443 = vmatmul.bf16.gmra.mxu0 %v1314
        %v1444 = vpop.f32.mrf.mxu0
        %v1445 = vadd.f32 0.0, %v1444
        %v1446 = vpop.f32.mrf.mxu0
        %v1447 = vadd.f32 0.0, %v1446
        %1448 = vmatmul.bf16.gmra.mxu0 %v1317
        %v1449 = vpop.f32.mrf.mxu0
        %v1450 = vadd.f32 0.0, %v1449
        %v1451 = vpop.f32.mrf.mxu0
        %v1452 = vadd.f32 0.0, %v1451
        %1453 = vmatmul.bf16.gmra.mxu0 %v1320
        %v1454 = vpop.f32.mrf.mxu0
        %v1455 = vadd.f32 0.0, %v1454
        %v1456 = vpop.f32.mrf.mxu0
        %v1457 = vadd.f32 0.0, %v1456
        %1458 = vmatmul.bf16.gmra.mxu0 %v1323
        %v1459 = vpop.f32.mrf.mxu0
        %v1460 = vadd.f32 0.0, %v1459
        %v1461 = vpop.f32.mrf.mxu0
        %v1462 = vadd.f32 0.0, %v1461
        %1463 = vmatmul.bf16.gmra.mxu0 %v1326
        %v1464 = vpop.f32.mrf.mxu0
        %v1465 = vadd.f32 0.0, %v1464
        %v1466 = vpop.f32.mrf.mxu0
        %v1467 = vadd.f32 0.0, %v1466
        %1468 = vmatmul.bf16.gmra.mxu0 %v1329
        %v1469 = vpop.f32.mrf.mxu0
        %v1470 = vadd.f32 0.0, %v1469
        %v1471 = vpop.f32.mrf.mxu0
        %v1472 = vadd.f32 0.0, %v1471
        %1473 = vmatmul.bf16.gmra.mxu0 %v1332
        %v1474 = vpop.f32.mrf.mxu0
        %v1475 = vadd.f32 0.0, %v1474
        %v1476 = vpop.f32.mrf.mxu0
        %v1477 = vadd.f32 0.0, %v1476
        %1478 = vmatmul.bf16.gmra.mxu0 %v1335
        %v1479 = vpop.f32.mrf.mxu0
        %v1480 = vadd.f32 0.0, %v1479
        %v1481 = vpop.f32.mrf.mxu0
        %v1482 = vadd.f32 0.0, %v1481
        %1483 = vmatmul.bf16.gmra.mxu0 %v1338
        %v1484 = vpop.f32.mrf.mxu0
        %v1485 = vadd.f32 0.0, %v1484
        %v1486 = vpop.f32.mrf.mxu0
        %v1487 = vadd.f32 0.0, %v1486
        %1488 = vmatmul.bf16.gmra.mxu0 %v1341
        %v1489 = vpop.f32.mrf.mxu0
        %v1490 = vadd.f32 0.0, %v1489
        %v1491 = vpop.f32.mrf.mxu0
        %v1492 = vadd.f32 0.0, %v1491
        %1493 = vmatmul.bf16.gmra.mxu0 %v1344
        %v1494 = vpop.f32.mrf.mxu0
        %v1495 = vadd.f32 0.0, %v1494
        %v1496 = vpop.f32.mrf.mxu0
        %v1497 = vadd.f32 0.0, %v1496
        %1498 = vmatmul.bf16.gmra.mxu0 %v1347
        %v1499 = vpop.f32.mrf.mxu0
        %v1500 = vadd.f32 0.0, %v1499
        %v1501 = vpop.f32.mrf.mxu0
        %v1502 = vadd.f32 0.0, %v1501
        %1503 = vmatmul.bf16.gmra.mxu0 %v1350
        %v1504 = vpop.f32.mrf.mxu0
        %v1505 = vadd.f32 0.0, %v1504
        %v1506 = vpop.f32.mrf.mxu0
        %v1507 = vadd.f32 0.0, %v1506
        %1508 = vmatmul.bf16.gmra.mxu0 %v1353
        %v1509 = vpop.f32.mrf.mxu0
        %v1510 = vadd.f32 0.0, %v1509
        %v1511 = vpop.f32.mrf.mxu0
        %v1512 = vadd.f32 0.0, %v1511
        %1513 = vmatmul.bf16.gmra.mxu0 %v1356
        %v1514 = vpop.f32.mrf.mxu0
        %v1515 = vadd.f32 0.0, %v1514
        %v1516 = vpop.f32.mrf.mxu0
        %v1517 = vadd.f32 0.0, %v1516
        %1518 = vmatmul.bf16.gmra.mxu0 %v1359
        %v1519 = vpop.f32.mrf.mxu0
        %v1520 = vadd.f32 0.0, %v1519
        %v1521 = vpop.f32.mrf.mxu0
        %v1522 = vadd.f32 0.0, %v1521
        %1523 = vmatmul.bf16.gmra.mxu0 %v1362
        %v1524 = vpop.f32.mrf.mxu0
        %v1525 = vadd.f32 0.0, %v1524
        %v1526 = vpop.f32.mrf.mxu0
        %v1527 = vadd.f32 0.0, %v1526
        %1528 = vmatmul.bf16.gmra.mxu0 %v1365
        %v1529 = vpop.f32.mrf.mxu0
        %v1530 = vadd.f32 0.0, %v1529
        %v1531 = vpop.f32.mrf.mxu0
        %v1532 = vadd.f32 0.0, %v1531
        %1533 = vmatmul.bf16.gmra.mxu0 %v1368
        %v1534 = vpop.f32.mrf.mxu0
        %v1535 = vadd.f32 0.0, %v1534
        %v1536 = vpop.f32.mrf.mxu0
        %v1537 = vadd.f32 0.0, %v1536
        %1538 = vdwg.mxu0
        %v1539 = vld [vmem:[%s465] sm:$0xf]
        %v1540 = vld [vmem:[%s465 + $0x4] sm:$0xf]
        %v1541 = vld [vmem:[%s465 + $0x8] sm:$0xf]
        %v1542 = vld [vmem:[%s465 + $0xc] sm:$0xf]
        %v1543 = vld [vmem:[%s465 + $0x10] sm:$0xf]
        %v1544 = vld [vmem:[%s465 + $0x14] sm:$0xf]
        %v1545 = vld [vmem:[%s465 + $0x18] sm:$0xf]
        %v1546 = vld [vmem:[%s465 + $0x1c] sm:$0xf]
        %v1547 = vld [vmem:[%s465 + $0x20] sm:$0xf]
        %v1548 = vld [vmem:[%s465 + $0x24] sm:$0xf]
        %v1549 = vld [vmem:[%s465 + $0x28] sm:$0xf]
        %v1550 = vld [vmem:[%s465 + $0x2c] sm:$0xf]
        %v1551 = vld [vmem:[%s465 + $0x30] sm:$0xf]
        %v1552 = vld [vmem:[%s465 + $0x34] sm:$0xf]
        %v1553 = vld [vmem:[%s465 + $0x38] sm:$0xf]
        %v1554 = vld [vmem:[%s465 + $0x3c] sm:$0xf]
        %v1555 = vld [vmem:[%s465 + $0x40] sm:$0xf]
        %v1556 = vld [vmem:[%s465 + $0x44] sm:$0xf]
        %v1557 = vld [vmem:[%s465 + $0x48] sm:$0xf]
        %v1558 = vld [vmem:[%s465 + $0x4c] sm:$0xf]
        %v1559 = vld [vmem:[%s465 + $0x50] sm:$0xf]
        %v1560 = vld [vmem:[%s465 + $0x54] sm:$0xf]
        %v1561 = vld [vmem:[%s465 + $0x58] sm:$0xf]
        %v1562 = vld [vmem:[%s465 + $0x5c] sm:$0xf]
        %v1563 = vld [vmem:[%s465 + $0x60] sm:$0xf]
        %v1564 = vld [vmem:[%s465 + $0x64] sm:$0xf]
        %v1565 = vld [vmem:[%s465 + $0x68] sm:$0xf]
        %v1566 = vld [vmem:[%s465 + $0x6c] sm:$0xf]
        %v1567 = vld [vmem:[%s465 + $0x70] sm:$0xf]
        %v1568 = vld [vmem:[%s465 + $0x74] sm:$0xf]
        %v1569 = vld [vmem:[%s465 + $0x78] sm:$0xf]
        %v1570 = vld [vmem:[%s465 + $0x7c] sm:$0xf]
        %v1571 = vld [vmem:[%s465 + $0x80] sm:$0xf]
        %v1572 = vld [vmem:[%s465 + $0x84] sm:$0xf]
        %v1573 = vld [vmem:[%s465 + $0x88] sm:$0xf]
        %v1574 = vld [vmem:[%s465 + $0x8c] sm:$0xf]
        %v1575 = vld [vmem:[%s465 + $0x90] sm:$0xf]
        %v1576 = vld [vmem:[%s465 + $0x94] sm:$0xf]
        %v1577 = vld [vmem:[%s465 + $0x98] sm:$0xf]
        %v1578 = vld [vmem:[%s465 + $0x9c] sm:$0xf]
        %v1579 = vld [vmem:[%s465 + $0xa0] sm:$0xf]
        %v1580 = vld [vmem:[%s465 + $0xa4] sm:$0xf]
        %v1581 = vld [vmem:[%s465 + $0xa8] sm:$0xf]
        %v1582 = vld [vmem:[%s465 + $0xac] sm:$0xf]
        %v1583 = vld [vmem:[%s465 + $0xb0] sm:$0xf]
        %v1584 = vld [vmem:[%s465 + $0xb4] sm:$0xf]
        %v1585 = vld [vmem:[%s465 + $0xb8] sm:$0xf]
        %v1586 = vld [vmem:[%s465 + $0xbc] sm:$0xf]
        %v1587 = vld [vmem:[%s465 + $0xc0] sm:$0xf]
        %v1588 = vld [vmem:[%s465 + $0xc4] sm:$0xf]
        %v1589 = vld [vmem:[%s465 + $0xc8] sm:$0xf]
        %v1590 = vld [vmem:[%s465 + $0xcc] sm:$0xf]
        %v1591 = vld [vmem:[%s465 + $0xd0] sm:$0xf]
        %v1592 = vld [vmem:[%s465 + $0xd4] sm:$0xf]
        %v1593 = vld [vmem:[%s465 + $0xd8] sm:$0xf]
        %v1594 = vld [vmem:[%s465 + $0xdc] sm:$0xf]
        %v1595 = vld [vmem:[%s465 + $0xe0] sm:$0xf]
        %v1596 = vld [vmem:[%s465 + $0xe4] sm:$0xf]
        %v1597 = vld [vmem:[%s465 + $0xe8] sm:$0xf]
        %v1598 = vld [vmem:[%s465 + $0xec] sm:$0xf]
        %v1599 = vld [vmem:[%s465 + $0xf0] sm:$0xf]
        %v1600 = vld [vmem:[%s465 + $0xf4] sm:$0xf]
        %v1601 = vld [vmem:[%s465 + $0xf8] sm:$0xf]
        %v1602 = vld [vmem:[%s465 + $0xfc] sm:$0xf]
        %v1667 = vunpack.c.l.b16 %v1539
        %v1668 = vunpack.c.l.b16 %v1540
        %v1669 = vunpack.c.l.b16 %v1541
        %v1670 = vunpack.c.l.b16 %v1542
        %v1671 = vunpack.c.l.b16 %v1543
        %v1672 = vunpack.c.l.b16 %v1544
        %v1673 = vunpack.c.l.b16 %v1545
        %v1674 = vunpack.c.l.b16 %v1546
        %v1675 = vunpack.c.l.b16 %v1547
        %v1676 = vunpack.c.l.b16 %v1548
        %v1677 = vunpack.c.l.b16 %v1549
        %v1678 = vunpack.c.l.b16 %v1550
        %v1679 = vunpack.c.l.b16 %v1551
        %v1680 = vunpack.c.l.b16 %v1552
        %v1681 = vunpack.c.l.b16 %v1553
        %v1682 = vunpack.c.l.b16 %v1554
        %v1683 = vunpack.c.l.b16 %v1555
        %v1684 = vunpack.c.l.b16 %v1556
        %v1685 = vunpack.c.l.b16 %v1557
        %v1686 = vunpack.c.l.b16 %v1558
        %v1687 = vunpack.c.l.b16 %v1559
        %v1688 = vunpack.c.l.b16 %v1560
        %v1689 = vunpack.c.l.b16 %v1561
        %v1690 = vunpack.c.l.b16 %v1562
        %v1691 = vunpack.c.l.b16 %v1563
        %v1692 = vunpack.c.l.b16 %v1564
        %v1693 = vunpack.c.l.b16 %v1565
        %v1694 = vunpack.c.l.b16 %v1566
        %v1695 = vunpack.c.l.b16 %v1567
        %v1696 = vunpack.c.l.b16 %v1568
        %v1697 = vunpack.c.l.b16 %v1569
        %v1698 = vunpack.c.l.b16 %v1570
        %v1699 = vunpack.c.l.b16 %v1571
        %v1700 = vunpack.c.l.b16 %v1572
        %v1701 = vunpack.c.l.b16 %v1573
        %v1702 = vunpack.c.l.b16 %v1574
        %v1703 = vunpack.c.l.b16 %v1575
        %v1704 = vunpack.c.l.b16 %v1576
        %v1705 = vunpack.c.l.b16 %v1577
        %v1706 = vunpack.c.l.b16 %v1578
        %v1707 = vunpack.c.l.b16 %v1579
        %v1708 = vunpack.c.l.b16 %v1580
        %v1709 = vunpack.c.l.b16 %v1581
        %v1710 = vunpack.c.l.b16 %v1582
        %v1711 = vunpack.c.l.b16 %v1583
        %v1712 = vunpack.c.l.b16 %v1584
        %v1713 = vunpack.c.l.b16 %v1585
        %v1714 = vunpack.c.l.b16 %v1586
        %v1715 = vunpack.c.l.b16 %v1587
        %v1716 = vunpack.c.l.b16 %v1588
        %v1717 = vunpack.c.l.b16 %v1589
        %v1718 = vunpack.c.l.b16 %v1590
        %v1719 = vunpack.c.l.b16 %v1591
        %v1720 = vunpack.c.l.b16 %v1592
        %v1721 = vunpack.c.l.b16 %v1593
        %v1722 = vunpack.c.l.b16 %v1594
        %v1723 = vunpack.c.l.b16 %v1595
        %v1724 = vunpack.c.l.b16 %v1596
        %v1725 = vunpack.c.l.b16 %v1597
        %v1726 = vunpack.c.l.b16 %v1598
        %v1727 = vunpack.c.l.b16 %v1599
        %v1728 = vunpack.c.l.b16 %v1600
        %v1729 = vunpack.c.l.b16 %v1601
        %v1730 = vunpack.c.l.b16 %v1602
        %v1731 = vpack.c.b16 %v1668, %v1667
        %v1732 = vpack.c.b16 %v1670, %v1669
        %v1733 = vpack.c.b16 %v1672, %v1671
        %v1734 = vpack.c.b16 %v1674, %v1673
        %v1735 = vpack.c.b16 %v1676, %v1675
        %v1736 = vpack.c.b16 %v1678, %v1677
        %v1737 = vpack.c.b16 %v1680, %v1679
        %v1738 = vpack.c.b16 %v1682, %v1681
        %v1739 = vpack.c.b16 %v1684, %v1683
        %v1740 = vpack.c.b16 %v1686, %v1685
        %v1741 = vpack.c.b16 %v1688, %v1687
        %v1742 = vpack.c.b16 %v1690, %v1689
        %v1743 = vpack.c.b16 %v1692, %v1691
        %v1744 = vpack.c.b16 %v1694, %v1693
        %v1745 = vpack.c.b16 %v1696, %v1695
        %v1746 = vpack.c.b16 %v1698, %v1697
        %v1747 = vpack.c.b16 %v1700, %v1699
        %v1748 = vpack.c.b16 %v1702, %v1701
        %v1749 = vpack.c.b16 %v1704, %v1703
        %v1750 = vpack.c.b16 %v1706, %v1705
        %v1751 = vpack.c.b16 %v1708, %v1707
        %v1752 = vpack.c.b16 %v1710, %v1709
        %v1753 = vpack.c.b16 %v1712, %v1711
        %v1754 = vpack.c.b16 %v1714, %v1713
        %v1755 = vpack.c.b16 %v1716, %v1715
        %v1756 = vpack.c.b16 %v1718, %v1717
        %v1757 = vpack.c.b16 %v1720, %v1719
        %v1758 = vpack.c.b16 %v1722, %v1721
        %v1759 = vpack.c.b16 %v1724, %v1723
        %v1760 = vpack.c.b16 %v1726, %v1725
        %v1761 = vpack.c.b16 %v1728, %v1727
        %v1762 = vpack.c.b16 %v1730, %v1729
        %v1764 = vsel %vm752, %v1731, 0
        %v1767 = vsel %vm752, %v1732, 0
        %v1770 = vsel %vm752, %v1733, 0
        %v1773 = vsel %vm752, %v1734, 0
        %v1776 = vsel %vm752, %v1735, 0
        %v1779 = vsel %vm752, %v1736, 0
        %v1782 = vsel %vm752, %v1737, 0
        %v1785 = vsel %vm752, %v1738, 0
        %v1788 = vsel %vm752, %v1739, 0
        %v1791 = vsel %vm752, %v1740, 0
        %v1794 = vsel %vm752, %v1741, 0
        %v1797 = vsel %vm752, %v1742, 0
        %v1800 = vsel %vm752, %v1743, 0
        %v1803 = vsel %vm752, %v1744, 0
        %v1806 = vsel %vm752, %v1745, 0
        %v1809 = vsel %vm752, %v1746, 0
        %v1812 = vsel %vm752, %v1747, 0
        %v1815 = vsel %vm752, %v1748, 0
        %v1818 = vsel %vm752, %v1749, 0
        %v1821 = vsel %vm752, %v1750, 0
        %v1824 = vsel %vm752, %v1751, 0
        %v1827 = vsel %vm752, %v1752, 0
        %v1830 = vsel %vm752, %v1753, 0
        %v1833 = vsel %vm752, %v1754, 0
        %v1836 = vsel %vm752, %v1755, 0
        %v1839 = vsel %vm752, %v1756, 0
        %v1842 = vsel %vm752, %v1757, 0
        %v1845 = vsel %vm752, %v1758, 0
        %v1848 = vsel %vm752, %v1759, 0
        %v1851 = vsel %vm752, %v1760, 0
        %v1854 = vsel %vm752, %v1761, 0
        %v1857 = vsel %vm752, %v1762, 0
        %1859 = vmatpush.bf16.msra.mxu0 0
        %1860 = vmatpush.bf16.msra.mxu0 0
        %1861 = vmatpush.bf16.msra.mxu0 0
        %1862 = vmatpush.bf16.msra.mxu0 0
        %1863 = vmatpush.bf16.msra.mxu0 %v1269
        %1864 = vmatpush.bf16.msra.mxu0 %v1268
        %1865 = vmatpush.bf16.msra.mxu0 %v1267
        %1866 = vmatpush.bf16.msra.mxu0 %v1266
        %1867 = vmatmul.bf16.gmra.mxu0 %v1764
        %v1868 = vpop.f32.mrf.mxu0
        %v1869 = vadd.f32 0.0, %v1868
        %v1870 = vpop.f32.mrf.mxu0
        %v1871 = vadd.f32 0.0, %v1870
        %1872 = vmatmul.bf16.gmra.mxu0 %v1767
        %v1873 = vpop.f32.mrf.mxu0
        %v1874 = vadd.f32 0.0, %v1873
        %v1875 = vpop.f32.mrf.mxu0
        %v1876 = vadd.f32 0.0, %v1875
        %1877 = vmatmul.bf16.gmra.mxu0 %v1770
        %v1878 = vpop.f32.mrf.mxu0
        %v1879 = vadd.f32 0.0, %v1878
        %v1880 = vpop.f32.mrf.mxu0
        %v1881 = vadd.f32 0.0, %v1880
        %1882 = vmatmul.bf16.gmra.mxu0 %v1773
        %v1883 = vpop.f32.mrf.mxu0
        %v1884 = vadd.f32 0.0, %v1883
        %v1885 = vpop.f32.mrf.mxu0
        %v1886 = vadd.f32 0.0, %v1885
        %1887 = vmatmul.bf16.gmra.mxu0 %v1776
        %v1888 = vpop.f32.mrf.mxu0
        %v1889 = vadd.f32 0.0, %v1888
        %v1890 = vpop.f32.mrf.mxu0
        %v1891 = vadd.f32 0.0, %v1890
        %1892 = vmatmul.bf16.gmra.mxu0 %v1779
        %v1893 = vpop.f32.mrf.mxu0
        %v1894 = vadd.f32 0.0, %v1893
        %v1895 = vpop.f32.mrf.mxu0
        %v1896 = vadd.f32 0.0, %v1895
        %1897 = vmatmul.bf16.gmra.mxu0 %v1782
        %v1898 = vpop.f32.mrf.mxu0
        %v1899 = vadd.f32 0.0, %v1898
        %v1900 = vpop.f32.mrf.mxu0
        %v1901 = vadd.f32 0.0, %v1900
        %1902 = vmatmul.bf16.gmra.mxu0 %v1785
        %v1903 = vpop.f32.mrf.mxu0
        %v1904 = vadd.f32 0.0, %v1903
        %v1905 = vpop.f32.mrf.mxu0
        %v1906 = vadd.f32 0.0, %v1905
        %1907 = vmatmul.bf16.gmra.mxu0 %v1788
        %v1908 = vpop.f32.mrf.mxu0
        %v1909 = vadd.f32 0.0, %v1908
        %v1910 = vpop.f32.mrf.mxu0
        %v1911 = vadd.f32 0.0, %v1910
        %1912 = vmatmul.bf16.gmra.mxu0 %v1791
        %v1913 = vpop.f32.mrf.mxu0
        %v1914 = vadd.f32 0.0, %v1913
        %v1915 = vpop.f32.mrf.mxu0
        %v1916 = vadd.f32 0.0, %v1915
        %1917 = vmatmul.bf16.gmra.mxu0 %v1794
        %v1918 = vpop.f32.mrf.mxu0
        %v1919 = vadd.f32 0.0, %v1918
        %v1920 = vpop.f32.mrf.mxu0
        %v1921 = vadd.f32 0.0, %v1920
        %1922 = vmatmul.bf16.gmra.mxu0 %v1797
        %v1923 = vpop.f32.mrf.mxu0
        %v1924 = vadd.f32 0.0, %v1923
        %v1925 = vpop.f32.mrf.mxu0
        %v1926 = vadd.f32 0.0, %v1925
        %1927 = vmatmul.bf16.gmra.mxu0 %v1800
        %v1928 = vpop.f32.mrf.mxu0
        %v1929 = vadd.f32 0.0, %v1928
        %v1930 = vpop.f32.mrf.mxu0
        %v1931 = vadd.f32 0.0, %v1930
        %1932 = vmatmul.bf16.gmra.mxu0 %v1803
        %v1933 = vpop.f32.mrf.mxu0
        %v1934 = vadd.f32 0.0, %v1933
        %v1935 = vpop.f32.mrf.mxu0
        %v1936 = vadd.f32 0.0, %v1935
        %1937 = vmatmul.bf16.gmra.mxu0 %v1806
        %v1938 = vpop.f32.mrf.mxu0
        %v1939 = vadd.f32 0.0, %v1938
        %v1940 = vpop.f32.mrf.mxu0
        %v1941 = vadd.f32 0.0, %v1940
        %1942 = vmatmul.bf16.gmra.mxu0 %v1809
        %v1943 = vpop.f32.mrf.mxu0
        %v1944 = vadd.f32 0.0, %v1943
        %v1945 = vpop.f32.mrf.mxu0
        %v1946 = vadd.f32 0.0, %v1945
        %1947 = vmatmul.bf16.gmra.mxu0 %v1812
        %v1948 = vpop.f32.mrf.mxu0
        %v1949 = vadd.f32 0.0, %v1948
        %v1950 = vpop.f32.mrf.mxu0
        %v1951 = vadd.f32 0.0, %v1950
        %1952 = vmatmul.bf16.gmra.mxu0 %v1815
        %v1953 = vpop.f32.mrf.mxu0
        %v1954 = vadd.f32 0.0, %v1953
        %v1955 = vpop.f32.mrf.mxu0
        %v1956 = vadd.f32 0.0, %v1955
        %1957 = vmatmul.bf16.gmra.mxu0 %v1818
        %v1958 = vpop.f32.mrf.mxu0
        %v1959 = vadd.f32 0.0, %v1958
        %v1960 = vpop.f32.mrf.mxu0
        %v1961 = vadd.f32 0.0, %v1960
        %1962 = vmatmul.bf16.gmra.mxu0 %v1821
        %v1963 = vpop.f32.mrf.mxu0
        %v1964 = vadd.f32 0.0, %v1963
        %v1965 = vpop.f32.mrf.mxu0
        %v1966 = vadd.f32 0.0, %v1965
        %1967 = vmatmul.bf16.gmra.mxu0 %v1824
        %v1968 = vpop.f32.mrf.mxu0
        %v1969 = vadd.f32 0.0, %v1968
        %v1970 = vpop.f32.mrf.mxu0
        %v1971 = vadd.f32 0.0, %v1970
        %1972 = vmatmul.bf16.gmra.mxu0 %v1827
        %v1973 = vpop.f32.mrf.mxu0
        %v1974 = vadd.f32 0.0, %v1973
        %v1975 = vpop.f32.mrf.mxu0
        %v1976 = vadd.f32 0.0, %v1975
        %1977 = vmatmul.bf16.gmra.mxu0 %v1830
        %v1978 = vpop.f32.mrf.mxu0
        %v1979 = vadd.f32 0.0, %v1978
        %v1980 = vpop.f32.mrf.mxu0
        %v1981 = vadd.f32 0.0, %v1980
        %1982 = vmatmul.bf16.gmra.mxu0 %v1833
        %v1983 = vpop.f32.mrf.mxu0
        %v1984 = vadd.f32 0.0, %v1983
        %v1985 = vpop.f32.mrf.mxu0
        %v1986 = vadd.f32 0.0, %v1985
        %1987 = vmatmul.bf16.gmra.mxu0 %v1836
        %v1988 = vpop.f32.mrf.mxu0
        %v1989 = vadd.f32 0.0, %v1988
        %v1990 = vpop.f32.mrf.mxu0
        %v1991 = vadd.f32 0.0, %v1990
        %1992 = vmatmul.bf16.gmra.mxu0 %v1839
        %v1993 = vpop.f32.mrf.mxu0
        %v1994 = vadd.f32 0.0, %v1993
        %v1995 = vpop.f32.mrf.mxu0
        %v1996 = vadd.f32 0.0, %v1995
        %1997 = vmatmul.bf16.gmra.mxu0 %v1842
        %v1998 = vpop.f32.mrf.mxu0
        %v1999 = vadd.f32 0.0, %v1998
        %v2000 = vpop.f32.mrf.mxu0
        %v2001 = vadd.f32 0.0, %v2000
        %2002 = vmatmul.bf16.gmra.mxu0 %v1845
        %v2003 = vpop.f32.mrf.mxu0
        %v2004 = vadd.f32 0.0, %v2003
        %v2005 = vpop.f32.mrf.mxu0
        %v2006 = vadd.f32 0.0, %v2005
        %2007 = vmatmul.bf16.gmra.mxu0 %v1848
        %v2008 = vpop.f32.mrf.mxu0
        %v2009 = vadd.f32 0.0, %v2008
        %v2010 = vpop.f32.mrf.mxu0
        %v2011 = vadd.f32 0.0, %v2010
        %2012 = vmatmul.bf16.gmra.mxu0 %v1851
        %v2013 = vpop.f32.mrf.mxu0
        %v2014 = vadd.f32 0.0, %v2013
        %v2015 = vpop.f32.mrf.mxu0
        %v2016 = vadd.f32 0.0, %v2015
        %2017 = vmatmul.bf16.gmra.mxu0 %v1854
        %v2018 = vpop.f32.mrf.mxu0
        %v2019 = vadd.f32 0.0, %v2018
        %v2020 = vpop.f32.mrf.mxu0
        %v2021 = vadd.f32 0.0, %v2020
        %2022 = vmatmul.bf16.gmra.mxu0 %v1857
        %v2023 = vpop.f32.mrf.mxu0
        %v2024 = vadd.f32 0.0, %v2023
        %v2025 = vpop.f32.mrf.mxu0
        %v2026 = vadd.f32 0.0, %v2025
        %2027 = vdwg.mxu0
        %v2028 = vld [vmem:[%s5] sm:$0x1]
        %v2029 = vld [vmem:[%s6] sm:$0x1]
        %v2030 = vadd.f32 %v859, %v1380
        %v2031 = vadd.f32 %v861, %v1382
        %v2032 = vadd.f32 %v864, %v1385
        %v2033 = vadd.f32 %v866, %v1387
        %v2034 = vadd.f32 %v869, %v1390
        %v2035 = vadd.f32 %v871, %v1392
        %v2036 = vadd.f32 %v874, %v1395
        %v2037 = vadd.f32 %v876, %v1397
        %v2038 = vadd.f32 %v879, %v1400
        %v2039 = vadd.f32 %v881, %v1402
        %v2040 = vadd.f32 %v884, %v1405
        %v2041 = vadd.f32 %v886, %v1407
        %v2042 = vadd.f32 %v889, %v1410
        %v2043 = vadd.f32 %v891, %v1412
        %v2044 = vadd.f32 %v894, %v1415
        %v2045 = vadd.f32 %v896, %v1417
        %v2046 = vadd.f32 %v899, %v1420
        %v2047 = vadd.f32 %v901, %v1422
        %v2048 = vadd.f32 %v904, %v1425
        %v2049 = vadd.f32 %v906, %v1427
        %v2050 = vadd.f32 %v909, %v1430
        %v2051 = vadd.f32 %v911, %v1432
        %v2052 = vadd.f32 %v914, %v1435
        %v2053 = vadd.f32 %v916, %v1437
        %v2054 = vadd.f32 %v919, %v1440
        %v2055 = vadd.f32 %v921, %v1442
        %v2056 = vadd.f32 %v924, %v1445
        %v2057 = vadd.f32 %v926, %v1447
        %v2058 = vadd.f32 %v929, %v1450
        %v2059 = vadd.f32 %v931, %v1452
        %v2060 = vadd.f32 %v934, %v1455
        %v2061 = vadd.f32 %v936, %v1457
        %v2062 = vadd.f32 %v939, %v1460
        %v2063 = vadd.f32 %v941, %v1462
        %v2064 = vadd.f32 %v944, %v1465
        %v2065 = vadd.f32 %v946, %v1467
        %v2066 = vadd.f32 %v949, %v1470
        %v2067 = vadd.f32 %v951, %v1472
        %v2068 = vadd.f32 %v954, %v1475
        %v2069 = vadd.f32 %v956, %v1477
        %v2070 = vadd.f32 %v959, %v1480
        %v2071 = vadd.f32 %v961, %v1482
        %v2072 = vadd.f32 %v964, %v1485
        %v2073 = vadd.f32 %v966, %v1487
        %v2074 = vadd.f32 %v969, %v1490
        %v2075 = vadd.f32 %v971, %v1492
        %v2076 = vadd.f32 %v974, %v1495
        %v2077 = vadd.f32 %v976, %v1497
        %v2078 = vadd.f32 %v979, %v1500
        %v2079 = vadd.f32 %v981, %v1502
        %v2080 = vadd.f32 %v984, %v1505
        %v2081 = vadd.f32 %v986, %v1507
        %v2082 = vadd.f32 %v989, %v1510
        %v2083 = vadd.f32 %v991, %v1512
        %v2084 = vadd.f32 %v994, %v1515
        %v2085 = vadd.f32 %v996, %v1517
        %v2086 = vadd.f32 %v999, %v1520
        %v2087 = vadd.f32 %v1001, %v1522
        %v2088 = vadd.f32 %v1004, %v1525
        %v2089 = vadd.f32 %v1006, %v1527
        %v2090 = vadd.f32 %v1009, %v1530
        %v2091 = vadd.f32 %v1011, %v1532
        %v2092 = vadd.f32 %v1014, %v1535
        %v2093 = vadd.f32 %v1016, %v1537
        %v2095 = vperm.slane %v2028, 0
        %v2097 = vadd.f32 %v2030, %v2095
        %v2098 = vadd.f32 %v2031, %v2095
        %v2099 = vadd.f32 %v2032, %v2095
        %v2100 = vadd.f32 %v2033, %v2095
        %v2101 = vadd.f32 %v2034, %v2095
        %v2102 = vadd.f32 %v2035, %v2095
        %v2103 = vadd.f32 %v2036, %v2095
        %v2104 = vadd.f32 %v2037, %v2095
        %v2105 = vadd.f32 %v2038, %v2095
        %v2106 = vadd.f32 %v2039, %v2095
        %v2107 = vadd.f32 %v2040, %v2095
        %v2108 = vadd.f32 %v2041, %v2095
        %v2109 = vadd.f32 %v2042, %v2095
        %v2110 = vadd.f32 %v2043, %v2095
        %v2111 = vadd.f32 %v2044, %v2095
        %v2112 = vadd.f32 %v2045, %v2095
        %v2113 = vadd.f32 %v2046, %v2095
        %v2114 = vadd.f32 %v2047, %v2095
        %v2115 = vadd.f32 %v2048, %v2095
        %v2116 = vadd.f32 %v2049, %v2095
        %v2117 = vadd.f32 %v2050, %v2095
        %v2118 = vadd.f32 %v2051, %v2095
        %v2119 = vadd.f32 %v2052, %v2095
        %v2120 = vadd.f32 %v2053, %v2095
        %v2121 = vadd.f32 %v2054, %v2095
        %v2122 = vadd.f32 %v2055, %v2095
        %v2123 = vadd.f32 %v2056, %v2095
        %v2124 = vadd.f32 %v2057, %v2095
        %v2125 = vadd.f32 %v2058, %v2095
        %v2126 = vadd.f32 %v2059, %v2095
        %v2127 = vadd.f32 %v2060, %v2095
        %v2128 = vadd.f32 %v2061, %v2095
        %v2129 = vadd.f32 %v2062, %v2095
        %v2130 = vadd.f32 %v2063, %v2095
        %v2131 = vadd.f32 %v2064, %v2095
        %v2132 = vadd.f32 %v2065, %v2095
        %v2133 = vadd.f32 %v2066, %v2095
        %v2134 = vadd.f32 %v2067, %v2095
        %v2135 = vadd.f32 %v2068, %v2095
        %v2136 = vadd.f32 %v2069, %v2095
        %v2137 = vadd.f32 %v2070, %v2095
        %v2138 = vadd.f32 %v2071, %v2095
        %v2139 = vadd.f32 %v2072, %v2095
        %v2140 = vadd.f32 %v2073, %v2095
        %v2141 = vadd.f32 %v2074, %v2095
        %v2142 = vadd.f32 %v2075, %v2095
        %v2143 = vadd.f32 %v2076, %v2095
        %v2144 = vadd.f32 %v2077, %v2095
        %v2145 = vadd.f32 %v2078, %v2095
        %v2146 = vadd.f32 %v2079, %v2095
        %v2147 = vadd.f32 %v2080, %v2095
        %v2148 = vadd.f32 %v2081, %v2095
        %v2149 = vadd.f32 %v2082, %v2095
        %v2150 = vadd.f32 %v2083, %v2095
        %v2151 = vadd.f32 %v2084, %v2095
        %v2152 = vadd.f32 %v2085, %v2095
        %v2153 = vadd.f32 %v2086, %v2095
        %v2154 = vadd.f32 %v2087, %v2095
        %v2155 = vadd.f32 %v2088, %v2095
        %v2156 = vadd.f32 %v2089, %v2095
        %v2157 = vadd.f32 %v2090, %v2095
        %v2158 = vadd.f32 %v2091, %v2095
        %v2159 = vadd.f32 %v2092, %v2095
        %v2160 = vadd.f32 %v2093, %v2095
        %v2161 = vmax.f32 %v2097, 0.0
        %v2162 = vmax.f32 %v2098, 0.0
        %v2163 = vmax.f32 %v2099, 0.0
        %v2164 = vmax.f32 %v2100, 0.0
        %v2165 = vmax.f32 %v2101, 0.0
        %v2166 = vmax.f32 %v2102, 0.0
        %v2167 = vmax.f32 %v2103, 0.0
        %v2168 = vmax.f32 %v2104, 0.0
        %v2169 = vmax.f32 %v2105, 0.0
        %v2170 = vmax.f32 %v2106, 0.0
        %v2171 = vmax.f32 %v2107, 0.0
        %v2172 = vmax.f32 %v2108, 0.0
        %v2173 = vmax.f32 %v2109, 0.0
        %v2174 = vmax.f32 %v2110, 0.0
        %v2175 = vmax.f32 %v2111, 0.0
        %v2176 = vmax.f32 %v2112, 0.0
        %v2177 = vmax.f32 %v2113, 0.0
        %v2178 = vmax.f32 %v2114, 0.0
        %v2179 = vmax.f32 %v2115, 0.0
        %v2180 = vmax.f32 %v2116, 0.0
        %v2181 = vmax.f32 %v2117, 0.0
        %v2182 = vmax.f32 %v2118, 0.0
        %v2183 = vmax.f32 %v2119, 0.0
        %v2184 = vmax.f32 %v2120, 0.0
        %v2185 = vmax.f32 %v2121, 0.0
        %v2186 = vmax.f32 %v2122, 0.0
        %v2187 = vmax.f32 %v2123, 0.0
        %v2188 = vmax.f32 %v2124, 0.0
        %v2189 = vmax.f32 %v2125, 0.0
        %v2190 = vmax.f32 %v2126, 0.0
        %v2191 = vmax.f32 %v2127, 0.0
        %v2192 = vmax.f32 %v2128, 0.0
        %v2193 = vmax.f32 %v2129, 0.0
        %v2194 = vmax.f32 %v2130, 0.0
        %v2195 = vmax.f32 %v2131, 0.0
        %v2196 = vmax.f32 %v2132, 0.0
        %v2197 = vmax.f32 %v2133, 0.0
        %v2198 = vmax.f32 %v2134, 0.0
        %v2199 = vmax.f32 %v2135, 0.0
        %v2200 = vmax.f32 %v2136, 0.0
        %v2201 = vmax.f32 %v2137, 0.0
        %v2202 = vmax.f32 %v2138, 0.0
        %v2203 = vmax.f32 %v2139, 0.0
        %v2204 = vmax.f32 %v2140, 0.0
        %v2205 = vmax.f32 %v2141, 0.0
        %v2206 = vmax.f32 %v2142, 0.0
        %v2207 = vmax.f32 %v2143, 0.0
        %v2208 = vmax.f32 %v2144, 0.0
        %v2209 = vmax.f32 %v2145, 0.0
        %v2210 = vmax.f32 %v2146, 0.0
        %v2211 = vmax.f32 %v2147, 0.0
        %v2212 = vmax.f32 %v2148, 0.0
        %v2213 = vmax.f32 %v2149, 0.0
        %v2214 = vmax.f32 %v2150, 0.0
        %v2215 = vmax.f32 %v2151, 0.0
        %v2216 = vmax.f32 %v2152, 0.0
        %v2217 = vmax.f32 %v2153, 0.0
        %v2218 = vmax.f32 %v2154, 0.0
        %v2219 = vmax.f32 %v2155, 0.0
        %v2220 = vmax.f32 %v2156, 0.0
        %v2221 = vmax.f32 %v2157, 0.0
        %v2222 = vmax.f32 %v2158, 0.0
        %v2223 = vmax.f32 %v2159, 0.0
        %v2224 = vmax.f32 %v2160, 0.0
        %v2225 = vadd.f32 %v859, %v1869
        %v2226 = vadd.f32 %v861, %v1871
        %v2227 = vadd.f32 %v864, %v1874
        %v2228 = vadd.f32 %v866, %v1876
        %v2229 = vadd.f32 %v869, %v1879
        %v2230 = vadd.f32 %v871, %v1881
        %v2231 = vadd.f32 %v874, %v1884
        %v2232 = vadd.f32 %v876, %v1886
        %v2233 = vadd.f32 %v879, %v1889
        %v2234 = vadd.f32 %v881, %v1891
        %v2235 = vadd.f32 %v884, %v1894
        %v2236 = vadd.f32 %v886, %v1896
        %v2237 = vadd.f32 %v889, %v1899
        %v2238 = vadd.f32 %v891, %v1901
        %v2239 = vadd.f32 %v894, %v1904
        %v2240 = vadd.f32 %v896, %v1906
        %v2241 = vadd.f32 %v899, %v1909
        %v2242 = vadd.f32 %v901, %v1911
        %v2243 = vadd.f32 %v904, %v1914
        %v2244 = vadd.f32 %v906, %v1916
        %v2245 = vadd.f32 %v909, %v1919
        %v2246 = vadd.f32 %v911, %v1921
        %v2247 = vadd.f32 %v914, %v1924
        %v2248 = vadd.f32 %v916, %v1926
        %v2249 = vadd.f32 %v919, %v1929
        %v2250 = vadd.f32 %v921, %v1931
        %v2251 = vadd.f32 %v924, %v1934
        %v2252 = vadd.f32 %v926, %v1936
        %v2253 = vadd.f32 %v929, %v1939
        %v2254 = vadd.f32 %v931, %v1941
        %v2255 = vadd.f32 %v934, %v1944
        %v2256 = vadd.f32 %v936, %v1946
        %v2257 = vadd.f32 %v939, %v1949
        %v2258 = vadd.f32 %v941, %v1951
        %v2259 = vadd.f32 %v944, %v1954
        %v2260 = vadd.f32 %v946, %v1956
        %v2261 = vadd.f32 %v949, %v1959
        %v2262 = vadd.f32 %v951, %v1961
        %v2263 = vadd.f32 %v954, %v1964
        %v2264 = vadd.f32 %v956, %v1966
        %v2265 = vadd.f32 %v959, %v1969
        %v2266 = vadd.f32 %v961, %v1971
        %v2267 = vadd.f32 %v964, %v1974
        %v2268 = vadd.f32 %v966, %v1976
        %v2269 = vadd.f32 %v969, %v1979
        %v2270 = vadd.f32 %v971, %v1981
        %v2271 = vadd.f32 %v974, %v1984
        %v2272 = vadd.f32 %v976, %v1986
        %v2273 = vadd.f32 %v979, %v1989
        %v2274 = vadd.f32 %v981, %v1991
        %v2275 = vadd.f32 %v984, %v1994
        %v2276 = vadd.f32 %v986, %v1996
        %v2277 = vadd.f32 %v989, %v1999
        %v2278 = vadd.f32 %v991, %v2001
        %v2279 = vadd.f32 %v994, %v2004
        %v2280 = vadd.f32 %v996, %v2006
        %v2281 = vadd.f32 %v999, %v2009
        %v2282 = vadd.f32 %v1001, %v2011
        %v2283 = vadd.f32 %v1004, %v2014
        %v2284 = vadd.f32 %v1006, %v2016
        %v2285 = vadd.f32 %v1009, %v2019
        %v2286 = vadd.f32 %v1011, %v2021
        %v2287 = vadd.f32 %v1014, %v2024
        %v2288 = vadd.f32 %v1016, %v2026
        %v2289 = vadd.f32 %v2225, %v2095
        %v2290 = vadd.f32 %v2226, %v2095
        %v2291 = vadd.f32 %v2227, %v2095
        %v2292 = vadd.f32 %v2228, %v2095
        %v2293 = vadd.f32 %v2229, %v2095
        %v2294 = vadd.f32 %v2230, %v2095
        %v2295 = vadd.f32 %v2231, %v2095
        %v2296 = vadd.f32 %v2232, %v2095
        %v2297 = vadd.f32 %v2233, %v2095
        %v2298 = vadd.f32 %v2234, %v2095
        %v2299 = vadd.f32 %v2235, %v2095
        %v2300 = vadd.f32 %v2236, %v2095
        %v2301 = vadd.f32 %v2237, %v2095
        %v2302 = vadd.f32 %v2238, %v2095
        %v2303 = vadd.f32 %v2239, %v2095
        %v2304 = vadd.f32 %v2240, %v2095
        %v2305 = vadd.f32 %v2241, %v2095
        %v2306 = vadd.f32 %v2242, %v2095
        %v2307 = vadd.f32 %v2243, %v2095
        %v2308 = vadd.f32 %v2244, %v2095
        %v2309 = vadd.f32 %v2245, %v2095
        %v2310 = vadd.f32 %v2246, %v2095
        %v2311 = vadd.f32 %v2247, %v2095
        %v2312 = vadd.f32 %v2248, %v2095
        %v2313 = vadd.f32 %v2249, %v2095
        %v2314 = vadd.f32 %v2250, %v2095
        %v2315 = vadd.f32 %v2251, %v2095
        %v2316 = vadd.f32 %v2252, %v2095
        %v2317 = vadd.f32 %v2253, %v2095
        %v2318 = vadd.f32 %v2254, %v2095
        %v2319 = vadd.f32 %v2255, %v2095
        %v2320 = vadd.f32 %v2256, %v2095
        %v2321 = vadd.f32 %v2257, %v2095
        %v2322 = vadd.f32 %v2258, %v2095
        %v2323 = vadd.f32 %v2259, %v2095
        %v2324 = vadd.f32 %v2260, %v2095
        %v2325 = vadd.f32 %v2261, %v2095
        %v2326 = vadd.f32 %v2262, %v2095
        %v2327 = vadd.f32 %v2263, %v2095
        %v2328 = vadd.f32 %v2264, %v2095
        %v2329 = vadd.f32 %v2265, %v2095
        %v2330 = vadd.f32 %v2266, %v2095
        %v2331 = vadd.f32 %v2267, %v2095
        %v2332 = vadd.f32 %v2268, %v2095
        %v2333 = vadd.f32 %v2269, %v2095
        %v2334 = vadd.f32 %v2270, %v2095
        %v2335 = vadd.f32 %v2271, %v2095
        %v2336 = vadd.f32 %v2272, %v2095
        %v2337 = vadd.f32 %v2273, %v2095
        %v2338 = vadd.f32 %v2274, %v2095
        %v2339 = vadd.f32 %v2275, %v2095
        %v2340 = vadd.f32 %v2276, %v2095
        %v2341 = vadd.f32 %v2277, %v2095
        %v2342 = vadd.f32 %v2278, %v2095
        %v2343 = vadd.f32 %v2279, %v2095
        %v2344 = vadd.f32 %v2280, %v2095
        %v2345 = vadd.f32 %v2281, %v2095
        %v2346 = vadd.f32 %v2282, %v2095
        %v2347 = vadd.f32 %v2283, %v2095
        %v2348 = vadd.f32 %v2284, %v2095
        %v2349 = vadd.f32 %v2285, %v2095
        %v2350 = vadd.f32 %v2286, %v2095
        %v2351 = vadd.f32 %v2287, %v2095
        %v2352 = vadd.f32 %v2288, %v2095
        %v2353 = vmax.f32 %v2289, 0.0
        %v2354 = vmax.f32 %v2290, 0.0
        %v2355 = vmax.f32 %v2291, 0.0
        %v2356 = vmax.f32 %v2292, 0.0
        %v2357 = vmax.f32 %v2293, 0.0
        %v2358 = vmax.f32 %v2294, 0.0
        %v2359 = vmax.f32 %v2295, 0.0
        %v2360 = vmax.f32 %v2296, 0.0
        %v2361 = vmax.f32 %v2297, 0.0
        %v2362 = vmax.f32 %v2298, 0.0
        %v2363 = vmax.f32 %v2299, 0.0
        %v2364 = vmax.f32 %v2300, 0.0
        %v2365 = vmax.f32 %v2301, 0.0
        %v2366 = vmax.f32 %v2302, 0.0
        %v2367 = vmax.f32 %v2303, 0.0
        %v2368 = vmax.f32 %v2304, 0.0
        %v2369 = vmax.f32 %v2305, 0.0
        %v2370 = vmax.f32 %v2306, 0.0
        %v2371 = vmax.f32 %v2307, 0.0
        %v2372 = vmax.f32 %v2308, 0.0
        %v2373 = vmax.f32 %v2309, 0.0
        %v2374 = vmax.f32 %v2310, 0.0
        %v2375 = vmax.f32 %v2311, 0.0
        %v2376 = vmax.f32 %v2312, 0.0
        %v2377 = vmax.f32 %v2313, 0.0
        %v2378 = vmax.f32 %v2314, 0.0
        %v2379 = vmax.f32 %v2315, 0.0
        %v2380 = vmax.f32 %v2316, 0.0
        %v2381 = vmax.f32 %v2317, 0.0
        %v2382 = vmax.f32 %v2318, 0.0
        %v2383 = vmax.f32 %v2319, 0.0
        %v2384 = vmax.f32 %v2320, 0.0
        %v2385 = vmax.f32 %v2321, 0.0
        %v2386 = vmax.f32 %v2322, 0.0
        %v2387 = vmax.f32 %v2323, 0.0
        %v2388 = vmax.f32 %v2324, 0.0
        %v2389 = vmax.f32 %v2325, 0.0
        %v2390 = vmax.f32 %v2326, 0.0
        %v2391 = vmax.f32 %v2327, 0.0
        %v2392 = vmax.f32 %v2328, 0.0
        %v2393 = vmax.f32 %v2329, 0.0
        %v2394 = vmax.f32 %v2330, 0.0
        %v2395 = vmax.f32 %v2331, 0.0
        %v2396 = vmax.f32 %v2332, 0.0
        %v2397 = vmax.f32 %v2333, 0.0
        %v2398 = vmax.f32 %v2334, 0.0
        %v2399 = vmax.f32 %v2335, 0.0
        %v2400 = vmax.f32 %v2336, 0.0
        %v2401 = vmax.f32 %v2337, 0.0
        %v2402 = vmax.f32 %v2338, 0.0
        %v2403 = vmax.f32 %v2339, 0.0
        %v2404 = vmax.f32 %v2340, 0.0
        %v2405 = vmax.f32 %v2341, 0.0
        %v2406 = vmax.f32 %v2342, 0.0
        %v2407 = vmax.f32 %v2343, 0.0
        %v2408 = vmax.f32 %v2344, 0.0
        %v2409 = vmax.f32 %v2345, 0.0
        %v2410 = vmax.f32 %v2346, 0.0
        %v2411 = vmax.f32 %v2347, 0.0
        %v2412 = vmax.f32 %v2348, 0.0
        %v2413 = vmax.f32 %v2349, 0.0
        %v2414 = vmax.f32 %v2350, 0.0
        %v2415 = vmax.f32 %v2351, 0.0
        %v2416 = vmax.f32 %v2352, 0.0
        %v2418 = vperm.slane %v2029, 0
        %v2420 = vmul.f32 %v2353, %v2418
        %v2421 = vmul.f32 %v2354, %v2418
        %v2422 = vmul.f32 %v2355, %v2418
        %v2423 = vmul.f32 %v2356, %v2418
        %v2424 = vmul.f32 %v2357, %v2418
        %v2425 = vmul.f32 %v2358, %v2418
        %v2426 = vmul.f32 %v2359, %v2418
        %v2427 = vmul.f32 %v2360, %v2418
        %v2428 = vmul.f32 %v2361, %v2418
        %v2429 = vmul.f32 %v2362, %v2418
        %v2430 = vmul.f32 %v2363, %v2418
        %v2431 = vmul.f32 %v2364, %v2418
        %v2432 = vmul.f32 %v2365, %v2418
        %v2433 = vmul.f32 %v2366, %v2418
        %v2434 = vmul.f32 %v2367, %v2418
        %v2435 = vmul.f32 %v2368, %v2418
        %v2436 = vmul.f32 %v2369, %v2418
        %v2437 = vmul.f32 %v2370, %v2418
        %v2438 = vmul.f32 %v2371, %v2418
        %v2439 = vmul.f32 %v2372, %v2418
        %v2440 = vmul.f32 %v2373, %v2418
        %v2441 = vmul.f32 %v2374, %v2418
        %v2442 = vmul.f32 %v2375, %v2418
        %v2443 = vmul.f32 %v2376, %v2418
        %v2444 = vmul.f32 %v2377, %v2418
        %v2445 = vmul.f32 %v2378, %v2418
        %v2446 = vmul.f32 %v2379, %v2418
        %v2447 = vmul.f32 %v2380, %v2418
        %v2448 = vmul.f32 %v2381, %v2418
        %v2449 = vmul.f32 %v2382, %v2418
        %v2450 = vmul.f32 %v2383, %v2418
        %v2451 = vmul.f32 %v2384, %v2418
        %v2452 = vmul.f32 %v2385, %v2418
        %v2453 = vmul.f32 %v2386, %v2418
        %v2454 = vmul.f32 %v2387, %v2418
        %v2455 = vmul.f32 %v2388, %v2418
        %v2456 = vmul.f32 %v2389, %v2418
        %v2457 = vmul.f32 %v2390, %v2418
        %v2458 = vmul.f32 %v2391, %v2418
        %v2459 = vmul.f32 %v2392, %v2418
        %v2460 = vmul.f32 %v2393, %v2418
        %v2461 = vmul.f32 %v2394, %v2418
        %v2462 = vmul.f32 %v2395, %v2418
        %v2463 = vmul.f32 %v2396, %v2418
        %v2464 = vmul.f32 %v2397, %v2418
        %v2465 = vmul.f32 %v2398, %v2418
        %v2466 = vmul.f32 %v2399, %v2418
        %v2467 = vmul.f32 %v2400, %v2418
        %v2468 = vmul.f32 %v2401, %v2418
        %v2469 = vmul.f32 %v2402, %v2418
        %v2470 = vmul.f32 %v2403, %v2418
        %v2471 = vmul.f32 %v2404, %v2418
        %v2472 = vmul.f32 %v2405, %v2418
        %v2473 = vmul.f32 %v2406, %v2418
        %v2474 = vmul.f32 %v2407, %v2418
        %v2475 = vmul.f32 %v2408, %v2418
        %v2476 = vmul.f32 %v2409, %v2418
        %v2477 = vmul.f32 %v2410, %v2418
        %v2478 = vmul.f32 %v2411, %v2418
        %v2479 = vmul.f32 %v2412, %v2418
        %v2480 = vmul.f32 %v2413, %v2418
        %v2481 = vmul.f32 %v2414, %v2418
        %v2482 = vmul.f32 %v2415, %v2418
        %v2483 = vmul.f32 %v2416, %v2418
        %2484 = vadd.xlane.f32.xlu0 %v2420
        %v2485 = vpop.xlane.xlu0 %2484
        %2486 = vadd.xlane.f32.xlu0 %v2421
        %v2487 = vpop.xlane.xlu0 %2486
        %2488 = vadd.xlane.f32.xlu0 %v2422
        %v2489 = vpop.xlane.xlu0 %2488
        %2490 = vadd.xlane.f32.xlu0 %v2423
        %v2491 = vpop.xlane.xlu0 %2490
        %2492 = vadd.xlane.f32.xlu0 %v2424
        %v2493 = vpop.xlane.xlu0 %2492
        %2494 = vadd.xlane.f32.xlu0 %v2425
        %v2495 = vpop.xlane.xlu0 %2494
        %2496 = vadd.xlane.f32.xlu0 %v2426
        %v2497 = vpop.xlane.xlu0 %2496
        %2498 = vadd.xlane.f32.xlu0 %v2427
        %v2499 = vpop.xlane.xlu0 %2498
        %2500 = vadd.xlane.f32.xlu0 %v2428
        %v2501 = vpop.xlane.xlu0 %2500
        %2502 = vadd.xlane.f32.xlu0 %v2429
        %v2503 = vpop.xlane.xlu0 %2502
        %2504 = vadd.xlane.f32.xlu0 %v2430
        %v2505 = vpop.xlane.xlu0 %2504
        %2506 = vadd.xlane.f32.xlu0 %v2431
        %v2507 = vpop.xlane.xlu0 %2506
        %2508 = vadd.xlane.f32.xlu0 %v2432
        %v2509 = vpop.xlane.xlu0 %2508
        %2510 = vadd.xlane.f32.xlu0 %v2433
        %v2511 = vpop.xlane.xlu0 %2510
        %2512 = vadd.xlane.f32.xlu0 %v2434
        %v2513 = vpop.xlane.xlu0 %2512
        %2514 = vadd.xlane.f32.xlu0 %v2435
        %v2515 = vpop.xlane.xlu0 %2514
        %2516 = vadd.xlane.f32.xlu0 %v2436
        %v2517 = vpop.xlane.xlu0 %2516
        %2518 = vadd.xlane.f32.xlu0 %v2437
        %v2519 = vpop.xlane.xlu0 %2518
        %2520 = vadd.xlane.f32.xlu0 %v2438
        %v2521 = vpop.xlane.xlu0 %2520
        %2522 = vadd.xlane.f32.xlu0 %v2439
        %v2523 = vpop.xlane.xlu0 %2522
        %2524 = vadd.xlane.f32.xlu0 %v2440
        %v2525 = vpop.xlane.xlu0 %2524
        %2526 = vadd.xlane.f32.xlu0 %v2441
        %v2527 = vpop.xlane.xlu0 %2526
        %2528 = vadd.xlane.f32.xlu0 %v2442
        %v2529 = vpop.xlane.xlu0 %2528
        %2530 = vadd.xlane.f32.xlu0 %v2443
        %v2531 = vpop.xlane.xlu0 %2530
        %2532 = vadd.xlane.f32.xlu0 %v2444
        %v2533 = vpop.xlane.xlu0 %2532
        %2534 = vadd.xlane.f32.xlu0 %v2445
        %v2535 = vpop.xlane.xlu0 %2534
        %2536 = vadd.xlane.f32.xlu0 %v2446
        %v2537 = vpop.xlane.xlu0 %2536
        %2538 = vadd.xlane.f32.xlu0 %v2447
        %v2539 = vpop.xlane.xlu0 %2538
        %2540 = vadd.xlane.f32.xlu0 %v2448
        %v2541 = vpop.xlane.xlu0 %2540
        %2542 = vadd.xlane.f32.xlu0 %v2449
        %v2543 = vpop.xlane.xlu0 %2542
        %2544 = vadd.xlane.f32.xlu0 %v2450
        %v2545 = vpop.xlane.xlu0 %2544
        %2546 = vadd.xlane.f32.xlu0 %v2451
        %v2547 = vpop.xlane.xlu0 %2546
        %2548 = vadd.xlane.f32.xlu0 %v2452
        %v2549 = vpop.xlane.xlu0 %2548
        %2550 = vadd.xlane.f32.xlu0 %v2453
        %v2551 = vpop.xlane.xlu0 %2550
        %2552 = vadd.xlane.f32.xlu0 %v2454
        %v2553 = vpop.xlane.xlu0 %2552
        %2554 = vadd.xlane.f32.xlu0 %v2455
        %v2555 = vpop.xlane.xlu0 %2554
        %2556 = vadd.xlane.f32.xlu0 %v2456
        %v2557 = vpop.xlane.xlu0 %2556
        %2558 = vadd.xlane.f32.xlu0 %v2457
        %v2559 = vpop.xlane.xlu0 %2558
        %2560 = vadd.xlane.f32.xlu0 %v2458
        %v2561 = vpop.xlane.xlu0 %2560
        %2562 = vadd.xlane.f32.xlu0 %v2459
        %v2563 = vpop.xlane.xlu0 %2562
        %2564 = vadd.xlane.f32.xlu0 %v2460
        %v2565 = vpop.xlane.xlu0 %2564
        %2566 = vadd.xlane.f32.xlu0 %v2461
        %v2567 = vpop.xlane.xlu0 %2566
        %2568 = vadd.xlane.f32.xlu0 %v2462
        %v2569 = vpop.xlane.xlu0 %2568
        %2570 = vadd.xlane.f32.xlu0 %v2463
        %v2571 = vpop.xlane.xlu0 %2570
        %2572 = vadd.xlane.f32.xlu0 %v2464
        %v2573 = vpop.xlane.xlu0 %2572
        %2574 = vadd.xlane.f32.xlu0 %v2465
        %v2575 = vpop.xlane.xlu0 %2574
        %2576 = vadd.xlane.f32.xlu0 %v2466
        %v2577 = vpop.xlane.xlu0 %2576
        %2578 = vadd.xlane.f32.xlu0 %v2467
        %v2579 = vpop.xlane.xlu0 %2578
        %2580 = vadd.xlane.f32.xlu0 %v2468
        %v2581 = vpop.xlane.xlu0 %2580
        %2582 = vadd.xlane.f32.xlu0 %v2469
        %v2583 = vpop.xlane.xlu0 %2582
        %2584 = vadd.xlane.f32.xlu0 %v2470
        %v2585 = vpop.xlane.xlu0 %2584
        %2586 = vadd.xlane.f32.xlu0 %v2471
        %v2587 = vpop.xlane.xlu0 %2586
        %2588 = vadd.xlane.f32.xlu0 %v2472
        %v2589 = vpop.xlane.xlu0 %2588
        %2590 = vadd.xlane.f32.xlu0 %v2473
        %v2591 = vpop.xlane.xlu0 %2590
        %2592 = vadd.xlane.f32.xlu0 %v2474
        %v2593 = vpop.xlane.xlu0 %2592
        %2594 = vadd.xlane.f32.xlu0 %v2475
        %v2595 = vpop.xlane.xlu0 %2594
        %2596 = vadd.xlane.f32.xlu0 %v2476
        %v2597 = vpop.xlane.xlu0 %2596
        %2598 = vadd.xlane.f32.xlu0 %v2477
        %v2599 = vpop.xlane.xlu0 %2598
        %2600 = vadd.xlane.f32.xlu0 %v2478
        %v2601 = vpop.xlane.xlu0 %2600
        %2602 = vadd.xlane.f32.xlu0 %v2479
        %v2603 = vpop.xlane.xlu0 %2602
        %2604 = vadd.xlane.f32.xlu0 %v2480
        %v2605 = vpop.xlane.xlu0 %2604
        %2606 = vadd.xlane.f32.xlu0 %v2481
        %v2607 = vpop.xlane.xlu0 %2606
        %2608 = vadd.xlane.f32.xlu0 %v2482
        %v2609 = vpop.xlane.xlu0 %2608
        %2610 = vadd.xlane.f32.xlu0 %v2483
        %v2611 = vpop.xlane.xlu0 %2610
        %s2612 = sadd.s32 %s491, 512
        %p2613 = scmp.le.s32.totalorder %s2612, 1300
        // Predicated region
        $region57: #{mine_objective.1} parent=55 // pred_check
          %p2614 = pneg %p2613
        $region58: #{mine_objective.1} parent=55 // pred_check_branch
          %2616 = sbr.rel (%p2614) target = $region60
        $region59: #{mine_objective.1} parent=55 // pred_region
          %v2617 = vld [vmem:[#allocation2] sm:$0x1]
          %v2618 = vadd.f32 %v2161, %v2162
          %v2619 = vadd.f32 %v2618, %v2163
          %v2620 = vadd.f32 %v2619, %v2164
          %v2621 = vadd.f32 %v2620, %v2165
          %v2622 = vadd.f32 %v2621, %v2166
          %v2623 = vadd.f32 %v2622, %v2167
          %v2624 = vadd.f32 %v2623, %v2168
          %v2625 = vadd.f32 %v2624, %v2169
          %v2626 = vadd.f32 %v2625, %v2170
          %v2627 = vadd.f32 %v2626, %v2171
          %v2628 = vadd.f32 %v2627, %v2172
          %v2629 = vadd.f32 %v2628, %v2173
          %v2630 = vadd.f32 %v2629, %v2174
          %v2631 = vadd.f32 %v2630, %v2175
          %v2632 = vadd.f32 %v2631, %v2176
          %v2633 = vadd.f32 %v2632, %v2177
          %v2634 = vadd.f32 %v2633, %v2178
          %v2635 = vadd.f32 %v2634, %v2179
          %v2636 = vadd.f32 %v2635, %v2180
          %v2637 = vadd.f32 %v2636, %v2181
          %v2638 = vadd.f32 %v2637, %v2182
          %v2639 = vadd.f32 %v2638, %v2183
          %v2640 = vadd.f32 %v2639, %v2184
          %v2641 = vadd.f32 %v2640, %v2185
          %v2642 = vadd.f32 %v2641, %v2186
          %v2643 = vadd.f32 %v2642, %v2187
          %v2644 = vadd.f32 %v2643, %v2188
          %v2645 = vadd.f32 %v2644, %v2189
          %v2646 = vadd.f32 %v2645, %v2190
          %v2647 = vadd.f32 %v2646, %v2191
          %v2648 = vadd.f32 %v2647, %v2192
          %v2649 = vadd.f32 %v2648, %v2193
          %v2650 = vadd.f32 %v2649, %v2194
          %v2651 = vadd.f32 %v2650, %v2195
          %v2652 = vadd.f32 %v2651, %v2196
          %v2653 = vadd.f32 %v2652, %v2197
          %v2654 = vadd.f32 %v2653, %v2198
          %v2655 = vadd.f32 %v2654, %v2199
          %v2656 = vadd.f32 %v2655, %v2200
          %v2657 = vadd.f32 %v2656, %v2201
          %v2658 = vadd.f32 %v2657, %v2202
          %v2659 = vadd.f32 %v2658, %v2203
          %v2660 = vadd.f32 %v2659, %v2204
          %v2661 = vadd.f32 %v2660, %v2205
          %v2662 = vadd.f32 %v2661, %v2206
          %v2663 = vadd.f32 %v2662, %v2207
          %v2664 = vadd.f32 %v2663, %v2208
          %v2665 = vadd.f32 %v2664, %v2209
          %v2666 = vadd.f32 %v2665, %v2210
          %v2667 = vadd.f32 %v2666, %v2211
          %v2668 = vadd.f32 %v2667, %v2212
          %v2669 = vadd.f32 %v2668, %v2213
          %v2670 = vadd.f32 %v2669, %v2214
          %v2671 = vadd.f32 %v2670, %v2215
          %v2672 = vadd.f32 %v2671, %v2216
          %v2673 = vadd.f32 %v2672, %v2217
          %v2674 = vadd.f32 %v2673, %v2218
          %v2675 = vadd.f32 %v2674, %v2219
          %v2676 = vadd.f32 %v2675, %v2220
          %v2677 = vadd.f32 %v2676, %v2221
          %v2678 = vadd.f32 %v2677, %v2222
          %v2679 = vadd.f32 %v2678, %v2223
          %v2680 = vadd.f32 %v2679, %v2224
          %v2681 = vrot.slane %v2680, 4
          %v2682 = vadd.f32 %v2680, %v2681
          %v2683 = vrot.slane %v2682, 2
          %v2684 = vadd.f32 %v2682, %v2683
          %v2685 = vrot.slane %v2684, 1
          %v2686 = vadd.f32 %v2684, %v2685
          %v2687 = vadd.f32 %v2617, %v2686
          %2688 = vst [vmem:[#allocation2] sm:$0x1] %v2687
          %v2689 = vmax.f32 %v2485, %v2493
          %v2690 = vmax.f32 %v2487, %v2495
          %v2691 = vmax.f32 %v2489, %v2497
          %v2692 = vmax.f32 %v2491, %v2499
          %v2693 = vmax.f32 %v2689, %v2501
          %v2694 = vmax.f32 %v2690, %v2503
          %v2695 = vmax.f32 %v2691, %v2505
          %v2696 = vmax.f32 %v2692, %v2507
          %v2697 = vmax.f32 %v2693, %v2509
          %v2698 = vmax.f32 %v2694, %v2511
          %v2699 = vmax.f32 %v2695, %v2513
          %v2700 = vmax.f32 %v2696, %v2515
          %v2701 = vmax.f32 %v2697, %v2517
          %v2702 = vmax.f32 %v2698, %v2519
          %v2703 = vmax.f32 %v2699, %v2521
          %v2704 = vmax.f32 %v2700, %v2523
          %v2705 = vmax.f32 %v2701, %v2525
          %v2706 = vmax.f32 %v2702, %v2527
          %v2707 = vmax.f32 %v2703, %v2529
          %v2708 = vmax.f32 %v2704, %v2531
          %v2709 = vmax.f32 %v2705, %v2533
          %v2710 = vmax.f32 %v2706, %v2535
          %v2711 = vmax.f32 %v2707, %v2537
          %v2712 = vmax.f32 %v2708, %v2539
          %v2713 = vmax.f32 %v2709, %v2541
          %v2714 = vmax.f32 %v2710, %v2543
          %v2715 = vmax.f32 %v2711, %v2545
          %v2716 = vmax.f32 %v2712, %v2547
          %v2717 = vmax.f32 %v2713, %v2549
          %v2718 = vmax.f32 %v2714, %v2551
          %v2719 = vmax.f32 %v2715, %v2553
          %v2720 = vmax.f32 %v2716, %v2555
          %v2721 = vmax.f32 %v2717, %v2557
          %v2722 = vmax.f32 %v2718, %v2559
          %v2723 = vmax.f32 %v2719, %v2561
          %v2724 = vmax.f32 %v2720, %v2563
          %v2725 = vmax.f32 %v2721, %v2565
          %v2726 = vmax.f32 %v2722, %v2567
          %v2727 = vmax.f32 %v2723, %v2569
          %v2728 = vmax.f32 %v2724, %v2571
          %v2729 = vmax.f32 %v2725, %v2573
          %v2730 = vmax.f32 %v2726, %v2575
          %v2731 = vmax.f32 %v2727, %v2577
          %v2732 = vmax.f32 %v2728, %v2579
          %v2733 = vmax.f32 %v2729, %v2581
          %v2734 = vmax.f32 %v2730, %v2583
          %v2735 = vmax.f32 %v2731, %v2585
          %v2736 = vmax.f32 %v2732, %v2587
          %v2737 = vmax.f32 %v2733, %v2589
          %v2738 = vmax.f32 %v2734, %v2591
          %v2739 = vmax.f32 %v2735, %v2593
          %v2740 = vmax.f32 %v2736, %v2595
          %v2741 = vmax.f32 %v2737, %v2597
          %v2742 = vmax.f32 %v2738, %v2599
          %v2743 = vmax.f32 %v2739, %v2601
          %v2744 = vmax.f32 %v2740, %v2603
          %v2745 = vmax.f32 %v2741, %v2605
          %v2746 = vmax.f32 %v2742, %v2607
          %v2747 = vmax.f32 %v2743, %v2609
          %v2748 = vmax.f32 %v2744, %v2611
          %v2749 = vmax.f32 %v2745, %v2746
          %v2750 = vmax.f32 %v2747, %v2748
          %v2751 = vmax.f32 %v2749, %v2750
          %v2752 = vrot.slane %v2751, 4
          %v2753 = vmax.f32 %v2751, %v2752
          %v2754 = vrot.slane %v2753, 2
          %v2755 = vmax.f32 %v2753, %v2754
          %v2756 = vrot.slane %v2755, 1
          %v2757 = vmax.f32 %v2755, %v2756
          %s2758 = vtos %v2757
          %v2759 = vstv %s2758
          %v2760 = vld [vmem:[#allocation3] sm:$0x1]
          %v2761 = vmax.f32 %v2760, %v2759
          %v2763 = vperm.slane %v2761, 0
          %v2765 = vsub.f32 %v2485, %v2763
          %v2766 = vsub.f32 %v2487, %v2763
          %v2767 = vsub.f32 %v2489, %v2763
          %v2768 = vsub.f32 %v2491, %v2763
          %v2769 = vsub.f32 %v2493, %v2763
          %v2770 = vsub.f32 %v2495, %v2763
          %v2771 = vsub.f32 %v2497, %v2763
          %v2772 = vsub.f32 %v2499, %v2763
          %v2773 = vsub.f32 %v2501, %v2763
          %v2774 = vsub.f32 %v2503, %v2763
          %v2775 = vsub.f32 %v2505, %v2763
          %v2776 = vsub.f32 %v2507, %v2763
          %v2777 = vsub.f32 %v2509, %v2763
          %v2778 = vsub.f32 %v2511, %v2763
          %v2779 = vsub.f32 %v2513, %v2763
          %v2780 = vsub.f32 %v2515, %v2763
          %v2781 = vsub.f32 %v2517, %v2763
          %v2782 = vsub.f32 %v2519, %v2763
          %v2783 = vsub.f32 %v2521, %v2763
          %v2784 = vsub.f32 %v2523, %v2763
          %v2785 = vsub.f32 %v2525, %v2763
          %v2786 = vsub.f32 %v2527, %v2763
          %v2787 = vsub.f32 %v2529, %v2763
          %v2788 = vsub.f32 %v2531, %v2763
          %v2789 = vsub.f32 %v2533, %v2763
          %v2790 = vsub.f32 %v2535, %v2763
          %v2791 = vsub.f32 %v2537, %v2763
          %v2792 = vsub.f32 %v2539, %v2763
          %v2793 = vsub.f32 %v2541, %v2763
          %v2794 = vsub.f32 %v2543, %v2763
          %v2795 = vsub.f32 %v2545, %v2763
          %v2796 = vsub.f32 %v2547, %v2763
          %v2797 = vsub.f32 %v2549, %v2763
          %v2798 = vsub.f32 %v2551, %v2763
          %v2799 = vsub.f32 %v2553, %v2763
          %v2800 = vsub.f32 %v2555, %v2763
          %v2801 = vsub.f32 %v2557, %v2763
          %v2802 = vsub.f32 %v2559, %v2763
          %v2803 = vsub.f32 %v2561, %v2763
          %v2804 = vsub.f32 %v2563, %v2763
          %v2805 = vsub.f32 %v2565, %v2763
          %v2806 = vsub.f32 %v2567, %v2763
          %v2807 = vsub.f32 %v2569, %v2763
          %v2808 = vsub.f32 %v2571, %v2763
          %v2809 = vsub.f32 %v2573, %v2763
          %v2810 = vsub.f32 %v2575, %v2763
          %v2811 = vsub.f32 %v2577, %v2763
          %v2812 = vsub.f32 %v2579, %v2763
          %v2813 = vsub.f32 %v2581, %v2763
          %v2814 = vsub.f32 %v2583, %v2763
          %v2815 = vsub.f32 %v2585, %v2763
          %v2816 = vsub.f32 %v2587, %v2763
          %v2817 = vsub.f32 %v2589, %v2763
          %v2818 = vsub.f32 %v2591, %v2763
          %v2819 = vsub.f32 %v2593, %v2763
          %v2820 = vsub.f32 %v2595, %v2763
          %v2821 = vsub.f32 %v2597, %v2763
          %v2822 = vsub.f32 %v2599, %v2763
          %v2823 = vsub.f32 %v2601, %v2763
          %v2824 = vsub.f32 %v2603, %v2763
          %v2825 = vsub.f32 %v2605, %v2763
          %v2826 = vsub.f32 %v2607, %v2763
          %v2827 = vsub.f32 %v2609, %v2763
          %v2828 = vsub.f32 %v2611, %v2763
          %v2829 = vmul.f32 %v2765, 1.442695
          %v2830 = vpow.pop %v2829
          %v2831 = vmul.f32 %v2766, 1.442695
          %v2832 = vpow.pop %v2831
          %v2833 = vmul.f32 %v2767, 1.442695
          %v2834 = vpow.pop %v2833
          %v2835 = vmul.f32 %v2768, 1.442695
          %v2836 = vpow.pop %v2835
          %v2837 = vmul.f32 %v2769, 1.442695
          %v2838 = vpow.pop %v2837
          %v2839 = vmul.f32 %v2770, 1.442695
          %v2840 = vpow.pop %v2839
          %v2841 = vmul.f32 %v2771, 1.442695
          %v2842 = vpow.pop %v2841
          %v2843 = vmul.f32 %v2772, 1.442695
          %v2844 = vpow.pop %v2843
          %v2845 = vmul.f32 %v2773, 1.442695
          %v2846 = vpow.pop %v2845
          %v2847 = vmul.f32 %v2774, 1.442695
          %v2848 = vpow.pop %v2847
          %v2849 = vmul.f32 %v2775, 1.442695
          %v2850 = vpow.pop %v2849
          %v2851 = vmul.f32 %v2776, 1.442695
          %v2852 = vpow.pop %v2851
          %v2853 = vmul.f32 %v2777, 1.442695
          %v2854 = vpow.pop %v2853
          %v2855 = vmul.f32 %v2778, 1.442695
          %v2856 = vpow.pop %v2855
          %v2857 = vmul.f32 %v2779, 1.442695
          %v2858 = vpow.pop %v2857
          %v2859 = vmul.f32 %v2780, 1.442695
          %v2860 = vpow.pop %v2859
          %v2861 = vmul.f32 %v2781, 1.442695
          %v2862 = vpow.pop %v2861
          %v2863 = vmul.f32 %v2782, 1.442695
          %v2864 = vpow.pop %v2863
          %v2865 = vmul.f32 %v2783, 1.442695
          %v2866 = vpow.pop %v2865
          %v2867 = vmul.f32 %v2784, 1.442695
          %v2868 = vpow.pop %v2867
          %v2869 = vmul.f32 %v2785, 1.442695
          %v2870 = vpow.pop %v2869
          %v2871 = vmul.f32 %v2786, 1.442695
          %v2872 = vpow.pop %v2871
          %v2873 = vmul.f32 %v2787, 1.442695
          %v2874 = vpow.pop %v2873
          %v2875 = vmul.f32 %v2788, 1.442695
          %v2876 = vpow.pop %v2875
          %v2877 = vmul.f32 %v2789, 1.442695
          %v2878 = vpow.pop %v2877
          %v2879 = vmul.f32 %v2790, 1.442695
          %v2880 = vpow.pop %v2879
          %v2881 = vmul.f32 %v2791, 1.442695
          %v2882 = vpow.pop %v2881
          %v2883 = vmul.f32 %v2792, 1.442695
          %v2884 = vpow.pop %v2883
          %v2885 = vmul.f32 %v2793, 1.442695
          %v2886 = vpow.pop %v2885
          %v2887 = vmul.f32 %v2794, 1.442695
          %v2888 = vpow.pop %v2887
          %v2889 = vmul.f32 %v2795, 1.442695
          %v2890 = vpow.pop %v2889
          %v2891 = vmul.f32 %v2796, 1.442695
          %v2892 = vpow.pop %v2891
          %v2893 = vmul.f32 %v2797, 1.442695
          %v2894 = vpow.pop %v2893
          %v2895 = vmul.f32 %v2798, 1.442695
          %v2896 = vpow.pop %v2895
          %v2897 = vmul.f32 %v2799, 1.442695
          %v2898 = vpow.pop %v2897
          %v2899 = vmul.f32 %v2800, 1.442695
          %v2900 = vpow.pop %v2899
          %v2901 = vmul.f32 %v2801, 1.442695
          %v2902 = vpow.pop %v2901
          %v2903 = vmul.f32 %v2802, 1.442695
          %v2904 = vpow.pop %v2903
          %v2905 = vmul.f32 %v2803, 1.442695
          %v2906 = vpow.pop %v2905
          %v2907 = vmul.f32 %v2804, 1.442695
          %v2908 = vpow.pop %v2907
          %v2909 = vmul.f32 %v2805, 1.442695
          %v2910 = vpow.pop %v2909
          %v2911 = vmul.f32 %v2806, 1.442695
          %v2912 = vpow.pop %v2911
          %v2913 = vmul.f32 %v2807, 1.442695
          %v2914 = vpow.pop %v2913
          %v2915 = vmul.f32 %v2808, 1.442695
          %v2916 = vpow.pop %v2915
          %v2917 = vmul.f32 %v2809, 1.442695
          %v2918 = vpow.pop %v2917
          %v2919 = vmul.f32 %v2810, 1.442695
          %v2920 = vpow.pop %v2919
          %v2921 = vmul.f32 %v2811, 1.442695
          %v2922 = vpow.pop %v2921
          %v2923 = vmul.f32 %v2812, 1.442695
          %v2924 = vpow.pop %v2923
          %v2925 = vmul.f32 %v2813, 1.442695
          %v2926 = vpow.pop %v2925
          %v2927 = vmul.f32 %v2814, 1.442695
          %v2928 = vpow.pop %v2927
          %v2929 = vmul.f32 %v2815, 1.442695
          %v2930 = vpow.pop %v2929
          %v2931 = vmul.f32 %v2816, 1.442695
          %v2932 = vpow.pop %v2931
          %v2933 = vmul.f32 %v2817, 1.442695
          %v2934 = vpow.pop %v2933
          %v2935 = vmul.f32 %v2818, 1.442695
          %v2936 = vpow.pop %v2935
          %v2937 = vmul.f32 %v2819, 1.442695
          %v2938 = vpow.pop %v2937
          %v2939 = vmul.f32 %v2820, 1.442695
          %v2940 = vpow.pop %v2939
          %v2941 = vmul.f32 %v2821, 1.442695
          %v2942 = vpow.pop %v2941
          %v2943 = vmul.f32 %v2822, 1.442695
          %v2944 = vpow.pop %v2943
          %v2945 = vmul.f32 %v2823, 1.442695
          %v2946 = vpow.pop %v2945
          %v2947 = vmul.f32 %v2824, 1.442695
          %v2948 = vpow.pop %v2947
          %v2949 = vmul.f32 %v2825, 1.442695
          %v2950 = vpow.pop %v2949
          %v2951 = vmul.f32 %v2826, 1.442695
          %v2952 = vpow.pop %v2951
          %v2953 = vmul.f32 %v2827, 1.442695
          %v2954 = vpow.pop %v2953
          %v2955 = vmul.f32 %v2828, 1.442695
          %v2956 = vpow.pop %v2955
          %v2957 = vld [vmem:[#allocation4] sm:$0x1]
          %v2958 = vsub.f32 %v2760, %v2761
          %v2959 = vmul.f32 %v2958, 1.442695
          %v2960 = vpow.pop %v2959
          %v2961 = vmul.f32 %v2957, %v2960
          %vm2962 = vcmask 7168
          %v2963 = vsel %vm2962, %v2830, 0.0
          %v2964 = vsel %vm2962, %v2832, 0.0
          %v2965 = vadd.f32 %v2963, %v2964
          %v2966 = vsel %vm2962, %v2834, 0.0
          %v2967 = vadd.f32 %v2965, %v2966
          %v2968 = vsel %vm2962, %v2836, 0.0
          %v2969 = vadd.f32 %v2967, %v2968
          %v2970 = vsel %vm2962, %v2838, 0.0
          %v2971 = vadd.f32 %v2969, %v2970
          %v2972 = vsel %vm2962, %v2840, 0.0
          %v2973 = vadd.f32 %v2971, %v2972
          %v2974 = vsel %vm2962, %v2842, 0.0
          %v2975 = vadd.f32 %v2973, %v2974
          %v2976 = vsel %vm2962, %v2844, 0.0
          %v2977 = vadd.f32 %v2975, %v2976
          %v2978 = vsel %vm2962, %v2846, 0.0
          %v2979 = vadd.f32 %v2977, %v2978
          %v2980 = vsel %vm2962, %v2848, 0.0
          %v2981 = vadd.f32 %v2979, %v2980
          %v2982 = vsel %vm2962, %v2850, 0.0
          %v2983 = vadd.f32 %v2981, %v2982
          %v2984 = vsel %vm2962, %v2852, 0.0
          %v2985 = vadd.f32 %v2983, %v2984
          %v2986 = vsel %vm2962, %v2854, 0.0
          %v2987 = vadd.f32 %v2985, %v2986
          %v2988 = vsel %vm2962, %v2856, 0.0
          %v2989 = vadd.f32 %v2987, %v2988
          %v2990 = vsel %vm2962, %v2858, 0.0
          %v2991 = vadd.f32 %v2989, %v2990
          %v2992 = vsel %vm2962, %v2860, 0.0
          %v2993 = vadd.f32 %v2991, %v2992
          %v2994 = vsel %vm2962, %v2862, 0.0
          %v2995 = vadd.f32 %v2993, %v2994
          %v2996 = vsel %vm2962, %v2864, 0.0
          %v2997 = vadd.f32 %v2995, %v2996
          %v2998 = vsel %vm2962, %v2866, 0.0
          %v2999 = vadd.f32 %v2997, %v2998
          %v3000 = vsel %vm2962, %v2868, 0.0
          %v3001 = vadd.f32 %v2999, %v3000
          %v3002 = vsel %vm2962, %v2870, 0.0
          %v3003 = vadd.f32 %v3001, %v3002
          %v3004 = vsel %vm2962, %v2872, 0.0
          %v3005 = vadd.f32 %v3003, %v3004
          %v3006 = vsel %vm2962, %v2874, 0.0
          %v3007 = vadd.f32 %v3005, %v3006
          %v3008 = vsel %vm2962, %v2876, 0.0
          %v3009 = vadd.f32 %v3007, %v3008
          %v3010 = vsel %vm2962, %v2878, 0.0
          %v3011 = vadd.f32 %v3009, %v3010
          %v3012 = vsel %vm2962, %v2880, 0.0
          %v3013 = vadd.f32 %v3011, %v3012
          %v3014 = vsel %vm2962, %v2882, 0.0
          %v3015 = vadd.f32 %v3013, %v3014
          %v3016 = vsel %vm2962, %v2884, 0.0
          %v3017 = vadd.f32 %v3015, %v3016
          %v3018 = vsel %vm2962, %v2886, 0.0
          %v3019 = vadd.f32 %v3017, %v3018
          %v3020 = vsel %vm2962, %v2888, 0.0
          %v3021 = vadd.f32 %v3019, %v3020
          %v3022 = vsel %vm2962, %v2890, 0.0
          %v3023 = vadd.f32 %v3021, %v3022
          %v3024 = vsel %vm2962, %v2892, 0.0
          %v3025 = vadd.f32 %v3023, %v3024
          %v3026 = vsel %vm2962, %v2894, 0.0
          %v3027 = vadd.f32 %v3025, %v3026
          %v3028 = vsel %vm2962, %v2896, 0.0
          %v3029 = vadd.f32 %v3027, %v3028
          %v3030 = vsel %vm2962, %v2898, 0.0
          %v3031 = vadd.f32 %v3029, %v3030
          %v3032 = vsel %vm2962, %v2900, 0.0
          %v3033 = vadd.f32 %v3031, %v3032
          %v3034 = vsel %vm2962, %v2902, 0.0
          %v3035 = vadd.f32 %v3033, %v3034
          %v3036 = vsel %vm2962, %v2904, 0.0
          %v3037 = vadd.f32 %v3035, %v3036
          %v3038 = vsel %vm2962, %v2906, 0.0
          %v3039 = vadd.f32 %v3037, %v3038
          %v3040 = vsel %vm2962, %v2908, 0.0
          %v3041 = vadd.f32 %v3039, %v3040
          %v3042 = vsel %vm2962, %v2910, 0.0
          %v3043 = vadd.f32 %v3041, %v3042
          %v3044 = vsel %vm2962, %v2912, 0.0
          %v3045 = vadd.f32 %v3043, %v3044
          %v3046 = vsel %vm2962, %v2914, 0.0
          %v3047 = vadd.f32 %v3045, %v3046
          %v3048 = vsel %vm2962, %v2916, 0.0
          %v3049 = vadd.f32 %v3047, %v3048
          %v3050 = vsel %vm2962, %v2918, 0.0
          %v3051 = vadd.f32 %v3049, %v3050
          %v3052 = vsel %vm2962, %v2920, 0.0
          %v3053 = vadd.f32 %v3051, %v3052
          %v3054 = vsel %vm2962, %v2922, 0.0
          %v3055 = vadd.f32 %v3053, %v3054
          %v3056 = vsel %vm2962, %v2924, 0.0
          %v3057 = vadd.f32 %v3055, %v3056
          %v3058 = vsel %vm2962, %v2926, 0.0
          %v3059 = vadd.f32 %v3057, %v3058
          %v3060 = vsel %vm2962, %v2928, 0.0
          %v3061 = vadd.f32 %v3059, %v3060
          %v3062 = vsel %vm2962, %v2930, 0.0
          %v3063 = vadd.f32 %v3061, %v3062
          %v3064 = vsel %vm2962, %v2932, 0.0
          %v3065 = vadd.f32 %v3063, %v3064
          %v3066 = vsel %vm2962, %v2934, 0.0
          %v3067 = vadd.f32 %v3065, %v3066
          %v3068 = vsel %vm2962, %v2936, 0.0
          %v3069 = vadd.f32 %v3067, %v3068
          %v3070 = vsel %vm2962, %v2938, 0.0
          %v3071 = vadd.f32 %v3069, %v3070
          %v3072 = vsel %vm2962, %v2940, 0.0
          %v3073 = vadd.f32 %v3071, %v3072
          %v3074 = vsel %vm2962, %v2942, 0.0
          %v3075 = vadd.f32 %v3073, %v3074
          %v3076 = vsel %vm2962, %v2944, 0.0
          %v3077 = vadd.f32 %v3075, %v3076
          %v3078 = vsel %vm2962, %v2946, 0.0
          %v3079 = vadd.f32 %v3077, %v3078
          %v3080 = vsel %vm2962, %v2948, 0.0
          %v3081 = vadd.f32 %v3079, %v3080
          %v3082 = vsel %vm2962, %v2950, 0.0
          %v3083 = vadd.f32 %v3081, %v3082
          %v3084 = vsel %vm2962, %v2952, 0.0
          %v3085 = vadd.f32 %v3083, %v3084
          %v3086 = vsel %vm2962, %v2954, 0.0
          %v3087 = vadd.f32 %v3085, %v3086
          %v3088 = vsel %vm2962, %v2956, 0.0
          %v3089 = vadd.f32 %v3087, %v3088
          %3090 = vadd.xlane.f32.xlu0 %v3089
          %v3091 = vpop.xlane.xlu0 %3090
          %v3092 = vrot.slane %v3091, 4
          %v3093 = vadd.f32 %v3091, %v3092
          %v3094 = vrot.slane %v3093, 2
          %v3095 = vadd.f32 %v3093, %v3094
          %v3096 = vrot.slane %v3095, 1
          %v3097 = vadd.f32 %v3095, %v3096
          %s3098 = vtos %v3097
          %v3099 = vstv %s3098
          %v3100 = vadd.f32 %v2961, %v3099
          %vm3101 = vcmask 0
          %3102 = vst.msk [vmem:[#allocation4] sm:$0x1] %vm3101, %v3100
          %3103 = vst.msk [vmem:[#allocation3] sm:$0x1] %vm3101, %v2761
        $region60: #{mine_objective.1} parent=55 // pred_fallthru
          _
        %p3104 = scmp.gt.s32.totalorder %s2612, 1300
        // Predicated region
        $region61: #{mine_objective.1} parent=55 // pred_check
          %p3105 = pneg %p3104
        $region62: #{mine_objective.1} parent=55 // pred_check_branch
          %3107 = sbr.rel (%p3105) target = $region64
        $region63: #{mine_objective.1} parent=55 // pred_region
          %v3108 = vlaneseq
          %v3109 = vshrl.u32 %v3108, 7
          %v3110 = vadd.s32 %v3109, 8
          %v3111 = vadd.s32 %v3109, 16
          %v3112 = vadd.s32 %v3109, 24
          %v3113 = vadd.s32 %v3109, 32
          %v3114 = vadd.s32 %v3109, 40
          %v3115 = vadd.s32 %v3109, 48
          %v3116 = vadd.s32 %v3109, 56
          %v3117 = vadd.s32 %v3109, 64
          %v3118 = vadd.s32 %v3109, 72
          %v3119 = vadd.s32 %v3109, 80
          %v3120 = vadd.s32 %v3109, 88
          %v3121 = vadd.s32 %v3109, 96
          %v3122 = vadd.s32 %v3109, 104
          %v3123 = vadd.s32 %v3109, 112
          %v3124 = vadd.s32 %v3109, 120
          %v3125 = vadd.s32 %v3109, 128
          %v3126 = vadd.s32 %v3109, 136
          %v3127 = vadd.s32 %v3109, 144
          %v3128 = vadd.s32 %v3109, 152
          %v3129 = vadd.s32 %v3109, 160
          %v3130 = vadd.s32 %v3109, 168
          %v3131 = vadd.s32 %v3109, 176
          %v3132 = vadd.s32 %v3109, 184
          %v3133 = vadd.s32 %v3109, 192
          %v3134 = vadd.s32 %v3109, 200
          %v3135 = vadd.s32 %v3109, 208
          %v3136 = vadd.s32 %v3109, 216
          %v3137 = vadd.s32 %v3109, 224
          %v3138 = vadd.s32 %v3109, 232
          %v3139 = vadd.s32 %v3109, 240
          %v3140 = vadd.s32 %v3109, 248
          %v3141 = vadd.s32 %v3109, 256
          %v3142 = vadd.s32 %v3109, 264
          %v3143 = vadd.s32 %v3109, 272
          %v3144 = vadd.s32 %v3109, 280
          %v3145 = vadd.s32 %v3109, 288
          %v3146 = vadd.s32 %v3109, 296
          %v3147 = vadd.s32 %v3109, 304
          %v3148 = vadd.s32 %v3109, 312
          %v3149 = vadd.s32 %v3109, 320
          %v3150 = vadd.s32 %v3109, 328
          %v3151 = vadd.s32 %v3109, 336
          %v3152 = vadd.s32 %v3109, 344
          %v3153 = vadd.s32 %v3109, 352
          %v3154 = vadd.s32 %v3109, 360
          %v3155 = vadd.s32 %v3109, 368
          %v3156 = vadd.s32 %v3109, 376
          %v3157 = vadd.s32 %v3109, 384
          %v3158 = vadd.s32 %v3109, 392
          %v3159 = vadd.s32 %v3109, 400
          %v3160 = vadd.s32 %v3109, 408
          %v3161 = vadd.s32 %v3109, 416
          %v3162 = vadd.s32 %v3109, 424
          %v3163 = vadd.s32 %v3109, 432
          %v3164 = vadd.s32 %v3109, 440
          %v3165 = vadd.s32 %v3109, 448
          %v3166 = vadd.s32 %v3109, 456
          %v3167 = vadd.s32 %v3109, 464
          %v3168 = vadd.s32 %v3109, 472
          %v3169 = vadd.s32 %v3109, 480
          %v3170 = vadd.s32 %v3109, 488
          %v3171 = vadd.s32 %v3109, 496
          %v3172 = vadd.s32 %v3109, 504
          %v3173 = vstv %s491
          %v3174 = vadd.s32 %v3173, %v3109
          %v3175 = vadd.s32 %v3173, %v3110
          %v3176 = vadd.s32 %v3173, %v3111
          %v3177 = vadd.s32 %v3173, %v3112
          %v3178 = vadd.s32 %v3173, %v3113
          %v3179 = vadd.s32 %v3173, %v3114
          %v3180 = vadd.s32 %v3173, %v3115
          %v3181 = vadd.s32 %v3173, %v3116
          %v3182 = vadd.s32 %v3173, %v3117
          %v3183 = vadd.s32 %v3173, %v3118
          %v3184 = vadd.s32 %v3173, %v3119
          %v3185 = vadd.s32 %v3173, %v3120
          %v3186 = vadd.s32 %v3173, %v3121
          %v3187 = vadd.s32 %v3173, %v3122
          %v3188 = vadd.s32 %v3173, %v3123
          %v3189 = vadd.s32 %v3173, %v3124
          %v3190 = vadd.s32 %v3173, %v3125
          %v3191 = vadd.s32 %v3173, %v3126
          %v3192 = vadd.s32 %v3173, %v3127
          %v3193 = vadd.s32 %v3173, %v3128
          %v3194 = vadd.s32 %v3173, %v3129
          %v3195 = vadd.s32 %v3173, %v3130
          %v3196 = vadd.s32 %v3173, %v3131
          %v3197 = vadd.s32 %v3173, %v3132
          %v3198 = vadd.s32 %v3173, %v3133
          %v3199 = vadd.s32 %v3173, %v3134
          %v3200 = vadd.s32 %v3173, %v3135
          %v3201 = vadd.s32 %v3173, %v3136
          %v3202 = vadd.s32 %v3173, %v3137
          %v3203 = vadd.s32 %v3173, %v3138
          %v3204 = vadd.s32 %v3173, %v3139
          %v3205 = vadd.s32 %v3173, %v3140
          %v3206 = vadd.s32 %v3173, %v3141
          %v3207 = vadd.s32 %v3173, %v3142
          %v3208 = vadd.s32 %v3173, %v3143
          %v3209 = vadd.s32 %v3173, %v3144
          %v3210 = vadd.s32 %v3173, %v3145
          %v3211 = vadd.s32 %v3173, %v3146
          %v3212 = vadd.s32 %v3173, %v3147
          %v3213 = vadd.s32 %v3173, %v3148
          %v3214 = vadd.s32 %v3173, %v3149
          %v3215 = vadd.s32 %v3173, %v3150
          %v3216 = vadd.s32 %v3173, %v3151
          %v3217 = vadd.s32 %v3173, %v3152
          %v3218 = vadd.s32 %v3173, %v3153
          %v3219 = vadd.s32 %v3173, %v3154
          %v3220 = vadd.s32 %v3173, %v3155
          %v3221 = vadd.s32 %v3173, %v3156
          %v3222 = vadd.s32 %v3173, %v3157
          %v3223 = vadd.s32 %v3173, %v3158
          %v3224 = vadd.s32 %v3173, %v3159
          %v3225 = vadd.s32 %v3173, %v3160
          %v3226 = vadd.s32 %v3173, %v3161
          %v3227 = vadd.s32 %v3173, %v3162
          %v3228 = vadd.s32 %v3173, %v3163
          %v3229 = vadd.s32 %v3173, %v3164
          %v3230 = vadd.s32 %v3173, %v3165
          %v3231 = vadd.s32 %v3173, %v3166
          %v3232 = vadd.s32 %v3173, %v3167
          %v3233 = vadd.s32 %v3173, %v3168
          %v3234 = vadd.s32 %v3173, %v3169
          %v3235 = vadd.s32 %v3173, %v3170
          %v3236 = vadd.s32 %v3173, %v3171
          %v3237 = vadd.s32 %v3173, %v3172
          %vm3238 = vcmp.lt.s32.totalorder %v3174, 1300
          %vm3239 = vcmp.lt.s32.totalorder %v3175, 1300
          %vm3240 = vcmp.lt.s32.totalorder %v3176, 1300
          %vm3241 = vcmp.lt.s32.totalorder %v3177, 1300
          %vm3242 = vcmp.lt.s32.totalorder %v3178, 1300
          %vm3243 = vcmp.lt.s32.totalorder %v3179, 1300
          %vm3244 = vcmp.lt.s32.totalorder %v3180, 1300
          %vm3245 = vcmp.lt.s32.totalorder %v3181, 1300
          %vm3246 = vcmp.lt.s32.totalorder %v3182, 1300
          %vm3247 = vcmp.lt.s32.totalorder %v3183, 1300
          %vm3248 = vcmp.lt.s32.totalorder %v3184, 1300
          %vm3249 = vcmp.lt.s32.totalorder %v3185, 1300
          %vm3250 = vcmp.lt.s32.totalorder %v3186, 1300
          %vm3251 = vcmp.lt.s32.totalorder %v3187, 1300
          %vm3252 = vcmp.lt.s32.totalorder %v3188, 1300
          %vm3253 = vcmp.lt.s32.totalorder %v3189, 1300
          %vm3254 = vcmp.lt.s32.totalorder %v3190, 1300
          %vm3255 = vcmp.lt.s32.totalorder %v3191, 1300
          %vm3256 = vcmp.lt.s32.totalorder %v3192, 1300
          %vm3257 = vcmp.lt.s32.totalorder %v3193, 1300
          %vm3258 = vcmp.lt.s32.totalorder %v3194, 1300
          %vm3259 = vcmp.lt.s32.totalorder %v3195, 1300
          %vm3260 = vcmp.lt.s32.totalorder %v3196, 1300
          %vm3261 = vcmp.lt.s32.totalorder %v3197, 1300
          %vm3262 = vcmp.lt.s32.totalorder %v3198, 1300
          %vm3263 = vcmp.lt.s32.totalorder %v3199, 1300
          %vm3264 = vcmp.lt.s32.totalorder %v3200, 1300
          %vm3265 = vcmp.lt.s32.totalorder %v3201, 1300
          %vm3266 = vcmp.lt.s32.totalorder %v3202, 1300
          %vm3267 = vcmp.lt.s32.totalorder %v3203, 1300
          %vm3268 = vcmp.lt.s32.totalorder %v3204, 1300
          %vm3269 = vcmp.lt.s32.totalorder %v3205, 1300
          %vm3270 = vcmp.lt.s32.totalorder %v3206, 1300
          %vm3271 = vcmp.lt.s32.totalorder %v3207, 1300
          %vm3272 = vcmp.lt.s32.totalorder %v3208, 1300
          %vm3273 = vcmp.lt.s32.totalorder %v3209, 1300
          %vm3274 = vcmp.lt.s32.totalorder %v3210, 1300
          %vm3275 = vcmp.lt.s32.totalorder %v3211, 1300
          %vm3276 = vcmp.lt.s32.totalorder %v3212, 1300
          %vm3277 = vcmp.lt.s32.totalorder %v3213, 1300
          %vm3278 = vcmp.lt.s32.totalorder %v3214, 1300
          %vm3279 = vcmp.lt.s32.totalorder %v3215, 1300
          %vm3280 = vcmp.lt.s32.totalorder %v3216, 1300
          %vm3281 = vcmp.lt.s32.totalorder %v3217, 1300
          %vm3282 = vcmp.lt.s32.totalorder %v3218, 1300
          %vm3283 = vcmp.lt.s32.totalorder %v3219, 1300
          %vm3284 = vcmp.lt.s32.totalorder %v3220, 1300
          %vm3285 = vcmp.lt.s32.totalorder %v3221, 1300
          %vm3286 = vcmp.lt.s32.totalorder %v3222, 1300
          %vm3287 = vcmp.lt.s32.totalorder %v3223, 1300
          %vm3288 = vcmp.lt.s32.totalorder %v3224, 1300
          %vm3289 = vcmp.lt.s32.totalorder %v3225, 1300
          %vm3290 = vcmp.lt.s32.totalorder %v3226, 1300
          %vm3291 = vcmp.lt.s32.totalorder %v3227, 1300
          %vm3292 = vcmp.lt.s32.totalorder %v3228, 1300
          %vm3293 = vcmp.lt.s32.totalorder %v3229, 1300
          %vm3294 = vcmp.lt.s32.totalorder %v3230, 1300
          %vm3295 = vcmp.lt.s32.totalorder %v3231, 1300
          %vm3296 = vcmp.lt.s32.totalorder %v3232, 1300
          %vm3297 = vcmp.lt.s32.totalorder %v3233, 1300
          %vm3298 = vcmp.lt.s32.totalorder %v3234, 1300
          %vm3299 = vcmp.lt.s32.totalorder %v3235, 1300
          %vm3300 = vcmp.lt.s32.totalorder %v3236, 1300
          %vm3301 = vcmp.lt.s32.totalorder %v3237, 1300
          %v3302 = vsel %vm3238, 1, 0
          %v3303 = vsel %vm3239, 1, 0
          %v3304 = vsel %vm3240, 1, 0
          %v3305 = vsel %vm3241, 1, 0
          %v3306 = vsel %vm3242, 1, 0
          %v3307 = vsel %vm3243, 1, 0
          %v3308 = vsel %vm3244, 1, 0
          %v3309 = vsel %vm3245, 1, 0
          %v3310 = vsel %vm3246, 1, 0
          %v3311 = vsel %vm3247, 1, 0
          %v3312 = vsel %vm3248, 1, 0
          %v3313 = vsel %vm3249, 1, 0
          %v3314 = vsel %vm3250, 1, 0
          %v3315 = vsel %vm3251, 1, 0
          %v3316 = vsel %vm3252, 1, 0
          %v3317 = vsel %vm3253, 1, 0
          %v3318 = vsel %vm3254, 1, 0
          %v3319 = vsel %vm3255, 1, 0
          %v3320 = vsel %vm3256, 1, 0
          %v3321 = vsel %vm3257, 1, 0
          %v3322 = vsel %vm3258, 1, 0
          %v3323 = vsel %vm3259, 1, 0
          %v3324 = vsel %vm3260, 1, 0
          %v3325 = vsel %vm3261, 1, 0
          %v3326 = vsel %vm3262, 1, 0
          %v3327 = vsel %vm3263, 1, 0
          %v3328 = vsel %vm3264, 1, 0
          %v3329 = vsel %vm3265, 1, 0
          %v3330 = vsel %vm3266, 1, 0
          %v3331 = vsel %vm3267, 1, 0
          %v3332 = vsel %vm3268, 1, 0
          %v3333 = vsel %vm3269, 1, 0
          %v3334 = vsel %vm3270, 1, 0
          %v3335 = vsel %vm3271, 1, 0
          %v3336 = vsel %vm3272, 1, 0
          %v3337 = vsel %vm3273, 1, 0
          %v3338 = vsel %vm3274, 1, 0
          %v3339 = vsel %vm3275, 1, 0
          %v3340 = vsel %vm3276, 1, 0
          %v3341 = vsel %vm3277, 1, 0
          %v3342 = vsel %vm3278, 1, 0
          %v3343 = vsel %vm3279, 1, 0
          %v3344 = vsel %vm3280, 1, 0
          %v3345 = vsel %vm3281, 1, 0
          %v3346 = vsel %vm3282, 1, 0
          %v3347 = vsel %vm3283, 1, 0
          %v3348 = vsel %vm3284, 1, 0
          %v3349 = vsel %vm3285, 1, 0
          %v3350 = vsel %vm3286, 1, 0
          %v3351 = vsel %vm3287, 1, 0
          %v3352 = vsel %vm3288, 1, 0
          %v3353 = vsel %vm3289, 1, 0
          %v3354 = vsel %vm3290, 1, 0
          %v3355 = vsel %vm3291, 1, 0
          %v3356 = vsel %vm3292, 1, 0
          %v3357 = vsel %vm3293, 1, 0
          %v3358 = vsel %vm3294, 1, 0
          %v3359 = vsel %vm3295, 1, 0
          %v3360 = vsel %vm3296, 1, 0
          %v3361 = vsel %vm3297, 1, 0
          %v3362 = vsel %vm3298, 1, 0
          %v3363 = vsel %vm3299, 1, 0
          %v3364 = vsel %vm3300, 1, 0
          %v3365 = vsel %vm3301, 1, 0
          %vm3366 = vcmp.eq.s32.totalorder %v3302, 1
          %vm3367 = vcmp.eq.s32.totalorder %v3303, 1
          %vm3368 = vcmp.eq.s32.totalorder %v3304, 1
          %vm3369 = vcmp.eq.s32.totalorder %v3305, 1
          %vm3370 = vcmp.eq.s32.totalorder %v3306, 1
          %vm3371 = vcmp.eq.s32.totalorder %v3307, 1
          %vm3372 = vcmp.eq.s32.totalorder %v3308, 1
          %vm3373 = vcmp.eq.s32.totalorder %v3309, 1
          %vm3374 = vcmp.eq.s32.totalorder %v3310, 1
          %vm3375 = vcmp.eq.s32.totalorder %v3311, 1
          %vm3376 = vcmp.eq.s32.totalorder %v3312, 1
          %vm3377 = vcmp.eq.s32.totalorder %v3313, 1
          %vm3378 = vcmp.eq.s32.totalorder %v3314, 1
          %vm3379 = vcmp.eq.s32.totalorder %v3315, 1
          %vm3380 = vcmp.eq.s32.totalorder %v3316, 1
          %vm3381 = vcmp.eq.s32.totalorder %v3317, 1
          %vm3382 = vcmp.eq.s32.totalorder %v3318, 1
          %vm3383 = vcmp.eq.s32.totalorder %v3319, 1
          %vm3384 = vcmp.eq.s32.totalorder %v3320, 1
          %vm3385 = vcmp.eq.s32.totalorder %v3321, 1
          %vm3386 = vcmp.eq.s32.totalorder %v3322, 1
          %vm3387 = vcmp.eq.s32.totalorder %v3323, 1
          %vm3388 = vcmp.eq.s32.totalorder %v3324, 1
          %vm3389 = vcmp.eq.s32.totalorder %v3325, 1
          %vm3390 = vcmp.eq.s32.totalorder %v3326, 1
          %vm3391 = vcmp.eq.s32.totalorder %v3327, 1
          %vm3392 = vcmp.eq.s32.totalorder %v3328, 1
          %vm3393 = vcmp.eq.s32.totalorder %v3329, 1
          %vm3394 = vcmp.eq.s32.totalorder %v3330, 1
          %vm3395 = vcmp.eq.s32.totalorder %v3331, 1
          %vm3396 = vcmp.eq.s32.totalorder %v3332, 1
          %vm3397 = vcmp.eq.s32.totalorder %v3333, 1
          %vm3398 = vcmp.eq.s32.totalorder %v3334, 1
          %vm3399 = vcmp.eq.s32.totalorder %v3335, 1
          %vm3400 = vcmp.eq.s32.totalorder %v3336, 1
          %vm3401 = vcmp.eq.s32.totalorder %v3337, 1
          %vm3402 = vcmp.eq.s32.totalorder %v3338, 1
          %vm3403 = vcmp.eq.s32.totalorder %v3339, 1
          %vm3404 = vcmp.eq.s32.totalorder %v3340, 1
          %vm3405 = vcmp.eq.s32.totalorder %v3341, 1
          %vm3406 = vcmp.eq.s32.totalorder %v3342, 1
          %vm3407 = vcmp.eq.s32.totalorder %v3343, 1
          %vm3408 = vcmp.eq.s32.totalorder %v3344, 1
          %vm3409 = vcmp.eq.s32.totalorder %v3345, 1
          %vm3410 = vcmp.eq.s32.totalorder %v3346, 1
          %vm3411 = vcmp.eq.s32.totalorder %v3347, 1
          %vm3412 = vcmp.eq.s32.totalorder %v3348, 1
          %vm3413 = vcmp.eq.s32.totalorder %v3349, 1
          %vm3414 = vcmp.eq.s32.totalorder %v3350, 1
          %vm3415 = vcmp.eq.s32.totalorder %v3351, 1
          %vm3416 = vcmp.eq.s32.totalorder %v3352, 1
          %vm3417 = vcmp.eq.s32.totalorder %v3353, 1
          %vm3418 = vcmp.eq.s32.totalorder %v3354, 1
          %vm3419 = vcmp.eq.s32.totalorder %v3355, 1
          %vm3420 = vcmp.eq.s32.totalorder %v3356, 1
          %vm3421 = vcmp.eq.s32.totalorder %v3357, 1
          %vm3422 = vcmp.eq.s32.totalorder %v3358, 1
          %vm3423 = vcmp.eq.s32.totalorder %v3359, 1
          %vm3424 = vcmp.eq.s32.totalorder %v3360, 1
          %vm3425 = vcmp.eq.s32.totalorder %v3361, 1
          %vm3426 = vcmp.eq.s32.totalorder %v3362, 1
          %vm3427 = vcmp.eq.s32.totalorder %v3363, 1
          %vm3428 = vcmp.eq.s32.totalorder %v3364, 1
          %vm3429 = vcmp.eq.s32.totalorder %v3365, 1
          %v3430 = vsel %vm3366, %v2161, 0.0
          %v3431 = vsel %vm3367, %v2162, 0.0
          %v3432 = vsel %vm3368, %v2163, 0.0
          %v3433 = vsel %vm3369, %v2164, 0.0
          %v3434 = vsel %vm3370, %v2165, 0.0
          %v3435 = vsel %vm3371, %v2166, 0.0
          %v3436 = vsel %vm3372, %v2167, 0.0
          %v3437 = vsel %vm3373, %v2168, 0.0
          %v3438 = vsel %vm3374, %v2169, 0.0
          %v3439 = vsel %vm3375, %v2170, 0.0
          %v3440 = vsel %vm3376, %v2171, 0.0
          %v3441 = vsel %vm3377, %v2172, 0.0
          %v3442 = vsel %vm3378, %v2173, 0.0
          %v3443 = vsel %vm3379, %v2174, 0.0
          %v3444 = vsel %vm3380, %v2175, 0.0
          %v3445 = vsel %vm3381, %v2176, 0.0
          %v3446 = vsel %vm3382, %v2177, 0.0
          %v3447 = vsel %vm3383, %v2178, 0.0
          %v3448 = vsel %vm3384, %v2179, 0.0
          %v3449 = vsel %vm3385, %v2180, 0.0
          %v3450 = vsel %vm3386, %v2181, 0.0
          %v3451 = vsel %vm3387, %v2182, 0.0
          %v3452 = vsel %vm3388, %v2183, 0.0
          %v3453 = vsel %vm3389, %v2184, 0.0
          %v3454 = vsel %vm3390, %v2185, 0.0
          %v3455 = vsel %vm3391, %v2186, 0.0
          %v3456 = vsel %vm3392, %v2187, 0.0
          %v3457 = vsel %vm3393, %v2188, 0.0
          %v3458 = vsel %vm3394, %v2189, 0.0
          %v3459 = vsel %vm3395, %v2190, 0.0
          %v3460 = vsel %vm3396, %v2191, 0.0
          %v3461 = vsel %vm3397, %v2192, 0.0
          %v3462 = vsel %vm3398, %v2193, 0.0
          %v3463 = vsel %vm3399, %v2194, 0.0
          %v3464 = vsel %vm3400, %v2195, 0.0
          %v3465 = vsel %vm3401, %v2196, 0.0
          %v3466 = vsel %vm3402, %v2197, 0.0
          %v3467 = vsel %vm3403, %v2198, 0.0
          %v3468 = vsel %vm3404, %v2199, 0.0
          %v3469 = vsel %vm3405, %v2200, 0.0
          %v3470 = vsel %vm3406, %v2201, 0.0
          %v3471 = vsel %vm3407, %v2202, 0.0
          %v3472 = vsel %vm3408, %v2203, 0.0
          %v3473 = vsel %vm3409, %v2204, 0.0
          %v3474 = vsel %vm3410, %v2205, 0.0
          %v3475 = vsel %vm3411, %v2206, 0.0
          %v3476 = vsel %vm3412, %v2207, 0.0
          %v3477 = vsel %vm3413, %v2208, 0.0
          %v3478 = vsel %vm3414, %v2209, 0.0
          %v3479 = vsel %vm3415, %v2210, 0.0
          %v3480 = vsel %vm3416, %v2211, 0.0
          %v3481 = vsel %vm3417, %v2212, 0.0
          %v3482 = vsel %vm3418, %v2213, 0.0
          %v3483 = vsel %vm3419, %v2214, 0.0
          %v3484 = vsel %vm3420, %v2215, 0.0
          %v3485 = vsel %vm3421, %v2216, 0.0
          %v3486 = vsel %vm3422, %v2217, 0.0
          %v3487 = vsel %vm3423, %v2218, 0.0
          %v3488 = vsel %vm3424, %v2219, 0.0
          %v3489 = vsel %vm3425, %v2220, 0.0
          %v3490 = vsel %vm3426, %v2221, 0.0
          %v3491 = vsel %vm3427, %v2222, 0.0
          %v3492 = vsel %vm3428, %v2223, 0.0
          %v3493 = vsel %vm3429, %v2224, 0.0
          %v3494 = vsel %vm3238, %v2485, -1e+30
          %v3495 = vsel %vm3239, %v2487, -1e+30
          %v3496 = vsel %vm3240, %v2489, -1e+30
          %v3497 = vsel %vm3241, %v2491, -1e+30
          %v3498 = vsel %vm3242, %v2493, -1e+30
          %v3499 = vsel %vm3243, %v2495, -1e+30
          %v3500 = vsel %vm3244, %v2497, -1e+30
          %v3501 = vsel %vm3245, %v2499, -1e+30
          %v3502 = vsel %vm3246, %v2501, -1e+30
          %v3503 = vsel %vm3247, %v2503, -1e+30
          %v3504 = vsel %vm3248, %v2505, -1e+30
          %v3505 = vsel %vm3249, %v2507, -1e+30
          %v3506 = vsel %vm3250, %v2509, -1e+30
          %v3507 = vsel %vm3251, %v2511, -1e+30
          %v3508 = vsel %vm3252, %v2513, -1e+30
          %v3509 = vsel %vm3253, %v2515, -1e+30
          %v3510 = vsel %vm3254, %v2517, -1e+30
          %v3511 = vsel %vm3255, %v2519, -1e+30
          %v3512 = vsel %vm3256, %v2521, -1e+30
          %v3513 = vsel %vm3257, %v2523, -1e+30
          %v3514 = vsel %vm3258, %v2525, -1e+30
          %v3515 = vsel %vm3259, %v2527, -1e+30
          %v3516 = vsel %vm3260, %v2529, -1e+30
          %v3517 = vsel %vm3261, %v2531, -1e+30
          %v3518 = vsel %vm3262, %v2533, -1e+30
          %v3519 = vsel %vm3263, %v2535, -1e+30
          %v3520 = vsel %vm3264, %v2537, -1e+30
          %v3521 = vsel %vm3265, %v2539, -1e+30
          %v3522 = vsel %vm3266, %v2541, -1e+30
          %v3523 = vsel %vm3267, %v2543, -1e+30
          %v3524 = vsel %vm3268, %v2545, -1e+30
          %v3525 = vsel %vm3269, %v2547, -1e+30
          %v3526 = vsel %vm3270, %v2549, -1e+30
          %v3527 = vsel %vm3271, %v2551, -1e+30
          %v3528 = vsel %vm3272, %v2553, -1e+30
          %v3529 = vsel %vm3273, %v2555, -1e+30
          %v3530 = vsel %vm3274, %v2557, -1e+30
          %v3531 = vsel %vm3275, %v2559, -1e+30
          %v3532 = vsel %vm3276, %v2561, -1e+30
          %v3533 = vsel %vm3277, %v2563, -1e+30
          %v3534 = vsel %vm3278, %v2565, -1e+30
          %v3535 = vsel %vm3279, %v2567, -1e+30
          %v3536 = vsel %vm3280, %v2569, -1e+30
          %v3537 = vsel %vm3281, %v2571, -1e+30
          %v3538 = vsel %vm3282, %v2573, -1e+30
          %v3539 = vsel %vm3283, %v2575, -1e+30
          %v3540 = vsel %vm3284, %v2577, -1e+30
          %v3541 = vsel %vm3285, %v2579, -1e+30
          %v3542 = vsel %vm3286, %v2581, -1e+30
          %v3543 = vsel %vm3287, %v2583, -1e+30
          %v3544 = vsel %vm3288, %v2585, -1e+30
          %v3545 = vsel %vm3289, %v2587, -1e+30
          %v3546 = vsel %vm3290, %v2589, -1e+30
          %v3547 = vsel %vm3291, %v2591, -1e+30
          %v3548 = vsel %vm3292, %v2593, -1e+30
          %v3549 = vsel %vm3293, %v2595, -1e+30
          %v3550 = vsel %vm3294, %v2597, -1e+30
          %v3551 = vsel %vm3295, %v2599, -1e+30
          %v3552 = vsel %vm3296, %v2601, -1e+30
          %v3553 = vsel %vm3297, %v2603, -1e+30
          %v3554 = vsel %vm3298, %v2605, -1e+30
          %v3555 = vsel %vm3299, %v2607, -1e+30
          %v3556 = vsel %vm3300, %v2609, -1e+30
          %v3557 = vsel %vm3301, %v2611, -1e+30
          %v3558 = vld [vmem:[#allocation2] sm:$0x1]
          %v3559 = vadd.f32 %v3430, %v3431
          %v3560 = vadd.f32 %v3559, %v3432
          %v3561 = vadd.f32 %v3560, %v3433
          %v3562 = vadd.f32 %v3561, %v3434
          %v3563 = vadd.f32 %v3562, %v3435
          %v3564 = vadd.f32 %v3563, %v3436
          %v3565 = vadd.f32 %v3564, %v3437
          %v3566 = vadd.f32 %v3565, %v3438
          %v3567 = vadd.f32 %v3566, %v3439
          %v3568 = vadd.f32 %v3567, %v3440
          %v3569 = vadd.f32 %v3568, %v3441
          %v3570 = vadd.f32 %v3569, %v3442
          %v3571 = vadd.f32 %v3570, %v3443
          %v3572 = vadd.f32 %v3571, %v3444
          %v3573 = vadd.f32 %v3572, %v3445
          %v3574 = vadd.f32 %v3573, %v3446
          %v3575 = vadd.f32 %v3574, %v3447
          %v3576 = vadd.f32 %v3575, %v3448
          %v3577 = vadd.f32 %v3576, %v3449
          %v3578 = vadd.f32 %v3577, %v3450
          %v3579 = vadd.f32 %v3578, %v3451
          %v3580 = vadd.f32 %v3579, %v3452
          %v3581 = vadd.f32 %v3580, %v3453
          %v3582 = vadd.f32 %v3581, %v3454
          %v3583 = vadd.f32 %v3582, %v3455
          %v3584 = vadd.f32 %v3583, %v3456
          %v3585 = vadd.f32 %v3584, %v3457
          %v3586 = vadd.f32 %v3585, %v3458
          %v3587 = vadd.f32 %v3586, %v3459
          %v3588 = vadd.f32 %v3587, %v3460
          %v3589 = vadd.f32 %v3588, %v3461
          %v3590 = vadd.f32 %v3589, %v3462
          %v3591 = vadd.f32 %v3590, %v3463
          %v3592 = vadd.f32 %v3591, %v3464
          %v3593 = vadd.f32 %v3592, %v3465
          %v3594 = vadd.f32 %v3593, %v3466
          %v3595 = vadd.f32 %v3594, %v3467
          %v3596 = vadd.f32 %v3595, %v3468
          %v3597 = vadd.f32 %v3596, %v3469
          %v3598 = vadd.f32 %v3597, %v3470
          %v3599 = vadd.f32 %v3598, %v3471
          %v3600 = vadd.f32 %v3599, %v3472
          %v3601 = vadd.f32 %v3600, %v3473
          %v3602 = vadd.f32 %v3601, %v3474
          %v3603 = vadd.f32 %v3602, %v3475
          %v3604 = vadd.f32 %v3603, %v3476
          %v3605 = vadd.f32 %v3604, %v3477
          %v3606 = vadd.f32 %v3605, %v3478
          %v3607 = vadd.f32 %v3606, %v3479
          %v3608 = vadd.f32 %v3607, %v3480
          %v3609 = vadd.f32 %v3608, %v3481
          %v3610 = vadd.f32 %v3609, %v3482
          %v3611 = vadd.f32 %v3610, %v3483
          %v3612 = vadd.f32 %v3611, %v3484
          %v3613 = vadd.f32 %v3612, %v3485
          %v3614 = vadd.f32 %v3613, %v3486
          %v3615 = vadd.f32 %v3614, %v3487
          %v3616 = vadd.f32 %v3615, %v3488
          %v3617 = vadd.f32 %v3616, %v3489
          %v3618 = vadd.f32 %v3617, %v3490
          %v3619 = vadd.f32 %v3618, %v3491
          %v3620 = vadd.f32 %v3619, %v3492
          %v3621 = vadd.f32 %v3620, %v3493
          %v3622 = vrot.slane %v3621, 4
          %v3623 = vadd.f32 %v3621, %v3622
          %v3624 = vrot.slane %v3623, 2
          %v3625 = vadd.f32 %v3623, %v3624
          %v3626 = vrot.slane %v3625, 1
          %v3627 = vadd.f32 %v3625, %v3626
          %v3628 = vadd.f32 %v3558, %v3627
          %3629 = vst [vmem:[#allocation2] sm:$0x1] %v3628
          %v3630 = vmax.f32 %v3494, %v3498
          %v3631 = vmax.f32 %v3495, %v3499
          %v3632 = vmax.f32 %v3496, %v3500
          %v3633 = vmax.f32 %v3497, %v3501
          %v3634 = vmax.f32 %v3630, %v3502
          %v3635 = vmax.f32 %v3631, %v3503
          %v3636 = vmax.f32 %v3632, %v3504
          %v3637 = vmax.f32 %v3633, %v3505
          %v3638 = vmax.f32 %v3634, %v3506
          %v3639 = vmax.f32 %v3635, %v3507
          %v3640 = vmax.f32 %v3636, %v3508
          %v3641 = vmax.f32 %v3637, %v3509
          %v3642 = vmax.f32 %v3638, %v3510
          %v3643 = vmax.f32 %v3639, %v3511
          %v3644 = vmax.f32 %v3640, %v3512
          %v3645 = vmax.f32 %v3641, %v3513
          %v3646 = vmax.f32 %v3642, %v3514
          %v3647 = vmax.f32 %v3643, %v3515
          %v3648 = vmax.f32 %v3644, %v3516
          %v3649 = vmax.f32 %v3645, %v3517
          %v3650 = vmax.f32 %v3646, %v3518
          %v3651 = vmax.f32 %v3647, %v3519
          %v3652 = vmax.f32 %v3648, %v3520
          %v3653 = vmax.f32 %v3649, %v3521
          %v3654 = vmax.f32 %v3650, %v3522
          %v3655 = vmax.f32 %v3651, %v3523
          %v3656 = vmax.f32 %v3652, %v3524
          %v3657 = vmax.f32 %v3653, %v3525
          %v3658 = vmax.f32 %v3654, %v3526
          %v3659 = vmax.f32 %v3655, %v3527
          %v3660 = vmax.f32 %v3656, %v3528
          %v3661 = vmax.f32 %v3657, %v3529
          %v3662 = vmax.f32 %v3658, %v3530
          %v3663 = vmax.f32 %v3659, %v3531
          %v3664 = vmax.f32 %v3660, %v3532
          %v3665 = vmax.f32 %v3661, %v3533
          %v3666 = vmax.f32 %v3662, %v3534
          %v3667 = vmax.f32 %v3663, %v3535
          %v3668 = vmax.f32 %v3664, %v3536
          %v3669 = vmax.f32 %v3665, %v3537
          %v3670 = vmax.f32 %v3666, %v3538
          %v3671 = vmax.f32 %v3667, %v3539
          %v3672 = vmax.f32 %v3668, %v3540
          %v3673 = vmax.f32 %v3669, %v3541
          %v3674 = vmax.f32 %v3670, %v3542
          %v3675 = vmax.f32 %v3671, %v3543
          %v3676 = vmax.f32 %v3672, %v3544
          %v3677 = vmax.f32 %v3673, %v3545
          %v3678 = vmax.f32 %v3674, %v3546
          %v3679 = vmax.f32 %v3675, %v3547
          %v3680 = vmax.f32 %v3676, %v3548
          %v3681 = vmax.f32 %v3677, %v3549
          %v3682 = vmax.f32 %v3678, %v3550
          %v3683 = vmax.f32 %v3679, %v3551
          %v3684 = vmax.f32 %v3680, %v3552
          %v3685 = vmax.f32 %v3681, %v3553
          %v3686 = vmax.f32 %v3682, %v3554
          %v3687 = vmax.f32 %v3683, %v3555
          %v3688 = vmax.f32 %v3684, %v3556
          %v3689 = vmax.f32 %v3685, %v3557
          %v3690 = vmax.f32 %v3686, %v3687
          %v3691 = vmax.f32 %v3688, %v3689
          %v3692 = vmax.f32 %v3690, %v3691
          %v3693 = vrot.slane %v3692, 4
          %v3694 = vmax.f32 %v3692, %v3693
          %v3695 = vrot.slane %v3694, 2
          %v3696 = vmax.f32 %v3694, %v3695
          %v3697 = vrot.slane %v3696, 1
          %v3698 = vmax.f32 %v3696, %v3697
          %s3699 = vtos %v3698
          %v3700 = vstv %s3699
          %v3701 = vld [vmem:[#allocation3] sm:$0x1]
          %v3702 = vmax.f32 %v3701, %v3700
          %v3704 = vperm.slane %v3702, 0
          %v3706 = vsub.f32 %v3494, %v3704
          %v3707 = vsub.f32 %v3495, %v3704
          %v3708 = vsub.f32 %v3496, %v3704
          %v3709 = vsub.f32 %v3497, %v3704
          %v3710 = vsub.f32 %v3498, %v3704
          %v3711 = vsub.f32 %v3499, %v3704
          %v3712 = vsub.f32 %v3500, %v3704
          %v3713 = vsub.f32 %v3501, %v3704
          %v3714 = vsub.f32 %v3502, %v3704
          %v3715 = vsub.f32 %v3503, %v3704
          %v3716 = vsub.f32 %v3504, %v3704
          %v3717 = vsub.f32 %v3505, %v3704
          %v3718 = vsub.f32 %v3506, %v3704
          %v3719 = vsub.f32 %v3507, %v3704
          %v3720 = vsub.f32 %v3508, %v3704
          %v3721 = vsub.f32 %v3509, %v3704
          %v3722 = vsub.f32 %v3510, %v3704
          %v3723 = vsub.f32 %v3511, %v3704
          %v3724 = vsub.f32 %v3512, %v3704
          %v3725 = vsub.f32 %v3513, %v3704
          %v3726 = vsub.f32 %v3514, %v3704
          %v3727 = vsub.f32 %v3515, %v3704
          %v3728 = vsub.f32 %v3516, %v3704
          %v3729 = vsub.f32 %v3517, %v3704
          %v3730 = vsub.f32 %v3518, %v3704
          %v3731 = vsub.f32 %v3519, %v3704
          %v3732 = vsub.f32 %v3520, %v3704
          %v3733 = vsub.f32 %v3521, %v3704
          %v3734 = vsub.f32 %v3522, %v3704
          %v3735 = vsub.f32 %v3523, %v3704
          %v3736 = vsub.f32 %v3524, %v3704
          %v3737 = vsub.f32 %v3525, %v3704
          %v3738 = vsub.f32 %v3526, %v3704
          %v3739 = vsub.f32 %v3527, %v3704
          %v3740 = vsub.f32 %v3528, %v3704
          %v3741 = vsub.f32 %v3529, %v3704
          %v3742 = vsub.f32 %v3530, %v3704
          %v3743 = vsub.f32 %v3531, %v3704
          %v3744 = vsub.f32 %v3532, %v3704
          %v3745 = vsub.f32 %v3533, %v3704
          %v3746 = vsub.f32 %v3534, %v3704
          %v3747 = vsub.f32 %v3535, %v3704
          %v3748 = vsub.f32 %v3536, %v3704
          %v3749 = vsub.f32 %v3537, %v3704
          %v3750 = vsub.f32 %v3538, %v3704
          %v3751 = vsub.f32 %v3539, %v3704
          %v3752 = vsub.f32 %v3540, %v3704
          %v3753 = vsub.f32 %v3541, %v3704
          %v3754 = vsub.f32 %v3542, %v3704
          %v3755 = vsub.f32 %v3543, %v3704
          %v3756 = vsub.f32 %v3544, %v3704
          %v3757 = vsub.f32 %v3545, %v3704
          %v3758 = vsub.f32 %v3546, %v3704
          %v3759 = vsub.f32 %v3547, %v3704
          %v3760 = vsub.f32 %v3548, %v3704
          %v3761 = vsub.f32 %v3549, %v3704
          %v3762 = vsub.f32 %v3550, %v3704
          %v3763 = vsub.f32 %v3551, %v3704
          %v3764 = vsub.f32 %v3552, %v3704
          %v3765 = vsub.f32 %v3553, %v3704
          %v3766 = vsub.f32 %v3554, %v3704
          %v3767 = vsub.f32 %v3555, %v3704
          %v3768 = vsub.f32 %v3556, %v3704
          %v3769 = vsub.f32 %v3557, %v3704
          %v3770 = vmul.f32 %v3706, 1.442695
          %v3771 = vpow.pop %v3770
          %v3772 = vmul.f32 %v3707, 1.442695
          %v3773 = vpow.pop %v3772
          %v3774 = vmul.f32 %v3708, 1.442695
          %v3775 = vpow.pop %v3774
          %v3776 = vmul.f32 %v3709, 1.442695
          %v3777 = vpow.pop %v3776
          %v3778 = vmul.f32 %v3710, 1.442695
          %v3779 = vpow.pop %v3778
          %v3780 = vmul.f32 %v3711, 1.442695
          %v3781 = vpow.pop %v3780
          %v3782 = vmul.f32 %v3712, 1.442695
          %v3783 = vpow.pop %v3782
          %v3784 = vmul.f32 %v3713, 1.442695
          %v3785 = vpow.pop %v3784
          %v3786 = vmul.f32 %v3714, 1.442695
          %v3787 = vpow.pop %v3786
          %v3788 = vmul.f32 %v3715, 1.442695
          %v3789 = vpow.pop %v3788
          %v3790 = vmul.f32 %v3716, 1.442695
          %v3791 = vpow.pop %v3790
          %v3792 = vmul.f32 %v3717, 1.442695
          %v3793 = vpow.pop %v3792
          %v3794 = vmul.f32 %v3718, 1.442695
          %v3795 = vpow.pop %v3794
          %v3796 = vmul.f32 %v3719, 1.442695
          %v3797 = vpow.pop %v3796
          %v3798 = vmul.f32 %v3720, 1.442695
          %v3799 = vpow.pop %v3798
          %v3800 = vmul.f32 %v3721, 1.442695
          %v3801 = vpow.pop %v3800
          %v3802 = vmul.f32 %v3722, 1.442695
          %v3803 = vpow.pop %v3802
          %v3804 = vmul.f32 %v3723, 1.442695
          %v3805 = vpow.pop %v3804
          %v3806 = vmul.f32 %v3724, 1.442695
          %v3807 = vpow.pop %v3806
          %v3808 = vmul.f32 %v3725, 1.442695
          %v3809 = vpow.pop %v3808
          %v3810 = vmul.f32 %v3726, 1.442695
          %v3811 = vpow.pop %v3810
          %v3812 = vmul.f32 %v3727, 1.442695
          %v3813 = vpow.pop %v3812
          %v3814 = vmul.f32 %v3728, 1.442695
          %v3815 = vpow.pop %v3814
          %v3816 = vmul.f32 %v3729, 1.442695
          %v3817 = vpow.pop %v3816
          %v3818 = vmul.f32 %v3730, 1.442695
          %v3819 = vpow.pop %v3818
          %v3820 = vmul.f32 %v3731, 1.442695
          %v3821 = vpow.pop %v3820
          %v3822 = vmul.f32 %v3732, 1.442695
          %v3823 = vpow.pop %v3822
          %v3824 = vmul.f32 %v3733, 1.442695
          %v3825 = vpow.pop %v3824
          %v3826 = vmul.f32 %v3734, 1.442695
          %v3827 = vpow.pop %v3826
          %v3828 = vmul.f32 %v3735, 1.442695
          %v3829 = vpow.pop %v3828
          %v3830 = vmul.f32 %v3736, 1.442695
          %v3831 = vpow.pop %v3830
          %v3832 = vmul.f32 %v3737, 1.442695
          %v3833 = vpow.pop %v3832
          %v3834 = vmul.f32 %v3738, 1.442695
          %v3835 = vpow.pop %v3834
          %v3836 = vmul.f32 %v3739, 1.442695
          %v3837 = vpow.pop %v3836
          %v3838 = vmul.f32 %v3740, 1.442695
          %v3839 = vpow.pop %v3838
          %v3840 = vmul.f32 %v3741, 1.442695
          %v3841 = vpow.pop %v3840
          %v3842 = vmul.f32 %v3742, 1.442695
          %v3843 = vpow.pop %v3842
          %v3844 = vmul.f32 %v3743, 1.442695
          %v3845 = vpow.pop %v3844
          %v3846 = vmul.f32 %v3744, 1.442695
          %v3847 = vpow.pop %v3846
          %v3848 = vmul.f32 %v3745, 1.442695
          %v3849 = vpow.pop %v3848
          %v3850 = vmul.f32 %v3746, 1.442695
          %v3851 = vpow.pop %v3850
          %v3852 = vmul.f32 %v3747, 1.442695
          %v3853 = vpow.pop %v3852
          %v3854 = vmul.f32 %v3748, 1.442695
          %v3855 = vpow.pop %v3854
          %v3856 = vmul.f32 %v3749, 1.442695
          %v3857 = vpow.pop %v3856
          %v3858 = vmul.f32 %v3750, 1.442695
          %v3859 = vpow.pop %v3858
          %v3860 = vmul.f32 %v3751, 1.442695
          %v3861 = vpow.pop %v3860
          %v3862 = vmul.f32 %v3752, 1.442695
          %v3863 = vpow.pop %v3862
          %v3864 = vmul.f32 %v3753, 1.442695
          %v3865 = vpow.pop %v3864
          %v3866 = vmul.f32 %v3754, 1.442695
          %v3867 = vpow.pop %v3866
          %v3868 = vmul.f32 %v3755, 1.442695
          %v3869 = vpow.pop %v3868
          %v3870 = vmul.f32 %v3756, 1.442695
          %v3871 = vpow.pop %v3870
          %v3872 = vmul.f32 %v3757, 1.442695
          %v3873 = vpow.pop %v3872
          %v3874 = vmul.f32 %v3758, 1.442695
          %v3875 = vpow.pop %v3874
          %v3876 = vmul.f32 %v3759, 1.442695
          %v3877 = vpow.pop %v3876
          %v3878 = vmul.f32 %v3760, 1.442695
          %v3879 = vpow.pop %v3878
          %v3880 = vmul.f32 %v3761, 1.442695
          %v3881 = vpow.pop %v3880
          %v3882 = vmul.f32 %v3762, 1.442695
          %v3883 = vpow.pop %v3882
          %v3884 = vmul.f32 %v3763, 1.442695
          %v3885 = vpow.pop %v3884
          %v3886 = vmul.f32 %v3764, 1.442695
          %v3887 = vpow.pop %v3886
          %v3888 = vmul.f32 %v3765, 1.442695
          %v3889 = vpow.pop %v3888
          %v3890 = vmul.f32 %v3766, 1.442695
          %v3891 = vpow.pop %v3890
          %v3892 = vmul.f32 %v3767, 1.442695
          %v3893 = vpow.pop %v3892
          %v3894 = vmul.f32 %v3768, 1.442695
          %v3895 = vpow.pop %v3894
          %v3896 = vmul.f32 %v3769, 1.442695
          %v3897 = vpow.pop %v3896
          %v3898 = vld [vmem:[#allocation4] sm:$0x1]
          %v3899 = vsub.f32 %v3701, %v3702
          %v3900 = vmul.f32 %v3899, 1.442695
          %v3901 = vpow.pop %v3900
          %v3902 = vmul.f32 %v3898, %v3901
          %vm3903 = vcmask 7168
          %v3904 = vsel %vm3903, %v3771, 0.0
          %v3905 = vsel %vm3903, %v3773, 0.0
          %v3906 = vadd.f32 %v3904, %v3905
          %v3907 = vsel %vm3903, %v3775, 0.0
          %v3908 = vadd.f32 %v3906, %v3907
          %v3909 = vsel %vm3903, %v3777, 0.0
          %v3910 = vadd.f32 %v3908, %v3909
          %v3911 = vsel %vm3903, %v3779, 0.0
          %v3912 = vadd.f32 %v3910, %v3911
          %v3913 = vsel %vm3903, %v3781, 0.0
          %v3914 = vadd.f32 %v3912, %v3913
          %v3915 = vsel %vm3903, %v3783, 0.0
          %v3916 = vadd.f32 %v3914, %v3915
          %v3917 = vsel %vm3903, %v3785, 0.0
          %v3918 = vadd.f32 %v3916, %v3917
          %v3919 = vsel %vm3903, %v3787, 0.0
          %v3920 = vadd.f32 %v3918, %v3919
          %v3921 = vsel %vm3903, %v3789, 0.0
          %v3922 = vadd.f32 %v3920, %v3921
          %v3923 = vsel %vm3903, %v3791, 0.0
          %v3924 = vadd.f32 %v3922, %v3923
          %v3925 = vsel %vm3903, %v3793, 0.0
          %v3926 = vadd.f32 %v3924, %v3925
          %v3927 = vsel %vm3903, %v3795, 0.0
          %v3928 = vadd.f32 %v3926, %v3927
          %v3929 = vsel %vm3903, %v3797, 0.0
          %v3930 = vadd.f32 %v3928, %v3929
          %v3931 = vsel %vm3903, %v3799, 0.0
          %v3932 = vadd.f32 %v3930, %v3931
          %v3933 = vsel %vm3903, %v3801, 0.0
          %v3934 = vadd.f32 %v3932, %v3933
          %v3935 = vsel %vm3903, %v3803, 0.0
          %v3936 = vadd.f32 %v3934, %v3935
          %v3937 = vsel %vm3903, %v3805, 0.0
          %v3938 = vadd.f32 %v3936, %v3937
          %v3939 = vsel %vm3903, %v3807, 0.0
          %v3940 = vadd.f32 %v3938, %v3939
          %v3941 = vsel %vm3903, %v3809, 0.0
          %v3942 = vadd.f32 %v3940, %v3941
          %v3943 = vsel %vm3903, %v3811, 0.0
          %v3944 = vadd.f32 %v3942, %v3943
          %v3945 = vsel %vm3903, %v3813, 0.0
          %v3946 = vadd.f32 %v3944, %v3945
          %v3947 = vsel %vm3903, %v3815, 0.0
          %v3948 = vadd.f32 %v3946, %v3947
          %v3949 = vsel %vm3903, %v3817, 0.0
          %v3950 = vadd.f32 %v3948, %v3949
          %v3951 = vsel %vm3903, %v3819, 0.0
          %v3952 = vadd.f32 %v3950, %v3951
          %v3953 = vsel %vm3903, %v3821, 0.0
          %v3954 = vadd.f32 %v3952, %v3953
          %v3955 = vsel %vm3903, %v3823, 0.0
          %v3956 = vadd.f32 %v3954, %v3955
          %v3957 = vsel %vm3903, %v3825, 0.0
          %v3958 = vadd.f32 %v3956, %v3957
          %v3959 = vsel %vm3903, %v3827, 0.0
          %v3960 = vadd.f32 %v3958, %v3959
          %v3961 = vsel %vm3903, %v3829, 0.0
          %v3962 = vadd.f32 %v3960, %v3961
          %v3963 = vsel %vm3903, %v3831, 0.0
          %v3964 = vadd.f32 %v3962, %v3963
          %v3965 = vsel %vm3903, %v3833, 0.0
          %v3966 = vadd.f32 %v3964, %v3965
          %v3967 = vsel %vm3903, %v3835, 0.0
          %v3968 = vadd.f32 %v3966, %v3967
          %v3969 = vsel %vm3903, %v3837, 0.0
          %v3970 = vadd.f32 %v3968, %v3969
          %v3971 = vsel %vm3903, %v3839, 0.0
          %v3972 = vadd.f32 %v3970, %v3971
          %v3973 = vsel %vm3903, %v3841, 0.0
          %v3974 = vadd.f32 %v3972, %v3973
          %v3975 = vsel %vm3903, %v3843, 0.0
          %v3976 = vadd.f32 %v3974, %v3975
          %v3977 = vsel %vm3903, %v3845, 0.0
          %v3978 = vadd.f32 %v3976, %v3977
          %v3979 = vsel %vm3903, %v3847, 0.0
          %v3980 = vadd.f32 %v3978, %v3979
          %v3981 = vsel %vm3903, %v3849, 0.0
          %v3982 = vadd.f32 %v3980, %v3981
          %v3983 = vsel %vm3903, %v3851, 0.0
          %v3984 = vadd.f32 %v3982, %v3983
          %v3985 = vsel %vm3903, %v3853, 0.0
          %v3986 = vadd.f32 %v3984, %v3985
          %v3987 = vsel %vm3903, %v3855, 0.0
          %v3988 = vadd.f32 %v3986, %v3987
          %v3989 = vsel %vm3903, %v3857, 0.0
          %v3990 = vadd.f32 %v3988, %v3989
          %v3991 = vsel %vm3903, %v3859, 0.0
          %v3992 = vadd.f32 %v3990, %v3991
          %v3993 = vsel %vm3903, %v3861, 0.0
          %v3994 = vadd.f32 %v3992, %v3993
          %v3995 = vsel %vm3903, %v3863, 0.0
          %v3996 = vadd.f32 %v3994, %v3995
          %v3997 = vsel %vm3903, %v3865, 0.0
          %v3998 = vadd.f32 %v3996, %v3997
          %v3999 = vsel %vm3903, %v3867, 0.0
          %v4000 = vadd.f32 %v3998, %v3999
          %v4001 = vsel %vm3903, %v3869, 0.0
          %v4002 = vadd.f32 %v4000, %v4001
          %v4003 = vsel %vm3903, %v3871, 0.0
          %v4004 = vadd.f32 %v4002, %v4003
          %v4005 = vsel %vm3903, %v3873, 0.0
          %v4006 = vadd.f32 %v4004, %v4005
          %v4007 = vsel %vm3903, %v3875, 0.0
          %v4008 = vadd.f32 %v4006, %v4007
          %v4009 = vsel %vm3903, %v3877, 0.0
          %v4010 = vadd.f32 %v4008, %v4009
          %v4011 = vsel %vm3903, %v3879, 0.0
          %v4012 = vadd.f32 %v4010, %v4011
          %v4013 = vsel %vm3903, %v3881, 0.0
          %v4014 = vadd.f32 %v4012, %v4013
          %v4015 = vsel %vm3903, %v3883, 0.0
          %v4016 = vadd.f32 %v4014, %v4015
          %v4017 = vsel %vm3903, %v3885, 0.0
          %v4018 = vadd.f32 %v4016, %v4017
          %v4019 = vsel %vm3903, %v3887, 0.0
          %v4020 = vadd.f32 %v4018, %v4019
          %v4021 = vsel %vm3903, %v3889, 0.0
          %v4022 = vadd.f32 %v4020, %v4021
          %v4023 = vsel %vm3903, %v3891, 0.0
          %v4024 = vadd.f32 %v4022, %v4023
          %v4025 = vsel %vm3903, %v3893, 0.0
          %v4026 = vadd.f32 %v4024, %v4025
          %v4027 = vsel %vm3903, %v3895, 0.0
          %v4028 = vadd.f32 %v4026, %v4027
          %v4029 = vsel %vm3903, %v3897, 0.0
          %v4030 = vadd.f32 %v4028, %v4029
          %4031 = vadd.xlane.f32.xlu0 %v4030
          %v4032 = vpop.xlane.xlu0 %4031
          %v4033 = vrot.slane %v4032, 4
          %v4034 = vadd.f32 %v4032, %v4033
          %v4035 = vrot.slane %v4034, 2
          %v4036 = vadd.f32 %v4034, %v4035
          %v4037 = vrot.slane %v4036, 1
          %v4038 = vadd.f32 %v4036, %v4037
          %s4039 = vtos %v4038
          %v4040 = vstv %s4039
          %v4041 = vadd.f32 %v3902, %v4040
          %vm4042 = vcmask 0
          %4043 = vst.msk [vmem:[#allocation4] sm:$0x1] %vm4042, %v4041
          %4044 = vst.msk [vmem:[#allocation3] sm:$0x1] %vm4042, %v3702
        $region64: #{mine_objective.1} parent=55 // pred_fallthru
          _
      $region56: #{mine_objective.1} parent=47 // pred_fallthru
        _
      %p4045 = scmp.eq.s32.totalorder %s23, 2
      // Predicated region
      $region65: #{mine_objective.1} parent=47 // pred_check
        %p4046 = pneg %p4045
      $region66: #{mine_objective.1} parent=47 // pred_check_branch
        %4048 = sbr.rel (%p4046) target = $region68
      $region67: #{mine_objective.1} parent=47 // pred_region
        %v4049 = vld [vmem:[%s6] sm:$0x1]
        %v4050 = vld [vmem:[#allocation2] sm:$0x1]
        %v4051 = vmul.f32 %v4050, %v4049
        %4052 = vst [vmem:[%s478] sm:$0x1] %v4051
        %v4053 = vld [vmem:[#allocation3] sm:$0x1]
        %4055 = vset.pattern.permute.xlu0 0
        %4056 = vperm.xlu0 %4055, %v4053
        %v4057 = vpop.permute.xlu0 %4056
        %v4059 = vperm.slane %v4057, 0
        %4060 = vst [vmem:[%s478 + $0x1] sm:$0x1] %v4059
        %v4061 = vld [vmem:[#allocation4] sm:$0x1]
        %4063 = vset.pattern.permute.xlu0 0
        %4064 = vperm.xlu0 %4063, %v4061
        %v4065 = vpop.permute.xlu0 %4064
        %v4067 = vperm.slane %v4065, 0
        %4068 = vst [vmem:[%s478 + $0x2] sm:$0x1] %v4067
      $region68: #{mine_objective.1} parent=47 // pred_fallthru
        _
      %p4069 = scmp.lt.s32.totalorder %s22, 0
      %s4070 = scalar_select %p4069, %s22, 0
      %s4071 = smul.addr %s4070, 8
      %s4072 = scalar_lea.vmem %s7, %s4071
      // Predicated region
      $region69: #{mine_objective.1} parent=47 // pred_check
        %p4073 = pneg %p234
      $region70: #{mine_objective.1} parent=47 // pred_check_branch
        %4075 = sbr.rel (%p4073) target = $region72
      $region71: #{mine_objective.1} parent=47 // pred_region
        _
      $region72: #{mine_objective.1} parent=47 // pred_fallthru
        _
      // Predicated region
      $region73: #{mine_objective.1} parent=47 // pred_check
        %p4076 = pneg %p234
      $region74: #{mine_objective.1} parent=47 // pred_check_branch
        %4078 = sbr.rel (%p4076) target = $region76
      $region75: #{mine_objective.1} parent=47 // pred_region
        %p4079 = scmp.lt.s32.totalorder %s22, 0
        %s4080 = scalar_select %p4079, %s22, 0
        %s4081 = smul.addr %s4080, 8
        %s4082 = scalar_lea.vmem %s7, %s4081
      $region76: #{mine_objective.1} parent=47 // pred_fallthru
        _
    $region48: #{mine_objective.1} parent=5 // pred_fallthru
      _
    %p4083 = scmp.le.s32.totalorder 2, %s13
    // Predicated region
    $region77: #{mine_objective.1} parent=5 // pred_check
      %p4084 = pneg %p4083
    $region78: #{mine_objective.1} parent=5 // pred_check_branch
      %4086 = sbr.rel (%p4084) target = $region80
    $region79: #{mine_objective.1} parent=5 // pred_region
      %s4087 = ssub.s32 %s13, 2
    $region80: #{mine_objective.1} parent=5 // pred_fallthru
      _
  $region6: #{mine_objective.1} parent=0 // loop_footer
    %s17 = sadd.s32 1, %s13
  $region7: #{mine_objective.1} parent=0 // loop_footer_branch
    %12 = sbr.rel target = $region3
  $region8: #{mine_objective.1} parent=0 // loop_exit
    _

</llo_original>
